<compile_context>
chip_gen: v7x
topology: tpu7x:2x2x1
jax: 0.10.0
libtpu: 0.0.40
codegen_flags: <defaults>
</compile_context>

<pallas_src>
import functools
import math

import jax
import jax.numpy as jnp
from jax import lax
from jax.experimental import pallas as pl
from jax.experimental.pallas import tpu as pltpu

NEG_INF = -10000.0   # same sentinel NCRF++ uses for forbidden transitions
TP = 128             # padded tag lane width


def _round_up(x, m):
    return ((x + m - 1) // m) * m


def _row_block(m, target=256):
    """Bounded row tile + padded row count (never a single full-M block)."""
    tm = min(_round_up(m, 8), target)
    return tm, _round_up(m, tm)


def _pad_rows(a, mp):
    m = a.shape[0]
    if mp == m:
        return a
    pad = [(0, mp - m)] + [(0, 0)] * (a.ndim - 1)
    return jnp.pad(a, pad)


def _gelu(y):
    # TODO(synk): BERT uses erf-based GELU; tanh approximation used here.
    c = math.sqrt(2.0 / math.pi)
    return 0.5 * y * (1.0 + jnp.tanh(c * (y + 0.044715 * y * y * y)))


# --------------------------- Pallas kernels ---------------------------------

def _linear_kernel(x_ref, w_ref, b_ref, *rest, act, ln, eps):
    # bf16 operands into the MXU, f32 accumulate; optional fused res + LN.
    if ln:
        r_ref, g_ref, bt_ref, o_ref = rest
    else:
        (o_ref,) = rest
    x = x_ref[...].astype(jnp.bfloat16)
    y = jnp.dot(x, w_ref[...], preferred_element_type=jnp.float32) + b_ref[...]
    if act == "relu":
        y = jnp.maximum(y, 0.0)
    elif act == "gelu":
        y = _gelu(y)
    if ln:
        y = y + r_ref[...].astype(jnp.float32)
        mu = jnp.mean(y, axis=-1, keepdims=True)
        var = jnp.mean((y - mu) ** 2, axis=-1, keepdims=True)
        y = (y - mu) * lax.rsqrt(var + eps) * g_ref[...] + bt_ref[...]
    o_ref[...] = y.astype(o_ref.dtype)


def pallas_linear(x, w, b, act=None, res=None, ln_g=None, ln_b=None,
                  out_dtype=jnp.bfloat16, eps=1e-12):
    # TODO(synk): for BERT-large (K or N = 3072+) on v7x (64 MiB VMEM) add an
    # N-tiling grid axis (+ K accumulator) and raise vmem_limit_bytes; single
    # weight blocks with <=256-row tiles are fine at these shapes.
    M, K = x.shape
    N = w.shape[1]
    tm, Mp = _row_block(M)
    has_ln = ln_g is not None
    in_specs = [pl.BlockSpec((tm, K), lambda i: (i, 0)),
                # TODO(synk): mark weight/bias blocks pipeline_mode=pl.Buffered(1)
                # on v7x to avoid double-buffering grid-invariant operands.
                pl.BlockSpec((K, N), lambda i: (0, 0)),
                pl.BlockSpec((1, N), lambda i: (0, 0))]
    args = [_pad_rows(x, Mp), w.astype(jnp.bfloat16),
            b.reshape(1, N).astype(jnp.float32)]
    if has_ln:
        in_specs += [pl.BlockSpec((tm, N), lambda i: (i, 0)),
                     pl.BlockSpec((1, N), lambda i: (0, 0)),
                     pl.BlockSpec((1, N), lambda i: (0, 0))]
        args += [_pad_rows(res, Mp), ln_g.reshape(1, N), ln_b.reshape(1, N)]
    out = pl.pallas_call(
        functools.partial(_linear_kernel, act=act, ln=has_ln, eps=eps),
        out_shape=jax.ShapeDtypeStruct((Mp, N), out_dtype),
        grid=(Mp // tm,),
        in_specs=in_specs,
        out_specs=pl.BlockSpec((tm, N), lambda i: (i, 0)),
        compiler_params=pltpu.CompilerParams(dimension_semantics=("parallel",)),
    )(*args)
    return out if Mp == M else out[:M]


def _ffn_kernel(x_ref, wi_ref, bi_ref, wo_ref, bo_ref, g_ref, bt_ref, o_ref,
                *, eps):
    # Fused FFN: GELU(x@wi+bi)@wo2+bo2, residual (= x itself) and LayerNorm.
    # The (tm, I) intermediate lives only in VMEM/vregs.
    x = x_ref[...].astype(jnp.bfloat16)
    h = jnp.dot(x, wi_ref[...], preferred_element_type=jnp.float32) + bi_ref[...]
    h = _gelu(h)
    y = jnp.dot(h.astype(jnp.bfloat16), wo_ref[...],
                preferred_element_type=jnp.float32) + bo_ref[...]
    y = y + x.astype(jnp.float32)                      # residual = FFN input
    mu = jnp.mean(y, axis=-1, keepdims=True)
    var = jnp.mean((y - mu) ** 2, axis=-1, keepdims=True)
    o_ref[...] = ((y - mu) * lax.rsqrt(var + eps) * g_ref[...]
                  + bt_ref[...]).astype(o_ref.dtype)


def pallas_ffn(x, wi, bi, wo, bo, ln_g, ln_b, eps=1e-12):
    # TODO(synk): for BERT-size I (3072) on v7x, tile I with a grid axis and a
    # VMEM f32 accumulator (and set vmem_limit_bytes); single I block here.
    M, H = x.shape
    I = wi.shape[1]
    tm, Mp = _row_block(M)
    out = pl.pallas_call(
        functools.partial(_ffn_kernel, eps=eps),
        out_shape=jax.ShapeDtypeStruct((Mp, H), jnp.bfloat16),
        grid=(Mp // tm,),
        in_specs=[pl.BlockSpec((tm, H), lambda i: (i, 0)),
                  pl.BlockSpec((H, I), lambda i: (0, 0)),
                  pl.BlockSpec((1, I), lambda i: (0, 0)),
                  pl.BlockSpec((I, H), lambda i: (0, 0)),
                  pl.BlockSpec((1, H), lambda i: (0, 0)),
                  pl.BlockSpec((1, H), lambda i: (0, 0)),
                  pl.BlockSpec((1, H), lambda i: (0, 0))],
        out_specs=pl.BlockSpec((tm, H), lambda i: (i, 0)),
        compiler_params=pltpu.CompilerParams(dimension_semantics=("parallel",)),
    )(_pad_rows(x, Mp), wi.astype(jnp.bfloat16),
      bi.reshape(1, I).astype(jnp.float32), wo.astype(jnp.bfloat16),
      bo.reshape(1, H).astype(jnp.float32),
      ln_g.reshape(1, H), ln_b.reshape(1, H))
    return out if Mp == M else out[:M]


def _layernorm_kernel(x_ref, g_ref, b_ref, o_ref, *, eps):
    x = x_ref[...].astype(jnp.float32)
    mu = jnp.mean(x, axis=-1, keepdims=True)
    var = jnp.mean((x - mu) ** 2, axis=-1, keepdims=True)
    o_ref[...] = ((x - mu) * lax.rsqrt(var + eps) * g_ref[...]
                  + b_ref[...]).astype(o_ref.dtype)


def pallas_layernorm(x, g, b, eps=1e-12, out_dtype=jnp.bfloat16):
    M, H = x.shape
    tm, Mp = _row_block(M)
    out = pl.pallas_call(
        functools.partial(_layernorm_kernel, eps=eps),
        out_shape=jax.ShapeDtypeStruct((Mp, H), out_dtype),
        grid=(Mp // tm,),
        in_specs=[pl.BlockSpec((tm, H), lambda i: (i, 0)),
                  pl.BlockSpec((1, H), lambda i: (0, 0)),
                  pl.BlockSpec((1, H), lambda i: (0, 0))],
        out_specs=pl.BlockSpec((tm, H), lambda i: (i, 0)),
        compiler_params=pltpu.CompilerParams(dimension_semantics=("parallel",)),
    )(_pad_rows(x, Mp), g.reshape(1, H), b.reshape(1, H))
    return out if Mp == M else out[:M]


def _attention_kernel(qkv_ref, mb_ref, o_ref, *, nH, dh, scale):
    # qkv block: (1, S, 3H) bf16; per-head q/k/v are static lane slices.
    # Each head's context is stored directly to its o_ref lane slice.
    # TODO(synk): for S >= 512 tile KV with online softmax (flash style); for
    # production dims (dh=64) pair heads / lane-pad wqkv so per-head slices
    # start on 128-lane boundaries, or move heads onto the grid.
    qkv = qkv_ref[0]                     # (S, 3H) bf16
    mb = mb_ref[0]                       # (1, S) f32 additive mask bias
    H = nH * dh
    for h in range(nH):
        q = qkv[:, h * dh:(h + 1) * dh].astype(jnp.bfloat16)
        k = qkv[:, H + h * dh:H + (h + 1) * dh].astype(jnp.bfloat16)
        v = qkv[:, 2 * H + h * dh:2 * H + (h + 1) * dh].astype(jnp.bfloat16)
        s = lax.dot_general(q, k, (((1,), (1,)), ((), ())),
                            preferred_element_type=jnp.float32) * scale
        s = s + mb                                       # (S, S)
        m = jnp.max(s, axis=-1, keepdims=True)
        p = jnp.exp(s - m)
        p = p * pl.reciprocal(jnp.sum(p, axis=-1, keepdims=True), approx=True)
        ctx_h = jnp.dot(p.astype(jnp.bfloat16), v,
                        preferred_element_type=jnp.float32)
        o_ref[0, :, h * dh:(h + 1) * dh] = ctx_h.astype(o_ref.dtype)


def pallas_attention(qkv, mask_bias, nH, dh, scale):
    B, S, threeH = qkv.shape
    H = nH * dh
    return pl.pallas_call(
        functools.partial(_attention_kernel, nH=nH, dh=dh, scale=scale),
        out_shape=jax.ShapeDtypeStruct((B, S, H), jnp.bfloat16),
        grid=(B,),
        in_specs=[
            pl.BlockSpec((1, S, threeH), lambda b: (b, 0, 0)),
            pl.BlockSpec((1, 1, S), lambda b: (b, 0, 0)),
        ],
        out_specs=pl.BlockSpec((1, S, H), lambda b: (b, 0, 0)),
        compiler_params=pltpu.CompilerParams(dimension_semantics=("parallel",)),
    )(qkv, mask_bias)


def _crf_kernel(feats_ref, trans_ref, mask_ref, lab_ref,
                loss_ref, path_ref, bp_ref, *, T, TPAD, S, BB):
    # T: true tag size (= target_size + 2, START = T-2, STOP = T-1)
    # TPAD: sublane-rounded tag count used as the Viterbi "prev" extent.
    trans = trans_ref[...]                         # (TP, TP) f32
    tmax = jnp.max(trans)                          # max-shift: exp can't overflow
    exp_trans = jnp.exp(trans - tmax)              # padded rows/cols -> 0
    start_row = trans[T - 2:T - 1, :]              # trans[START, :]  (1, TP)
    stop_row = trans.T[T - 1:T, :]                 # trans[:, STOP]   (1, TP)
    trans_prev = trans[:TPAD, :]                   # (TPAD, TP)

    lane_iota = lax.broadcasted_iota(jnp.int32, (BB, TP), 1)
    prev_iota = lax.broadcasted_iota(jnp.int32, (BB, TPAD, TP), 1
                                     ).astype(jnp.float32)

    # ---- gold path score: fully vectorized, outside the sequential loop ----
    msk = mask_ref[...]                            # (S, BB, 1) f32
    lab = lab_ref[...]                             # (S, BB, 1) int32
    feats_all = feats_ref[...]                     # (S, BB, TP) f32
    tag_iota = lax.broadcasted_iota(jnp.int32, (S, BB, TP), 2)
    onehot = (tag_iota == lab).astype(jnp.float32)

    em_sum = jnp.sum(feats_all * onehot * msk)
    rows = jnp.dot(onehot[:S - 1].reshape((S - 1) * BB, TP), trans,
                   preferred_element_type=jnp.float32)
    tr_sum = jnp.sum(rows.reshape(S - 1, BB, TP) * onehot[1:] * msk[1:])
    start_sum = jnp.sum(start_row * onehot[0] * msk[0])
    # one-hot of the last valid tag per row (mask is a contiguous prefix)
    last_oh = (jnp.sum(onehot * msk, axis=0)
               - jnp.sum(onehot[:S - 1] * msk[1:], axis=0))        # (BB, TP)
    end_sum = jnp.sum(last_oh * stop_row)
    gold = em_sum + tr_sum + start_sum + end_sum

    # ---- forward algorithm (log-partition) + Viterbi recursion -------------
    def lse_step(alpha):
        m = jnp.max(alpha, axis=1, keepdims=True)
        z = jnp.dot(jnp.exp(alpha - m), exp_trans,
                    preferred_element_type=jnp.float32)
        return m + tmax + jnp.log(z)

    feat0 = feats_all[0]                           # (BB, TP)
    alpha0 = feat0 + start_row
    delta0 = alpha0

    def step(t, carry):
        alpha, delta = carry
        feat_t = feats_ref[t]                      # (BB, TP)
        valid = mask_ref[t] > 0.0                  # (BB, 1)

        alpha = jnp.where(valid, lse_step(alpha) + feat_t, alpha)

        d_prev = delta[:, :TPAD]                                    # (BB, TPAD)
        vs = d_prev[:, :, None] + trans_prev[None, :, :]            # (BB,TPAD,TP)
        vmax = jnp.max(vs, axis=1)                                  # (BB, TP)
        bp = jnp.min(jnp.where(vs >= vmax[:, None, :], prev_iota, float(TPAD)),
                     axis=1).astype(jnp.int32)
        delta = jnp.where(valid, vmax + feat_t, delta)
        bp_ref[t] = jnp.where(valid, bp, lane_iota)    # identity on pad steps
        return alpha, delta

    alpha, delta = lax.fori_loop(1, S, step, (alpha0, delta0))

    forward_score = jnp.sum(lse_step(alpha)[:, T - 1:T])   # into STOP
    loss_ref[0, 0] = forward_score - gold

    # ---- Viterbi termination + backtrace (register-carried path) -----------
    final_v = delta + stop_row                              # (BB, TP)
    fmax = jnp.max(final_v, axis=1, keepdims=True)
    ptr = jnp.min(jnp.where(final_v >= fmax, lane_iota.astype(jnp.float32),
                            float(TP)),
                  axis=1, keepdims=True).astype(jnp.int32)  # (BB, 1)

    time_iota = lax.broadcasted_iota(jnp.int32, (BB, S), 1)
    path_acc = jnp.where(time_iota == (S - 1), ptr, 0)      # (BB, S)

    def back(i, carry):
        ptr, path_acc = carry
        t = S - 1 - i
        bp_t = bp_ref[t].astype(jnp.float32)                # (BB, TP)
        new_ptr = jnp.sum(jnp.where(lane_iota == ptr, bp_t, 0.0),
                          axis=1, keepdims=True).astype(jnp.int32)
        path_acc = jnp.where(time_iota == (t - 1), new_ptr, path_acc)
        return new_ptr, path_acc

    _, path_acc = lax.fori_loop(0, S - 1, back, (ptr, path_acc))
    path_ref[...] = path_acc                                # one lane-dense store


def pallas_crf(feats_sbt, trans_p, mask_sbt, labels_sbt, T):
    S, B, _ = feats_sbt.shape
    bb = 8 if B % 8 == 0 else B        # batch tile (megacore splits blocks)
    nb = B // bb
    tpad = max(8, _round_up(T, 8))
    loss_blocks, path = pl.pallas_call(
        functools.partial(_crf_kernel, T=T, TPAD=tpad, S=S, BB=bb),
        out_shape=(jax.ShapeDtypeStruct((nb, 1), jnp.float32),
                   jax.ShapeDtypeStruct((B, S), jnp.int32)),
        grid=(nb,),
        in_specs=[
            pl.BlockSpec((S, bb, TP), lambda i: (0, i, 0)),
            pl.BlockSpec((TP, TP), lambda i: (0, 0)),
            pl.BlockSpec((S, bb, 1), lambda i: (0, i, 0)),
            pl.BlockSpec((S, bb, 1), lambda i: (0, i, 0)),
        ],
        out_specs=(pl.BlockSpec((1, 1), lambda i: (i, 0),
                                memory_space=pltpu.SMEM),
                   pl.BlockSpec((bb, S), lambda i: (i, 0))),
        scratch_shapes=[pltpu.VMEM((S, bb, TP), jnp.int32)],
        compiler_params=pltpu.CompilerParams(dimension_semantics=("parallel",)),
    )(feats_sbt, trans_p, mask_sbt, labels_sbt)
    return jnp.sum(loss_blocks), path


# --------------------------- Model (JAX glue) --------------------------------

def init_crf_transitions(key, T):
    trans = 0.1 * jax.random.normal(key, (T, T), jnp.float32)
    trans = trans.at[:, T - 2].set(NEG_INF)    # nothing transitions into START
    trans = trans.at[T - 1, :].set(NEG_INF)    # nothing transitions out of STOP
    trans_p = jnp.full((TP, TP), NEG_INF, jnp.float32)
    trans_p = trans_p.at[:T, :T].set(trans)
    return trans_p


def init_params(key, cfg):
    # TODO(synk): pretrained BERT weights are not loaded; random init stands in.
    H, I, mid = cfg["hidden"], cfg["inter"], cfg["mid"]
    mid_p = _round_up(mid, TP)                 # pad FC-head width to 128 lanes
    T = 2 * cfg["event_num"] + 1 + 2
    keys = jax.random.split(key, 7)

    def dense(k, i, o):
        return (0.02 * jax.random.normal(k, (i, o), jnp.float32)
                ).astype(jnp.bfloat16)

    fc1_core = 0.02 * jax.random.normal(keys[3], (H, mid), jnp.float32)
    fc1_w = jnp.zeros((H, mid_p), jnp.float32).at[:, :mid].set(fc1_core)
    fc2_core = 0.02 * jax.random.normal(keys[4], (mid, T), jnp.float32)
    fc2_w = jnp.zeros((mid_p, TP), jnp.float32).at[:mid, :T].set(fc2_core)
    fc2_b = jnp.full((TP,), NEG_INF, jnp.float32).at[:T].set(0.0)

    p = {
        "word_emb": 0.02 * jax.random.normal(keys[0], (cfg["vocab"], H), jnp.float32),
        "pos_emb": 0.02 * jax.random.normal(keys[1], (cfg["max_pos"], H), jnp.float32),
        "tok_emb": 0.02 * jax.random.normal(keys[2], (cfg["type_vocab"], H), jnp.float32),
        "emb_ln_g": jnp.ones((H,), jnp.float32),
        "emb_ln_b": jnp.zeros((H,), jnp.float32),
        "fc1_w": fc1_w.astype(jnp.bfloat16),
        "fc1_b": jnp.zeros((mid_p,), jnp.float32),
        "fc2_w": fc2_w.astype(jnp.bfloat16),
        "fc2_b": fc2_b,
        "crf_trans_p": init_crf_transitions(keys[5], T),
        "layers": [],
    }
    for li in range(cfg["layers"]):
        k = jax.random.split(jax.random.fold_in(keys[6], li), 6)
        p["layers"].append({
            "wqkv": jnp.concatenate(
                [dense(k[0], H, H), dense(k[1], H, H), dense(k[2], H, H)], axis=1),
            "bqkv": jnp.zeros((3 * H,), jnp.float32),
            "wo": dense(k[3], H, H), "bo": jnp.zeros((H,), jnp.float32),
            "ln1_g": jnp.ones((H,), jnp.float32), "ln1_b": jnp.zeros((H,), jnp.float32),
            "wi": dense(k[4], H, I), "bi": jnp.zeros((I,), jnp.float32),
            "wo2": dense(k[5], I, H), "bo2": jnp.zeros((H,), jnp.float32),
            "ln2_g": jnp.ones((H,), jnp.float32), "ln2_b": jnp.zeros((H,), jnp.float32),
        })
    return p


def bert_encoder(params, input_ids, token_type_ids, attention_mask, cfg):
    B, S = input_ids.shape
    H, nH = cfg["hidden"], cfg["heads"]
    dh = H // nH
    emb = (jnp.take(params["word_emb"], input_ids, axis=0)
           + params["pos_emb"][None, :S, :]
           + jnp.take(params["tok_emb"], token_type_ids, axis=0))
    x = pallas_layernorm(emb.reshape(B * S, H),
                         params["emb_ln_g"], params["emb_ln_b"])     # bf16
    # TODO(synk): embedding/attention/hidden dropout omitted (eval semantics).
    mask_bias = ((1.0 - attention_mask.astype(jnp.float32)) * -1e9
                 ).reshape(B, 1, S)
    scale = 1.0 / math.sqrt(dh)

    for lp in params["layers"]:
        qkv = pallas_linear(x, lp["wqkv"], lp["bqkv"])               # bf16 (M,3H)
        ctx = pallas_attention(qkv.reshape(B, S, 3 * H), mask_bias,
                               nH, dh, scale)                        # bf16 (B,S,H)
        # fused: attn-out projection + residual + LayerNorm
        x = pallas_linear(ctx.reshape(B * S, H), lp["wo"], lp["bo"],
                          res=x, ln_g=lp["ln1_g"], ln_b=lp["ln1_b"])
        # fused: wi + GELU + wo2 + residual + LayerNorm (no (M,I) HBM round trip)
        x = pallas_ffn(x, lp["wi"], lp["bi"], lp["wo2"], lp["bo2"],
                       lp["ln2_g"], lp["ln2_b"])
    return x  # (B*S, H) bf16


def trigger_model_forward(params, input_ids, attention_mask, labels,
                          token_type_ids, cfg):
    B, S = input_ids.shape
    T = 2 * cfg["event_num"] + 1 + 2   # target_size + START + STOP

    seq_out = bert_encoder(params, input_ids, token_type_ids, attention_mask, cfg)
    h = pallas_linear(seq_out, params["fc1_w"], params["fc1_b"], act="relu")
    # TODO(synk): nn.Dropout(0.5) in the FC head omitted (inference/eval mode).
    # fc2 is padded to 128 output lanes (pad-tag bias = NEG_INF): emissions are
    # lane-dense and f32 for the CRF scores.
    feats = pallas_linear(h, params["fc2_w"], params["fc2_b"],
                          out_dtype=jnp.float32)                    # (B*S, TP)
    feats_sbt = feats.reshape(B, S, TP).transpose(1, 0, 2)          # (S, B, TP)

    maskf = attention_mask.astype(jnp.float32)
    mask_sbt = maskf.T.reshape(S, B, 1)
    labels_sbt = labels.astype(jnp.int32).T.reshape(S, B, 1)

    loss, path = pallas_crf(feats_sbt, params["crf_trans_p"],
                            mask_sbt, labels_sbt, T)                # path (B, S)
    out = path * attention_mask.astype(jnp.int32)
    return out, loss


# --------------------------------- main --------------------------------------

if __name__ == "__main__":
    cfg = dict(vocab=50, hidden=32, heads=4, layers=2, inter=64,
               max_pos=16, type_vocab=2, mid=16, event_num=3)
    B, S = 2, 8

    key = jax.random.PRNGKey(0)
    kp, k1, k2 = jax.random.split(key, 3)
    params = init_params(kp, cfg)

    input_ids = jax.random.randint(k1, (B, S), 0, cfg["vocab"], dtype=jnp.int32)
    attention_mask = jnp.ones((B, S), jnp.int32)
    labels = jax.random.randint(k2, (B, S), 0, 2 * cfg["event_num"] + 1,
                                dtype=jnp.int32)
    token_type_ids = jnp.zeros((B, S), jnp.int32)

    fwd = jax.jit(lambda p, ii, am, lb, tt:
                  trigger_model_forward(p, ii, am, lb, tt, cfg))
    out, loss = fwd(params, input_ids, attention_mask, labels, token_type_ids)
    jax.block_until_ready((out, loss))

    assert out.shape == (B, S) and out.dtype == jnp.int32
    assert loss.shape == () and bool(jnp.isfinite(loss))
    print("KERNEL_OK")
</pallas_src>

<mosaic_0001>
module attributes {stable_mosaic.version = 11 : i64} {
  func.func @_layernorm_kernel(%arg0: i32, %arg1: memref<16x32xf32, #tpu.memory_space<vmem>>, %arg2: memref<1x32xf32, #tpu.memory_space<vmem>>, %arg3: memref<1x32xf32, #tpu.memory_space<vmem>>, %arg4: memref<16x32xbf16, #tpu.memory_space<vmem>>) attributes {dimension_semantics = [#tpu.dimension_semantics<parallel>], iteration_bounds = array<i64: 1>, scalar_prefetch = 0 : i64, scratch_operands = 0 : i64, tpu.core_type = #tpu.core_type<tc>, window_params = [{transform_indices = @transform_0, window_bounds = array<i64: 16, 32>}, {pipeline_mode = #tpu.pipeline_mode<synchronous>, transform_indices = @transform_1, window_bounds = array<i64: 1, 32>}, {pipeline_mode = #tpu.pipeline_mode<synchronous>, transform_indices = @transform_2, window_bounds = array<i64: 1, 32>}, {transform_indices = @transform_3, window_bounds = array<i64: 16, 32>}]} {
    %c0 = arith.constant 0 : index
    %c0_0 = arith.constant 0 : index
    %0 = vector.load %arg1[%c0, %c0_0] : memref<16x32xf32, #tpu.memory_space<vmem>>, vector<16x32xf32>
    %cst = arith.constant dense<0.000000e+00> : vector<16xf32>
    %1 = vector.multi_reduction <add>, %0, %cst [1] : vector<16x32xf32> to vector<16xf32>
    %2 = vector.shape_cast %1 : vector<16xf32> to vector<16x1xf32>
    %cst_1 = arith.constant 3.200000e+01 : f32
    %3 = vector.broadcast %cst_1 : f32 to vector<16x1xf32>
    %4 = arith.divf %2, %3 : vector<16x1xf32>
    %5 = vector.broadcast %4 : vector<16x1xf32> to vector<16x32xf32>
    %6 = arith.subf %0, %5 : vector<16x32xf32>
    %7 = arith.mulf %6, %6 : vector<16x32xf32>
    %cst_2 = arith.constant dense<0.000000e+00> : vector<16xf32>
    %8 = vector.multi_reduction <add>, %7, %cst_2 [1] : vector<16x32xf32> to vector<16xf32>
    %9 = vector.shape_cast %8 : vector<16xf32> to vector<16x1xf32>
    %cst_3 = arith.constant 3.200000e+01 : f32
    %10 = vector.broadcast %cst_3 : f32 to vector<16x1xf32>
    %11 = arith.divf %9, %10 : vector<16x1xf32>
    %12 = vector.broadcast %4 : vector<16x1xf32> to vector<16x32xf32>
    %13 = arith.subf %0, %12 : vector<16x32xf32>
    %cst_4 = arith.constant 9.99999996E-13 : f32
    %14 = vector.broadcast %cst_4 : f32 to vector<16x1xf32>
    %15 = arith.addf %11, %14 : vector<16x1xf32>
    %16 = math.rsqrt %15 : vector<16x1xf32>
    %17 = vector.broadcast %16 : vector<16x1xf32> to vector<16x32xf32>
    %18 = arith.mulf %13, %17 : vector<16x32xf32>
    %c0_5 = arith.constant 0 : index
    %c0_6 = arith.constant 0 : index
    %19 = vector.load %arg2[%c0_5, %c0_6] : memref<1x32xf32, #tpu.memory_space<vmem>>, vector<1x32xf32>
    %20 = vector.broadcast %19 : vector<1x32xf32> to vector<16x32xf32>
    %21 = arith.mulf %18, %20 : vector<16x32xf32>
    %c0_7 = arith.constant 0 : index
    %c0_8 = arith.constant 0 : index
    %22 = vector.load %arg3[%c0_7, %c0_8] : memref<1x32xf32, #tpu.memory_space<vmem>>, vector<1x32xf32>
    %23 = vector.broadcast %22 : vector<1x32xf32> to vector<16x32xf32>
    %24 = arith.addf %21, %23 : vector<16x32xf32>
    %25 = arith.truncf %24 : vector<16x32xf32> to vector<16x32xbf16>
    %c0_9 = arith.constant 0 : index
    %c0_10 = arith.constant 0 : index
    %26 = vector.load %arg4[%c0_9, %c0_10] : memref<16x32xbf16, #tpu.memory_space<vmem>>, vector<16x32xbf16>
    tpu.vector_store %arg4[%c0_9, %c0_10], %25 {strides = array<i32>} : memref<16x32xbf16, #tpu.memory_space<vmem>>, vector<16x32xbf16>,
    return
  }
  func.func @transform_0(%arg0: i32) -> (i32, i32) {
    %c0_i32 = arith.constant 0 : i32
    %c0_i32_0 = arith.constant 0 : i32
    return %arg0, %c0_i32 : i32, i32
  }
  func.func @transform_1(%arg0: i32) -> (i32, i32) {
    %c0_i32 = arith.constant 0 : i32
    %c0_i32_0 = arith.constant 0 : i32
    %c0_i32_1 = arith.constant 0 : i32
    return %c0_i32, %c0_i32_0 : i32, i32
  }
  func.func @transform_2(%arg0: i32) -> (i32, i32) {
    %c0_i32 = arith.constant 0 : i32
    %c0_i32_0 = arith.constant 0 : i32
    %c0_i32_1 = arith.constant 0 : i32
    return %c0_i32, %c0_i32_0 : i32, i32
  }
  func.func @transform_3(%arg0: i32) -> (i32, i32) {
    %c0_i32 = arith.constant 0 : i32
    %c0_i32_0 = arith.constant 0 : i32
    return %arg0, %c0_i32 : i32, i32
  }
}

module attributes {stable_mosaic.version = 11 : i64} {
  func.func @_linear_kernel(%arg0: i32, %arg1: memref<16x32xbf16, #tpu.memory_space<vmem>>, %arg2: memref<32x96xbf16, #tpu.memory_space<vmem>>, %arg3: memref<1x96xf32, #tpu.memory_space<vmem>>, %arg4: memref<16x96xbf16, #tpu.memory_space<vmem>>) attributes {dimension_semantics = [#tpu.dimension_semantics<parallel>], iteration_bounds = array<i64: 1>, scalar_prefetch = 0 : i64, scratch_operands = 0 : i64, tpu.core_type = #tpu.core_type<tc>, window_params = [{transform_indices = @transform_0, window_bounds = array<i64: 16, 32>}, {pipeline_mode = #tpu.pipeline_mode<synchronous>, transform_indices = @transform_1, window_bounds = array<i64: 32, 96>}, {pipeline_mode = #tpu.pipeline_mode<synchronous>, transform_indices = @transform_2, window_bounds = array<i64: 1, 96>}, {transform_indices = @transform_3, window_bounds = array<i64: 16, 96>}]} {
    %c0 = arith.constant 0 : index
    %c0_0 = arith.constant 0 : index
    %0 = vector.load %arg1[%c0, %c0_0] : memref<16x32xbf16, #tpu.memory_space<vmem>>, vector<16x32xbf16>
    %c0_1 = arith.constant 0 : index
    %c0_2 = arith.constant 0 : index
    %1 = vector.load %arg2[%c0_1, %c0_2] : memref<32x96xbf16, #tpu.memory_space<vmem>>, vector<32x96xbf16>
    %cst = arith.constant dense<0.000000e+00> : vector<16x96xf32>
    %2 = tpu.matmul %0, %1, %cst {dimension_numbers = #tpu.dot_dimension_numbers<[1], [0], [0], [1], [0, 0, 1, 1], [], []>} : vector<16x32xbf16>, vector<32x96xbf16>, vector<16x96xf32> -> vector<16x96xf32>
    %c0_3 = arith.constant 0 : index
    %c0_4 = arith.constant 0 : index
    %3 = vector.load %arg3[%c0_3, %c0_4] : memref<1x96xf32, #tpu.memory_space<vmem>>, vector<1x96xf32>
    %4 = vector.broadcast %3 : vector<1x96xf32> to vector<16x96xf32>
    %5 = arith.addf %2, %4 : vector<16x96xf32>
    %6 = arith.truncf %5 : vector<16x96xf32> to vector<16x96xbf16>
    %c0_5 = arith.constant 0 : index
    %c0_6 = arith.constant 0 : index
    %7 = vector.load %arg4[%c0_5, %c0_6] : memref<16x96xbf16, #tpu.memory_space<vmem>>, vector<16x96xbf16>
    tpu.vector_store %arg4[%c0_5, %c0_6], %6 {strides = array<i32>} : memref<16x96xbf16, #tpu.memory_space<vmem>>, vector<16x96xbf16>,
    return
  }
  func.func @transform_0(%arg0: i32) -> (i32, i32) {
    %c0_i32 = arith.constant 0 : i32
    %c0_i32_0 = arith.constant 0 : i32
    return %arg0, %c0_i32 : i32, i32
  }
  func.func @transform_1(%arg0: i32) -> (i32, i32) {
    %c0_i32 = arith.constant 0 : i32
    %c0_i32_0 = arith.constant 0 : i32
    %c0_i32_1 = arith.constant 0 : i32
    return %c0_i32, %c0_i32_0 : i32, i32
  }
  func.func @transform_2(%arg0: i32) -> (i32, i32) {
    %c0_i32 = arith.constant 0 : i32
    %c0_i32_0 = arith.constant 0 : i32
    %c0_i32_1 = arith.constant 0 : i32
    return %c0_i32, %c0_i32_0 : i32, i32
  }
  func.func @transform_3(%arg0: i32) -> (i32, i32) {
    %c0_i32 = arith.constant 0 : i32
    %c0_i32_0 = arith.constant 0 : i32
    return %arg0, %c0_i32 : i32, i32
  }
}

module attributes {stable_mosaic.version = 11 : i64} {
  func.func @_attention_kernel(%arg0: i32, %arg1: memref<1x8x96xbf16, #tpu.memory_space<vmem>>, %arg2: memref<1x1x8xf32, #tpu.memory_space<vmem>>, %arg3: memref<1x8x32xbf16, #tpu.memory_space<vmem>>) attributes {dimension_semantics = [#tpu.dimension_semantics<parallel>], iteration_bounds = array<i64: 2>, scalar_prefetch = 0 : i64, scratch_operands = 0 : i64, tpu.core_type = #tpu.core_type<tc>, window_params = [{transform_indices = @transform_0, window_bounds = array<i64: 1, 8, 96>}, {transform_indices = @transform_1, window_bounds = array<i64: 1, 1, 8>}, {transform_indices = @transform_2, window_bounds = array<i64: 1, 8, 32>}]} {
    %c0 = arith.constant 0 : index
    %c0_0 = arith.constant 0 : index
    %c0_1 = arith.constant 0 : index
    %0 = vector.load %arg1[%c0, %c0_0, %c0_1] : memref<1x8x96xbf16, #tpu.memory_space<vmem>>, vector<1x8x96xbf16>
    %1 = vector.shape_cast %0 : vector<1x8x96xbf16> to vector<8x96xbf16>
    %c0_2 = arith.constant 0 : index
    %c0_3 = arith.constant 0 : index
    %c0_4 = arith.constant 0 : index
    %2 = vector.load %arg2[%c0_2, %c0_3, %c0_4] : memref<1x1x8xf32, #tpu.memory_space<vmem>>, vector<1x1x8xf32>
    %3 = vector.shape_cast %2 : vector<1x1x8xf32> to vector<1x8xf32>
    %4 = vector.extract_strided_slice %1 {offsets = [0, 0], sizes = [8, 8], strides = [1, 1]} : vector<8x96xbf16> to vector<8x8xbf16>
    %5 = vector.extract_strided_slice %1 {offsets = [0, 32], sizes = [8, 8], strides = [1, 1]} : vector<8x96xbf16> to vector<8x8xbf16>
    %6 = vector.extract_strided_slice %1 {offsets = [0, 64], sizes = [8, 8], strides = [1, 1]} : vector<8x96xbf16> to vector<8x8xbf16>
    %cst = arith.constant dense<0.000000e+00> : vector<8x8xf32>
    %7 = tpu.matmul %4, %5, %cst {dimension_numbers = #tpu.dot_dimension_numbers<[1], [1], [0], [0], [0, 0, 1, 0], [], []>} : vector<8x8xbf16>, vector<8x8xbf16>, vector<8x8xf32> -> vector<8x8xf32>
    %cst_5 = arith.constant 0.353553385 : f32
    %8 = vector.broadcast %cst_5 : f32 to vector<8x8xf32>
    %9 = arith.mulf %7, %8 : vector<8x8xf32>
    %10 = vector.broadcast %3 : vector<1x8xf32> to vector<8x8xf32>
    %11 = arith.addf %9, %10 : vector<8x8xf32>
    %cst_6 = arith.constant dense<0xFF800000> : vector<8xf32>
    %12 = vector.multi_reduction <maximumf>, %11, %cst_6 [1] : vector<8x8xf32> to vector<8xf32>
    %13 = vector.shape_cast %12 : vector<8xf32> to vector<8x1xf32>
    %14 = vector.broadcast %13 : vector<8x1xf32> to vector<8x8xf32>
    %15 = arith.subf %11, %14 : vector<8x8xf32>
    %16 = math.exp %15 : vector<8x8xf32>
    %cst_7 = arith.constant dense<0.000000e+00> : vector<8xf32>
    %17 = vector.multi_reduction <add>, %16, %cst_7 [1] : vector<8x8xf32> to vector<8xf32>
    %18 = vector.shape_cast %17 : vector<8xf32> to vector<8x1xf32>
    %19 = tpu.reciprocal %18 {approx = true} : vector<8x1xf32> -> vector<8x1xf32>
    %20 = vector.broadcast %19 : vector<8x1xf32> to vector<8x8xf32>
    %21 = arith.mulf %16, %20 : vector<8x8xf32>
    %22 = arith.truncf %21 : vector<8x8xf32> to vector<8x8xbf16>
    %cst_8 = arith.constant dense<0.000000e+00> : vector<8x8xf32>
    %23 = tpu.matmul %22, %6, %cst_8 {dimension_numbers = #tpu.dot_dimension_numbers<[1], [0], [0], [1], [0, 0, 1, 1], [], []>} : vector<8x8xbf16>, vector<8x8xbf16>, vector<8x8xf32> -> vector<8x8xf32>
    %24 = arith.truncf %23 : vector<8x8xf32> to vector<8x8xbf16>
    %c0_9 = arith.constant 0 : index
    %c0_10 = arith.constant 0 : index
    %c0_11 = arith.constant 0 : index
    %25 = vector.load %arg3[%c0_9, %c0_10, %c0_11] : memref<1x8x32xbf16, #tpu.memory_space<vmem>>, vector<1x8x8xbf16>
    %26 = vector.shape_cast %25 : vector<1x8x8xbf16> to vector<8x8xbf16>
    %27 = vector.shape_cast %24 : vector<8x8xbf16> to vector<1x8x8xbf16>
    tpu.vector_store %arg3[%c0_9, %c0_10, %c0_11], %27 {strides = array<i32>} : memref<1x8x32xbf16, #tpu.memory_space<vmem>>, vector<1x8x8xbf16>,
    %28 = vector.extract_strided_slice %1 {offsets = [0, 8], sizes = [8, 8], strides = [1, 1]} : vector<8x96xbf16> to vector<8x8xbf16>
    %29 = vector.extract_strided_slice %1 {offsets = [0, 40], sizes = [8, 8], strides = [1, 1]} : vector<8x96xbf16> to vector<8x8xbf16>
    %30 = vector.extract_strided_slice %1 {offsets = [0, 72], sizes = [8, 8], strides = [1, 1]} : vector<8x96xbf16> to vector<8x8xbf16>
    %cst_12 = arith.constant dense<0.000000e+00> : vector<8x8xf32>
    %31 = tpu.matmul %28, %29, %cst_12 {dimension_numbers = #tpu.dot_dimension_numbers<[1], [1], [0], [0], [0, 0, 1, 0], [], []>} : vector<8x8xbf16>, vector<8x8xbf16>, vector<8x8xf32> -> vector<8x8xf32>
    %cst_13 = arith.constant 0.353553385 : f32
    %32 = vector.broadcast %cst_13 : f32 to vector<8x8xf32>
    %33 = arith.mulf %31, %32 : vector<8x8xf32>
    %34 = vector.broadcast %3 : vector<1x8xf32> to vector<8x8xf32>
    %35 = arith.addf %33, %34 : vector<8x8xf32>
    %cst_14 = arith.constant dense<0xFF800000> : vector<8xf32>
    %36 = vector.multi_reduction <maximumf>, %35, %cst_14 [1] : vector<8x8xf32> to vector<8xf32>
    %37 = vector.shape_cast %36 : vector<8xf32> to vector<8x1xf32>
    %38 = vector.broadcast %37 : vector<8x1xf32> to vector<8x8xf32>
    %39 = arith.subf %35, %38 : vector<8x8xf32>
    %40 = math.exp %39 : vector<8x8xf32>
    %cst_15 = arith.constant dense<0.000000e+00> : vector<8xf32>
    %41 = vector.multi_reduction <add>, %40, %cst_15 [1] : vector<8x8xf32> to vector<8xf32>
    %42 = vector.shape_cast %41 : vector<8xf32> to vector<8x1xf32>
    %43 = tpu.reciprocal %42 {approx = true} : vector<8x1xf32> -> vector<8x1xf32>
    %44 = vector.broadcast %43 : vector<8x1xf32> to vector<8x8xf32>
    %45 = arith.mulf %40, %44 : vector<8x8xf32>
    %46 = arith.truncf %45 : vector<8x8xf32> to vector<8x8xbf16>
    %cst_16 = arith.constant dense<0.000000e+00> : vector<8x8xf32>
    %47 = tpu.matmul %46, %30, %cst_16 {dimension_numbers = #tpu.dot_dimension_numbers<[1], [0], [0], [1], [0, 0, 1, 1], [], []>} : vector<8x8xbf16>, vector<8x8xbf16>, vector<8x8xf32> -> vector<8x8xf32>
    %48 = arith.truncf %47 : vector<8x8xf32> to vector<8x8xbf16>
    %c0_17 = arith.constant 0 : index
    %c0_18 = arith.constant 0 : index
    %c8 = arith.constant 8 : index
    %49 = vector.load %arg3[%c0_17, %c0_18, %c8] : memref<1x8x32xbf16, #tpu.memory_space<vmem>>, vector<1x8x8xbf16>
    %50 = vector.shape_cast %49 : vector<1x8x8xbf16> to vector<8x8xbf16>
    %51 = vector.shape_cast %48 : vector<8x8xbf16> to vector<1x8x8xbf16>
    tpu.vector_store %arg3[%c0_17, %c0_18, %c8], %51 {strides = array<i32>} : memref<1x8x32xbf16, #tpu.memory_space<vmem>>, vector<1x8x8xbf16>,
    %52 = vector.extract_strided_slice %1 {offsets = [0, 16], sizes = [8, 8], strides = [1, 1]} : vector<8x96xbf16> to vector<8x8xbf16>
    %53 = vector.extract_strided_slice %1 {offsets = [0, 48], sizes = [8, 8], strides = [1, 1]} : vector<8x96xbf16> to vector<8x8xbf16>
    %54 = vector.extract_strided_slice %1 {offsets = [0, 80], sizes = [8, 8], strides = [1, 1]} : vector<8x96xbf16> to vector<8x8xbf16>
    %cst_19 = arith.constant dense<0.000000e+00> : vector<8x8xf32>
    %55 = tpu.matmul %52, %53, %cst_19 {dimension_numbers = #tpu.dot_dimension_numbers<[1], [1], [0], [0], [0, 0, 1, 0], [], []>} : vector<8x8xbf16>, vector<8x8xbf16>, vector<8x8xf32> -> vector<8x8xf32>
    %cst_20 = arith.constant 0.353553385 : f32
    %56 = vector.broadcast %cst_20 : f32 to vector<8x8xf32>
    %57 = arith.mulf %55, %56 : vector<8x8xf32>
    %58 = vector.broadcast %3 : vector<1x8xf32> to vector<8x8xf32>
    %59 = arith.addf %57, %58 : vector<8x8xf32>
    %cst_21 = arith.constant dense<0xFF800000> : vector<8xf32>
    %60 = vector.multi_reduction <maximumf>, %59, %cst_21 [1] : vector<8x8xf32> to vector<8xf32>
    %61 = vector.shape_cast %60 : vector<8xf32> to vector<8x1xf32>
    %62 = vector.broadcast %61 : vector<8x1xf32> to vector<8x8xf32>
    %63 = arith.subf %59, %62 : vector<8x8xf32>
    %64 = math.exp %63 : vector<8x8xf32>
    %cst_22 = arith.constant dense<0.000000e+00> : vector<8xf32>
    %65 = vector.multi_reduction <add>, %64, %cst_22 [1] : vector<8x8xf32> to vector<8xf32>
    %66 = vector.shape_cast %65 : vector<8xf32> to vector<8x1xf32>
    %67 = tpu.reciprocal %66 {approx = true} : vector<8x1xf32> -> vector<8x1xf32>
    %68 = vector.broadcast %67 : vector<8x1xf32> to vector<8x8xf32>
    %69 = arith.mulf %64, %68 : vector<8x8xf32>
    %70 = arith.truncf %69 : vector<8x8xf32> to vector<8x8xbf16>
    %cst_23 = arith.constant dense<0.000000e+00> : vector<8x8xf32>
    %71 = tpu.matmul %70, %54, %cst_23 {dimension_numbers = #tpu.dot_dimension_numbers<[1], [0], [0], [1], [0, 0, 1, 1], [], []>} : vector<8x8xbf16>, vector<8x8xbf16>, vector<8x8xf32> -> vector<8x8xf32>
    %72 = arith.truncf %71 : vector<8x8xf32> to vector<8x8xbf16>
    %c0_24 = arith.constant 0 : index
    %c0_25 = arith.constant 0 : index
    %c16 = arith.constant 16 : index
    %73 = vector.load %arg3[%c0_24, %c0_25, %c16] : memref<1x8x32xbf16, #tpu.memory_space<vmem>>, vector<1x8x8xbf16>
    %74 = vector.shape_cast %73 : vector<1x8x8xbf16> to vector<8x8xbf16>
    %75 = vector.shape_cast %72 : vector<8x8xbf16> to vector<1x8x8xbf16>
    tpu.vector_store %arg3[%c0_24, %c0_25, %c16], %75 {strides = array<i32>} : memref<1x8x32xbf16, #tpu.memory_space<vmem>>, vector<1x8x8xbf16>,
    %76 = vector.extract_strided_slice %1 {offsets = [0, 24], sizes = [8, 8], strides = [1, 1]} : vector<8x96xbf16> to vector<8x8xbf16>
    %77 = vector.extract_strided_slice %1 {offsets = [0, 56], sizes = [8, 8], strides = [1, 1]} : vector<8x96xbf16> to vector<8x8xbf16>
    %78 = vector.extract_strided_slice %1 {offsets = [0, 88], sizes = [8, 8], strides = [1, 1]} : vector<8x96xbf16> to vector<8x8xbf16>
    %cst_26 = arith.constant dense<0.000000e+00> : vector<8x8xf32>
    %79 = tpu.matmul %76, %77, %cst_26 {dimension_numbers = #tpu.dot_dimension_numbers<[1], [1], [0], [0], [0, 0, 1, 0], [], []>} : vector<8x8xbf16>, vector<8x8xbf16>, vector<8x8xf32> -> vector<8x8xf32>
    %cst_27 = arith.constant 0.353553385 : f32
    %80 = vector.broadcast %cst_27 : f32 to vector<8x8xf32>
    %81 = arith.mulf %79, %80 : vector<8x8xf32>
    %82 = vector.broadcast %3 : vector<1x8xf32> to vector<8x8xf32>
    %83 = arith.addf %81, %82 : vector<8x8xf32>
    %cst_28 = arith.constant dense<0xFF800000> : vector<8xf32>
    %84 = vector.multi_reduction <maximumf>, %83, %cst_28 [1] : vector<8x8xf32> to vector<8xf32>
    %85 = vector.shape_cast %84 : vector<8xf32> to vector<8x1xf32>
    %86 = vector.broadcast %85 : vector<8x1xf32> to vector<8x8xf32>
    %87 = arith.subf %83, %86 : vector<8x8xf32>
    %88 = math.exp %87 : vector<8x8xf32>
    %cst_29 = arith.constant dense<0.000000e+00> : vector<8xf32>
    %89 = vector.multi_reduction <add>, %88, %cst_29 [1] : vector<8x8xf32> to vector<8xf32>
    %90 = vector.shape_cast %89 : vector<8xf32> to vector<8x1xf32>
    %91 = tpu.reciprocal %90 {approx = true} : vector<8x1xf32> -> vector<8x1xf32>
    %92 = vector.broadcast %91 : vector<8x1xf32> to vector<8x8xf32>
    %93 = arith.mulf %88, %92 : vector<8x8xf32>
    %94 = arith.truncf %93 : vector<8x8xf32> to vector<8x8xbf16>
    %cst_30 = arith.constant dense<0.000000e+00> : vector<8x8xf32>
    %95 = tpu.matmul %94, %78, %cst_30 {dimension_numbers = #tpu.dot_dimension_numbers<[1], [0], [0], [1], [0, 0, 1, 1], [], []>} : vector<8x8xbf16>, vector<8x8xbf16>, vector<8x8xf32> -> vector<8x8xf32>
    %96 = arith.truncf %95 : vector<8x8xf32> to vector<8x8xbf16>
    %c0_31 = arith.constant 0 : index
    %c0_32 = arith.constant 0 : index
    %c24 = arith.constant 24 : index
    %97 = vector.load %arg3[%c0_31, %c0_32, %c24] : memref<1x8x32xbf16, #tpu.memory_space<vmem>>, vector<1x8x8xbf16>
    %98 = vector.shape_cast %97 : vector<1x8x8xbf16> to vector<8x8xbf16>
    %99 = vector.shape_cast %96 : vector<8x8xbf16> to vector<1x8x8xbf16>
    tpu.vector_store %arg3[%c0_31, %c0_32, %c24], %99 {strides = array<i32>} : memref<1x8x32xbf16, #tpu.memory_space<vmem>>, vector<1x8x8xbf16>,
    return
  }
  func.func @transform_0(%arg0: i32) -> (i32, i32, i32) {
    %c0_i32 = arith.constant 0 : i32
    %c0_i32_0 = arith.constant 0 : i32
    %c0_i32_1 = arith.constant 0 : i32
    return %arg0, %c0_i32, %c0_i32_0 : i32, i32, i32
  }
  func.func @transform_1(%arg0: i32) -> (i32, i32, i32) {
    %c0_i32 = arith.constant 0 : i32
    %c0_i32_0 = arith.constant 0 : i32
    %c0_i32_1 = arith.constant 0 : i32
    return %arg0, %c0_i32, %c0_i32_0 : i32, i32, i32
  }
  func.func @transform_2(%arg0: i32) -> (i32, i32, i32) {
    %c0_i32 = arith.constant 0 : i32
    %c0_i32_0 = arith.constant 0 : i32
    %c0_i32_1 = arith.constant 0 : i32
    return %arg0, %c0_i32, %c0_i32_0 : i32, i32, i32
  }
}

module attributes {stable_mosaic.version = 11 : i64} {
  func.func @_linear_kernel(%arg0: i32, %arg1: memref<16x32xbf16, #tpu.memory_space<vmem>>, %arg2: memref<32x32xbf16, #tpu.memory_space<vmem>>, %arg3: memref<1x32xf32, #tpu.memory_space<vmem>>, %arg4: memref<16x32xbf16, #tpu.memory_space<vmem>>, %arg5: memref<1x32xf32, #tpu.memory_space<vmem>>, %arg6: memref<1x32xf32, #tpu.memory_space<vmem>>, %arg7: memref<16x32xbf16, #tpu.memory_space<vmem>>) attributes {dimension_semantics = [#tpu.dimension_semantics<parallel>], iteration_bounds = array<i64: 1>, scalar_prefetch = 0 : i64, scratch_operands = 0 : i64, tpu.core_type = #tpu.core_type<tc>, window_params = [{transform_indices = @transform_0, window_bounds = array<i64: 16, 32>}, {pipeline_mode = #tpu.pipeline_mode<synchronous>, transform_indices = @transform_1, window_bounds = array<i64: 32, 32>}, {pipeline_mode = #tpu.pipeline_mode<synchronous>, transform_indices = @transform_2, window_bounds = array<i64: 1, 32>}, {transform_indices = @transform_3, window_bounds = array<i64: 16, 32>}, {pipeline_mode = #tpu.pipeline_mode<synchronous>, transform_indices = @transform_4, window_bounds = array<i64: 1, 32>}, {pipeline_mode = #tpu.pipeline_mode<synchronous>, transform_indices = @transform_5, window_bounds = array<i64: 1, 32>}, {transform_indices = @transform_6, window_bounds = array<i64: 16, 32>}]} {
    %c0 = arith.constant 0 : index
    %c0_0 = arith.constant 0 : index
    %0 = vector.load %arg1[%c0, %c0_0] : memref<16x32xbf16, #tpu.memory_space<vmem>>, vector<16x32xbf16>
    %c0_1 = arith.constant 0 : index
    %c0_2 = arith.constant 0 : index
    %1 = vector.load %arg2[%c0_1, %c0_2] : memref<32x32xbf16, #tpu.memory_space<vmem>>, vector<32x32xbf16>
    %cst = arith.constant dense<0.000000e+00> : vector<16x32xf32>
    %2 = tpu.matmul %0, %1, %cst {dimension_numbers = #tpu.dot_dimension_numbers<[1], [0], [0], [1], [0, 0, 1, 1], [], []>} : vector<16x32xbf16>, vector<32x32xbf16>, vector<16x32xf32> -> vector<16x32xf32>
    %c0_3 = arith.constant 0 : index
    %c0_4 = arith.constant 0 : index
    %3 = vector.load %arg3[%c0_3, %c0_4] : memref<1x32xf32, #tpu.memory_space<vmem>>, vector<1x32xf32>
    %4 = vector.broadcast %3 : vector<1x32xf32> to vector<16x32xf32>
    %5 = arith.addf %2, %4 : vector<16x32xf32>
    %c0_5 = arith.constant 0 : index
    %c0_6 = arith.constant 0 : index
    %6 = vector.load %arg4[%c0_5, %c0_6] : memref<16x32xbf16, #tpu.memory_space<vmem>>, vector<16x32xbf16>
    %7 = arith.extf %6 : vector<16x32xbf16> to vector<16x32xf32>
    %8 = arith.addf %5, %7 : vector<16x32xf32>
    %cst_7 = arith.constant dense<0.000000e+00> : vector<16xf32>
    %9 = vector.multi_reduction <add>, %8, %cst_7 [1] : vector<16x32xf32> to vector<16xf32>
    %10 = vector.shape_cast %9 : vector<16xf32> to vector<16x1xf32>
    %cst_8 = arith.constant 3.200000e+01 : f32
    %11 = vector.broadcast %cst_8 : f32 to vector<16x1xf32>
    %12 = arith.divf %10, %11 : vector<16x1xf32>
    %13 = vector.broadcast %12 : vector<16x1xf32> to vector<16x32xf32>
    %14 = arith.subf %8, %13 : vector<16x32xf32>
    %15 = arith.mulf %14, %14 : vector<16x32xf32>
    %cst_9 = arith.constant dense<0.000000e+00> : vector<16xf32>
    %16 = vector.multi_reduction <add>, %15, %cst_9 [1] : vector<16x32xf32> to vector<16xf32>
    %17 = vector.shape_cast %16 : vector<16xf32> to vector<16x1xf32>
    %cst_10 = arith.constant 3.200000e+01 : f32
    %18 = vector.broadcast %cst_10 : f32 to vector<16x1xf32>
    %19 = arith.divf %17, %18 : vector<16x1xf32>
    %20 = vector.broadcast %12 : vector<16x1xf32> to vector<16x32xf32>
    %21 = arith.subf %8, %20 : vector<16x32xf32>
    %cst_11 = arith.constant 9.99999996E-13 : f32
    %22 = vector.broadcast %cst_11 : f32 to vector<16x1xf32>
    %23 = arith.addf %19, %22 : vector<16x1xf32>
    %24 = math.rsqrt %23 : vector<16x1xf32>
    %25 = vector.broadcast %24 : vector<16x1xf32> to vector<16x32xf32>
    %26 = arith.mulf %21, %25 : vector<16x32xf32>
    %c0_12 = arith.constant 0 : index
    %c0_13 = arith.constant 0 : index
    %27 = vector.load %arg5[%c0_12, %c0_13] : memref<1x32xf32, #tpu.memory_space<vmem>>, vector<1x32xf32>
    %28 = vector.broadcast %27 : vector<1x32xf32> to vector<16x32xf32>
    %29 = arith.mulf %26, %28 : vector<16x32xf32>
    %c0_14 = arith.constant 0 : index
    %c0_15 = arith.constant 0 : index
    %30 = vector.load %arg6[%c0_14, %c0_15] : memref<1x32xf32, #tpu.memory_space<vmem>>, vector<1x32xf32>
    %31 = vector.broadcast %30 : vector<1x32xf32> to vector<16x32xf32>
    %32 = arith.addf %29, %31 : vector<16x32xf32>
    %33 = arith.truncf %32 : vector<16x32xf32> to vector<16x32xbf16>
    %c0_16 = arith.constant 0 : index
    %c0_17 = arith.constant 0 : index
    %34 = vector.load %arg7[%c0_16, %c0_17] : memref<16x32xbf16, #tpu.memory_space<vmem>>, vector<16x32xbf16>
    tpu.vector_store %arg7[%c0_16, %c0_17], %33 {strides = array<i32>} : memref<16x32xbf16, #tpu.memory_space<vmem>>, vector<16x32xbf16>,
    return
  }
  func.func @transform_0(%arg0: i32) -> (i32, i32) {
    %c0_i32 = arith.constant 0 : i32
    %c0_i32_0 = arith.constant 0 : i32
    return %arg0, %c0_i32 : i32, i32
  }
  func.func @transform_1(%arg0: i32) -> (i32, i32) {
    %c0_i32 = arith.constant 0 : i32
    %c0_i32_0 = arith.constant 0 : i32
    %c0_i32_1 = arith.constant 0 : i32
    return %c0_i32, %c0_i32_0 : i32, i32
  }
  func.func @transform_2(%arg0: i32) -> (i32, i32) {
    %c0_i32 = arith.constant 0 : i32
    %c0_i32_0 = arith.constant 0 : i32
    %c0_i32_1 = arith.constant 0 : i32
    return %c0_i32, %c0_i32_0 : i32, i32
  }
  func.func @transform_3(%arg0: i32) -> (i32, i32) {
    %c0_i32 = arith.constant 0 : i32
    %c0_i32_0 = arith.constant 0 : i32
    return %arg0, %c0_i32 : i32, i32
  }
  func.func @transform_4(%arg0: i32) -> (i32, i32) {
    %c0_i32 = arith.constant 0 : i32
    %c0_i32_0 = arith.constant 0 : i32
    %c0_i32_1 = arith.constant 0 : i32
    return %c0_i32, %c0_i32_0 : i32, i32
  }
  func.func @transform_5(%arg0: i32) -> (i32, i32) {
    %c0_i32 = arith.constant 0 : i32
    %c0_i32_0 = arith.constant 0 : i32
    %c0_i32_1 = arith.constant 0 : i32
    return %c0_i32, %c0_i32_0 : i32, i32
  }
  func.func @transform_6(%arg0: i32) -> (i32, i32) {
    %c0_i32 = arith.constant 0 : i32
    %c0_i32_0 = arith.constant 0 : i32
    return %arg0, %c0_i32 : i32, i32
  }
}

module attributes {stable_mosaic.version = 11 : i64} {
  func.func @_linear_kernel(%arg0: i32, %arg1: memref<16x32xbf16, #tpu.memory_space<vmem>>, %arg2: memref<32x128xbf16, #tpu.memory_space<vmem>>, %arg3: memref<1x128xf32, #tpu.memory_space<vmem>>, %arg4: memref<16x128xbf16, #tpu.memory_space<vmem>>) attributes {dimension_semantics = [#tpu.dimension_semantics<parallel>], iteration_bounds = array<i64: 1>, scalar_prefetch = 0 : i64, scratch_operands = 0 : i64, tpu.core_type = #tpu.core_type<tc>, window_params = [{transform_indices = @transform_0, window_bounds = array<i64: 16, 32>}, {pipeline_mode = #tpu.pipeline_mode<synchronous>, transform_indices = @transform_1, window_bounds = array<i64: 32, 128>}, {pipeline_mode = #tpu.pipeline_mode<synchronous>, transform_indices = @transform_2, window_bounds = array<i64: 1, 128>}, {transform_indices = @transform_3, window_bounds = array<i64: 16, 128>}]} {
    %c0 = arith.constant 0 : index
    %c0_0 = arith.constant 0 : index
    %0 = vector.load %arg1[%c0, %c0_0] : memref<16x32xbf16, #tpu.memory_space<vmem>>, vector<16x32xbf16>
    %c0_1 = arith.constant 0 : index
    %c0_2 = arith.constant 0 : index
    %1 = vector.load %arg2[%c0_1, %c0_2] : memref<32x128xbf16, #tpu.memory_space<vmem>>, vector<32x128xbf16>
    %cst = arith.constant dense<0.000000e+00> : vector<16x128xf32>
    %2 = tpu.matmul %0, %1, %cst {dimension_numbers = #tpu.dot_dimension_numbers<[1], [0], [0], [1], [0, 0, 1, 1], [], []>} : vector<16x32xbf16>, vector<32x128xbf16>, vector<16x128xf32> -> vector<16x128xf32>
    %c0_3 = arith.constant 0 : index
    %c0_4 = arith.constant 0 : index
    %3 = vector.load %arg3[%c0_3, %c0_4] : memref<1x128xf32, #tpu.memory_space<vmem>>, vector<1x128xf32>
    %4 = vector.broadcast %3 : vector<1x128xf32> to vector<16x128xf32>
    %5 = arith.addf %2, %4 : vector<16x128xf32>
    %cst_5 = arith.constant 0.000000e+00 : f32
    %6 = vector.broadcast %cst_5 : f32 to vector<16x128xf32>
    %7 = arith.maximumf %5, %6 : vector<16x128xf32>
    %8 = arith.truncf %7 : vector<16x128xf32> to vector<16x128xbf16>
    %c0_6 = arith.constant 0 : index
    %c0_7 = arith.constant 0 : index
    %9 = vector.load %arg4[%c0_6, %c0_7] : memref<16x128xbf16, #tpu.memory_space<vmem>>, vector<16x128xbf16>
    tpu.vector_store %arg4[%c0_6, %c0_7], %8 {strides = array<i32>} : memref<16x128xbf16, #tpu.memory_space<vmem>>, vector<16x128xbf16>,
    return
  }
  func.func @transform_0(%arg0: i32) -> (i32, i32) {
    %c0_i32 = arith.constant 0 : i32
    %c0_i32_0 = arith.constant 0 : i32
    return %arg0, %c0_i32 : i32, i32
  }
  func.func @transform_1(%arg0: i32) -> (i32, i32) {
    %c0_i32 = arith.constant 0 : i32
    %c0_i32_0 = arith.constant 0 : i32
    %c0_i32_1 = arith.constant 0 : i32
    return %c0_i32, %c0_i32_0 : i32, i32
  }
  func.func @transform_2(%arg0: i32) -> (i32, i32) {
    %c0_i32 = arith.constant 0 : i32
    %c0_i32_0 = arith.constant 0 : i32
    %c0_i32_1 = arith.constant 0 : i32
    return %c0_i32, %c0_i32_0 : i32, i32
  }
  func.func @transform_3(%arg0: i32) -> (i32, i32) {
    %c0_i32 = arith.constant 0 : i32
    %c0_i32_0 = arith.constant 0 : i32
    return %arg0, %c0_i32 : i32, i32
  }
}

module attributes {stable_mosaic.version = 11 : i64} {
  func.func @_ffn_kernel(%arg0: i32, %arg1: memref<16x32xbf16, #tpu.memory_space<vmem>>, %arg2: memref<32x64xbf16, #tpu.memory_space<vmem>>, %arg3: memref<1x64xf32, #tpu.memory_space<vmem>>, %arg4: memref<64x32xbf16, #tpu.memory_space<vmem>>, %arg5: memref<1x32xf32, #tpu.memory_space<vmem>>, %arg6: memref<1x32xf32, #tpu.memory_space<vmem>>, %arg7: memref<1x32xf32, #tpu.memory_space<vmem>>, %arg8: memref<16x32xbf16, #tpu.memory_space<vmem>>) attributes {dimension_semantics = [#tpu.dimension_semantics<parallel>], iteration_bounds = array<i64: 1>, scalar_prefetch = 0 : i64, scratch_operands = 0 : i64, tpu.core_type = #tpu.core_type<tc>, window_params = [{transform_indices = @transform_0, window_bounds = array<i64: 16, 32>}, {pipeline_mode = #tpu.pipeline_mode<synchronous>, transform_indices = @transform_1, window_bounds = array<i64: 32, 64>}, {pipeline_mode = #tpu.pipeline_mode<synchronous>, transform_indices = @transform_2, window_bounds = array<i64: 1, 64>}, {pipeline_mode = #tpu.pipeline_mode<synchronous>, transform_indices = @transform_3, window_bounds = array<i64: 64, 32>}, {pipeline_mode = #tpu.pipeline_mode<synchronous>, transform_indices = @transform_4, window_bounds = array<i64: 1, 32>}, {pipeline_mode = #tpu.pipeline_mode<synchronous>, transform_indices = @transform_5, window_bounds = array<i64: 1, 32>}, {pipeline_mode = #tpu.pipeline_mode<synchronous>, transform_indices = @transform_6, window_bounds = array<i64: 1, 32>}, {transform_indices = @transform_7, window_bounds = array<i64: 16, 32>}]} {
    %c0 = arith.constant 0 : index
    %c0_0 = arith.constant 0 : index
    %0 = vector.load %arg1[%c0, %c0_0] : memref<16x32xbf16, #tpu.memory_space<vmem>>, vector<16x32xbf16>
    %c0_1 = arith.constant 0 : index
    %c0_2 = arith.constant 0 : index
    %1 = vector.load %arg2[%c0_1, %c0_2] : memref<32x64xbf16, #tpu.memory_space<vmem>>, vector<32x64xbf16>
    %cst = arith.constant dense<0.000000e+00> : vector<16x64xf32>
    %2 = tpu.matmul %0, %1, %cst {dimension_numbers = #tpu.dot_dimension_numbers<[1], [0], [0], [1], [0, 0, 1, 1], [], []>} : vector<16x32xbf16>, vector<32x64xbf16>, vector<16x64xf32> -> vector<16x64xf32>
    %c0_3 = arith.constant 0 : index
    %c0_4 = arith.constant 0 : index
    %3 = vector.load %arg3[%c0_3, %c0_4] : memref<1x64xf32, #tpu.memory_space<vmem>>, vector<1x64xf32>
    %4 = vector.broadcast %3 : vector<1x64xf32> to vector<16x64xf32>
    %5 = arith.addf %2, %4 : vector<16x64xf32>
    %cst_5 = arith.constant 5.000000e-01 : f32
    %6 = vector.broadcast %cst_5 : f32 to vector<16x64xf32>
    %7 = arith.mulf %6, %5 : vector<16x64xf32>
    %cst_6 = arith.constant 4.471500e-02 : f32
    %8 = vector.broadcast %cst_6 : f32 to vector<16x64xf32>
    %9 = arith.mulf %8, %5 : vector<16x64xf32>
    %10 = arith.mulf %9, %5 : vector<16x64xf32>
    %11 = arith.mulf %10, %5 : vector<16x64xf32>
    %12 = arith.addf %5, %11 : vector<16x64xf32>
    %cst_7 = arith.constant 0.797884583 : f32
    %13 = vector.broadcast %cst_7 : f32 to vector<16x64xf32>
    %14 = arith.mulf %13, %12 : vector<16x64xf32>
    %15 = math.tanh %14 : vector<16x64xf32>
    %cst_8 = arith.constant 1.000000e+00 : f32
    %16 = vector.broadcast %cst_8 : f32 to vector<16x64xf32>
    %17 = arith.addf %16, %15 : vector<16x64xf32>
    %18 = arith.mulf %7, %17 : vector<16x64xf32>
    %19 = arith.truncf %18 : vector<16x64xf32> to vector<16x64xbf16>
    %c0_9 = arith.constant 0 : index
    %c0_10 = arith.constant 0 : index
    %20 = vector.load %arg4[%c0_9, %c0_10] : memref<64x32xbf16, #tpu.memory_space<vmem>>, vector<64x32xbf16>
    %cst_11 = arith.constant dense<0.000000e+00> : vector<16x32xf32>
    %21 = tpu.matmul %19, %20, %cst_11 {dimension_numbers = #tpu.dot_dimension_numbers<[1], [0], [0], [1], [0, 0, 1, 1], [], []>} : vector<16x64xbf16>, vector<64x32xbf16>, vector<16x32xf32> -> vector<16x32xf32>
    %c0_12 = arith.constant 0 : index
    %c0_13 = arith.constant 0 : index
    %22 = vector.load %arg5[%c0_12, %c0_13] : memref<1x32xf32, #tpu.memory_space<vmem>>, vector<1x32xf32>
    %23 = vector.broadcast %22 : vector<1x32xf32> to vector<16x32xf32>
    %24 = arith.addf %21, %23 : vector<16x32xf32>
    %25 = arith.extf %0 : vector<16x32xbf16> to vector<16x32xf32>
    %26 = arith.addf %24, %25 : vector<16x32xf32>
    %cst_14 = arith.constant dense<0.000000e+00> : vector<16xf32>
    %27 = vector.multi_reduction <add>, %26, %cst_14 [1] : vector<16x32xf32> to vector<16xf32>
    %28 = vector.shape_cast %27 : vector<16xf32> to vector<16x1xf32>
    %cst_15 = arith.constant 3.200000e+01 : f32
    %29 = vector.broadcast %cst_15 : f32 to vector<16x1xf32>
    %30 = arith.divf %28, %29 : vector<16x1xf32>
    %31 = vector.broadcast %30 : vector<16x1xf32> to vector<16x32xf32>
    %32 = arith.subf %26, %31 : vector<16x32xf32>
    %33 = arith.mulf %32, %32 : vector<16x32xf32>
    %cst_16 = arith.constant dense<0.000000e+00> : vector<16xf32>
    %34 = vector.multi_reduction <add>, %33, %cst_16 [1] : vector<16x32xf32> to vector<16xf32>
    %35 = vector.shape_cast %34 : vector<16xf32> to vector<16x1xf32>
    %cst_17 = arith.constant 3.200000e+01 : f32
    %36 = vector.broadcast %cst_17 : f32 to vector<16x1xf32>
    %37 = arith.divf %35, %36 : vector<16x1xf32>
    %38 = vector.broadcast %30 : vector<16x1xf32> to vector<16x32xf32>
    %39 = arith.subf %26, %38 : vector<16x32xf32>
    %cst_18 = arith.constant 9.99999996E-13 : f32
    %40 = vector.broadcast %cst_18 : f32 to vector<16x1xf32>
    %41 = arith.addf %37, %40 : vector<16x1xf32>
    %42 = math.rsqrt %41 : vector<16x1xf32>
    %43 = vector.broadcast %42 : vector<16x1xf32> to vector<16x32xf32>
    %44 = arith.mulf %39, %43 : vector<16x32xf32>
    %c0_19 = arith.constant 0 : index
    %c0_20 = arith.constant 0 : index
    %45 = vector.load %arg6[%c0_19, %c0_20] : memref<1x32xf32, #tpu.memory_space<vmem>>, vector<1x32xf32>
    %46 = vector.broadcast %45 : vector<1x32xf32> to vector<16x32xf32>
    %47 = arith.mulf %44, %46 : vector<16x32xf32>
    %c0_21 = arith.constant 0 : index
    %c0_22 = arith.constant 0 : index
    %48 = vector.load %arg7[%c0_21, %c0_22] : memref<1x32xf32, #tpu.memory_space<vmem>>, vector<1x32xf32>
    %49 = vector.broadcast %48 : vector<1x32xf32> to vector<16x32xf32>
    %50 = arith.addf %47, %49 : vector<16x32xf32>
    %51 = arith.truncf %50 : vector<16x32xf32> to vector<16x32xbf16>
    %c0_23 = arith.constant 0 : index
    %c0_24 = arith.constant 0 : index
    %52 = vector.load %arg8[%c0_23, %c0_24] : memref<16x32xbf16, #tpu.memory_space<vmem>>, vector<16x32xbf16>
    tpu.vector_store %arg8[%c0_23, %c0_24], %51 {strides = array<i32>} : memref<16x32xbf16, #tpu.memory_space<vmem>>, vector<16x32xbf16>,
    return
  }
  func.func @transform_0(%arg0: i32) -> (i32, i32) {
    %c0_i32 = arith.constant 0 : i32
    %c0_i32_0 = arith.constant 0 : i32
    return %arg0, %c0_i32 : i32, i32
  }
  func.func @transform_1(%arg0: i32) -> (i32, i32) {
    %c0_i32 = arith.constant 0 : i32
    %c0_i32_0 = arith.constant 0 : i32
    %c0_i32_1 = arith.constant 0 : i32
    return %c0_i32, %c0_i32_0 : i32, i32
  }
  func.func @transform_2(%arg0: i32) -> (i32, i32) {
    %c0_i32 = arith.constant 0 : i32
    %c0_i32_0 = arith.constant 0 : i32
    %c0_i32_1 = arith.constant 0 : i32
    return %c0_i32, %c0_i32_0 : i32, i32
  }
  func.func @transform_3(%arg0: i32) -> (i32, i32) {
    %c0_i32 = arith.constant 0 : i32
    %c0_i32_0 = arith.constant 0 : i32
    %c0_i32_1 = arith.constant 0 : i32
    return %c0_i32, %c0_i32_0 : i32, i32
  }
  func.func @transform_4(%arg0: i32) -> (i32, i32) {
    %c0_i32 = arith.constant 0 : i32
    %c0_i32_0 = arith.constant 0 : i32
    %c0_i32_1 = arith.constant 0 : i32
    return %c0_i32, %c0_i32_0 : i32, i32
  }
  func.func @transform_5(%arg0: i32) -> (i32, i32) {
    %c0_i32 = arith.constant 0 : i32
    %c0_i32_0 = arith.constant 0 : i32
    %c0_i32_1 = arith.constant 0 : i32
    return %c0_i32, %c0_i32_0 : i32, i32
  }
  func.func @transform_6(%arg0: i32) -> (i32, i32) {
    %c0_i32 = arith.constant 0 : i32
    %c0_i32_0 = arith.constant 0 : i32
    %c0_i32_1 = arith.constant 0 : i32
    return %c0_i32, %c0_i32_0 : i32, i32
  }
  func.func @transform_7(%arg0: i32) -> (i32, i32) {
    %c0_i32 = arith.constant 0 : i32
    %c0_i32_0 = arith.constant 0 : i32
    return %arg0, %c0_i32 : i32, i32
  }
}

module attributes {stable_mosaic.version = 11 : i64} {
  func.func @_linear_kernel(%arg0: i32, %arg1: memref<16x128xbf16, #tpu.memory_space<vmem>>, %arg2: memref<128x128xbf16, #tpu.memory_space<vmem>>, %arg3: memref<1x128xf32, #tpu.memory_space<vmem>>, %arg4: memref<16x128xf32, #tpu.memory_space<vmem>>) attributes {dimension_semantics = [#tpu.dimension_semantics<parallel>], iteration_bounds = array<i64: 1>, scalar_prefetch = 0 : i64, scratch_operands = 0 : i64, tpu.core_type = #tpu.core_type<tc>, window_params = [{transform_indices = @transform_0, window_bounds = array<i64: 16, 128>}, {pipeline_mode = #tpu.pipeline_mode<synchronous>, transform_indices = @transform_1, window_bounds = array<i64: 128, 128>}, {pipeline_mode = #tpu.pipeline_mode<synchronous>, transform_indices = @transform_2, window_bounds = array<i64: 1, 128>}, {transform_indices = @transform_3, window_bounds = array<i64: 16, 128>}]} {
    %c0 = arith.constant 0 : index
    %c0_0 = arith.constant 0 : index
    %0 = vector.load %arg1[%c0, %c0_0] : memref<16x128xbf16, #tpu.memory_space<vmem>>, vector<16x128xbf16>
    %c0_1 = arith.constant 0 : index
    %c0_2 = arith.constant 0 : index
    %1 = vector.load %arg2[%c0_1, %c0_2] : memref<128x128xbf16, #tpu.memory_space<vmem>>, vector<128x128xbf16>
    %cst = arith.constant dense<0.000000e+00> : vector<16x128xf32>
    %2 = tpu.matmul %0, %1, %cst {dimension_numbers = #tpu.dot_dimension_numbers<[1], [0], [0], [1], [0, 0, 1, 1], [], []>} : vector<16x128xbf16>, vector<128x128xbf16>, vector<16x128xf32> -> vector<16x128xf32>
    %c0_3 = arith.constant 0 : index
    %c0_4 = arith.constant 0 : index
    %3 = vector.load %arg3[%c0_3, %c0_4] : memref<1x128xf32, #tpu.memory_space<vmem>>, vector<1x128xf32>
    %4 = vector.broadcast %3 : vector<1x128xf32> to vector<16x128xf32>
    %5 = arith.addf %2, %4 : vector<16x128xf32>
    %c0_5 = arith.constant 0 : index
    %c0_6 = arith.constant 0 : index
    %6 = vector.load %arg4[%c0_5, %c0_6] : memref<16x128xf32, #tpu.memory_space<vmem>>, vector<16x128xf32>
    tpu.vector_store %arg4[%c0_5, %c0_6], %5 {strides = array<i32>} : memref<16x128xf32, #tpu.memory_space<vmem>>, vector<16x128xf32>,
    return
  }
  func.func @transform_0(%arg0: i32) -> (i32, i32) {
    %c0_i32 = arith.constant 0 : i32
    %c0_i32_0 = arith.constant 0 : i32
    return %arg0, %c0_i32 : i32, i32
  }
  func.func @transform_1(%arg0: i32) -> (i32, i32) {
    %c0_i32 = arith.constant 0 : i32
    %c0_i32_0 = arith.constant 0 : i32
    %c0_i32_1 = arith.constant 0 : i32
    return %c0_i32, %c0_i32_0 : i32, i32
  }
  func.func @transform_2(%arg0: i32) -> (i32, i32) {
    %c0_i32 = arith.constant 0 : i32
    %c0_i32_0 = arith.constant 0 : i32
    %c0_i32_1 = arith.constant 0 : i32
    return %c0_i32, %c0_i32_0 : i32, i32
  }
  func.func @transform_3(%arg0: i32) -> (i32, i32) {
    %c0_i32 = arith.constant 0 : i32
    %c0_i32_0 = arith.constant 0 : i32
    return %arg0, %c0_i32 : i32, i32
  }
}

module attributes {stable_mosaic.version = 11 : i64} {
  func.func @_crf_kernel(%arg0: i32, %arg1: memref<8x2x128xf32, #tpu.memory_space<vmem>>, %arg2: memref<128x128xf32, #tpu.memory_space<vmem>>, %arg3: memref<8x2x1xf32, #tpu.memory_space<vmem>>, %arg4: memref<8x2x1xi32, #tpu.memory_space<vmem>>, %arg5: memref<1x1xf32, #tpu.memory_space<smem>>, %arg6: memref<2x8xi32, #tpu.memory_space<vmem>>, %arg7: memref<8x2x128xi32, #tpu.memory_space<vmem>>) attributes {dimension_semantics = [#tpu.dimension_semantics<parallel>], iteration_bounds = array<i64: 1>, scalar_prefetch = 0 : i64, scratch_operands = 1 : i64, tpu.core_type = #tpu.core_type<tc>, window_params = [{transform_indices = @transform_0, window_bounds = array<i64: 8, 2, 128>}, {pipeline_mode = #tpu.pipeline_mode<synchronous>, transform_indices = @transform_1, window_bounds = array<i64: 128, 128>}, {transform_indices = @transform_2, window_bounds = array<i64: 8, 2, 1>}, {transform_indices = @transform_3, window_bounds = array<i64: 8, 2, 1>}, {transform_indices = @transform_4, window_bounds = array<i64: 1, 1>}, {transform_indices = @transform_5, window_bounds = array<i64: 2, 8>}]} {
    %c0 = arith.constant 0 : index
    %c0_0 = arith.constant 0 : index
    %0 = vector.load %arg2[%c0, %c0_0] : memref<128x128xf32, #tpu.memory_space<vmem>>, vector<128x128xf32>
    %1 = vector.shape_cast %0 : vector<128x128xf32> to vector<1x128x128xf32>
    %cst = arith.constant dense<0xFF800000> : vector<1xf32>
    %2 = vector.multi_reduction <maximumf>, %1, %cst [1, 2] : vector<1x128x128xf32> to vector<1xf32>
    %3 = vector.shape_cast %2 : vector<1xf32> to vector<1x1x1xf32>
    %4 = vector.extract %3[0, 0, 0] : f32 from vector<1x1x1xf32>
    %5 = vector.broadcast %4 : f32 to vector<128x128xf32>
    %6 = arith.subf %0, %5 : vector<128x128xf32>
    %7 = math.exp %6 : vector<128x128xf32>
    %8 = vector.extract_strided_slice %0 {offsets = [7, 0], sizes = [1, 128], strides = [1, 1]} : vector<128x128xf32> to vector<1x128xf32>
    %9 = tpu.transpose %0, [1, 0] : vector<128x128xf32> -> vector<128x128xf32>
    %10 = vector.extract_strided_slice %9 {offsets = [8, 0], sizes = [1, 128], strides = [1, 1]} : vector<128x128xf32> to vector<1x128xf32>
    %11 = vector.extract_strided_slice %0 {offsets = [0, 0], sizes = [16, 128], strides = [1, 1]} : vector<128x128xf32> to vector<16x128xf32>
    %12 = tpu.iota {dimensions = array<i32: 1>} : vector<2x128xi32>
    %13 = tpu.iota {dimensions = array<i32: 1>} : vector<2x16x128xi32>
    %14 = arith.sitofp %13 : vector<2x16x128xi32> to vector<2x16x128xf32>
    %c0_1 = arith.constant 0 : index
    %c0_2 = arith.constant 0 : index
    %c0_3 = arith.constant 0 : index
    %15 = vector.load %arg3[%c0_1, %c0_2, %c0_3] : memref<8x2x1xf32, #tpu.memory_space<vmem>>, vector<8x2x1xf32>
    %c0_4 = arith.constant 0 : index
    %c0_5 = arith.constant 0 : index
    %c0_6 = arith.constant 0 : index
    %16 = vector.load %arg4[%c0_4, %c0_5, %c0_6] : memref<8x2x1xi32, #tpu.memory_space<vmem>>, vector<8x2x1xi32>
    %c0_7 = arith.constant 0 : index
    %c0_8 = arith.constant 0 : index
    %c0_9 = arith.constant 0 : index
    %17 = vector.load %arg1[%c0_7, %c0_8, %c0_9] : memref<8x2x128xf32, #tpu.memory_space<vmem>>, vector<8x2x128xf32>
    %18 = tpu.iota {dimensions = array<i32: 2>} : vector<8x2x128xi32>
    %19 = vector.broadcast %16 : vector<8x2x1xi32> to vector<8x2x128xi32>
    %20 = arith.cmpi eq, %18, %19 : vector<8x2x128xi32>
    %21 = arith.extui %20 : vector<8x2x128xi1> to vector<8x2x128xi32>
    %22 = arith.sitofp %21 : vector<8x2x128xi32> to vector<8x2x128xf32>
    %23 = arith.mulf %17, %22 : vector<8x2x128xf32>
    %24 = vector.broadcast %15 : vector<8x2x1xf32> to vector<8x2x128xf32>
    %25 = arith.mulf %23, %24 : vector<8x2x128xf32>
    %26 = vector.shape_cast %25 : vector<8x2x128xf32> to vector<1x8x2x128xf32>
    %cst_10 = arith.constant dense<0.000000e+00> : vector<1xf32>
    %27 = vector.multi_reduction <add>, %26, %cst_10 [1, 2, 3] : vector<1x8x2x128xf32> to vector<1xf32>
    %28 = vector.shape_cast %27 : vector<1xf32> to vector<1x1x1x1xf32>
    %29 = vector.extract %28[0, 0, 0, 0] : f32 from vector<1x1x1x1xf32>
    %30 = vector.extract_strided_slice %22 {offsets = [0, 0, 0], sizes = [7, 2, 128], strides = [1, 1, 1]} : vector<8x2x128xf32> to vector<7x2x128xf32>
    %31 = vector.shape_cast %30 : vector<7x2x128xf32> to vector<14x128xf32>
    %cst_11 = arith.constant dense<0.000000e+00> : vector<14x128xf32>
    %32 = tpu.matmul %31, %0, %cst_11 {dimension_numbers = #tpu.dot_dimension_numbers<[1], [0], [0], [1], [0, 0, 1, 1], [], []>} : vector<14x128xf32>, vector<128x128xf32>, vector<14x128xf32> -> vector<14x128xf32>
    %33 = vector.shape_cast %32 : vector<14x128xf32> to vector<7x2x128xf32>
    %34 = vector.extract_strided_slice %22 {offsets = [1, 0, 0], sizes = [7, 2, 128], strides = [1, 1, 1]} : vector<8x2x128xf32> to vector<7x2x128xf32>
    %35 = arith.mulf %33, %34 : vector<7x2x128xf32>
    %36 = vector.extract_strided_slice %15 {offsets = [1, 0, 0], sizes = [7, 2, 1], strides = [1, 1, 1]} : vector<8x2x1xf32> to vector<7x2x1xf32>
    %37 = vector.broadcast %36 : vector<7x2x1xf32> to vector<7x2x128xf32>
    %38 = arith.mulf %35, %37 : vector<7x2x128xf32>
    %39 = vector.shape_cast %38 : vector<7x2x128xf32> to vector<1x7x2x128xf32>
    %cst_12 = arith.constant dense<0.000000e+00> : vector<1xf32>
    %40 = vector.multi_reduction <add>, %39, %cst_12 [1, 2, 3] : vector<1x7x2x128xf32> to vector<1xf32>
    %41 = vector.shape_cast %40 : vector<1xf32> to vector<1x1x1x1xf32>
    %42 = vector.extract %41[0, 0, 0, 0] : f32 from vector<1x1x1x1xf32>
    %43 = vector.extract_strided_slice %22 {offsets = [0, 0, 0], sizes = [1, 2, 128], strides = [1, 1, 1]} : vector<8x2x128xf32> to vector<1x2x128xf32>
    %44 = vector.shape_cast %43 : vector<1x2x128xf32> to vector<2x128xf32>
    %45 = vector.broadcast %8 : vector<1x128xf32> to vector<2x128xf32>
    %46 = arith.mulf %45, %44 : vector<2x128xf32>
    %47 = vector.extract_strided_slice %15 {offsets = [0, 0, 0], sizes = [1, 2, 1], strides = [1, 1, 1]} : vector<8x2x1xf32> to vector<1x2x1xf32>
    %48 = vector.shape_cast %47 : vector<1x2x1xf32> to vector<2x1xf32>
    %49 = vector.broadcast %48 : vector<2x1xf32> to vector<2x128xf32>
    %50 = arith.mulf %46, %49 : vector<2x128xf32>
    %51 = vector.shape_cast %50 : vector<2x128xf32> to vector<1x2x128xf32>
    %cst_13 = arith.constant dense<0.000000e+00> : vector<1xf32>
    %52 = vector.multi_reduction <add>, %51, %cst_13 [1, 2] : vector<1x2x128xf32> to vector<1xf32>
    %53 = vector.shape_cast %52 : vector<1xf32> to vector<1x1x1xf32>
    %54 = vector.extract %53[0, 0, 0] : f32 from vector<1x1x1xf32>
    %55 = vector.broadcast %15 : vector<8x2x1xf32> to vector<8x2x128xf32>
    %56 = arith.mulf %22, %55 : vector<8x2x128xf32>
    %cst_14 = arith.constant dense<0.000000e+00> : vector<2x128xf32>
    %57 = vector.multi_reduction <add>, %56, %cst_14 [0] : vector<8x2x128xf32> to vector<2x128xf32>
    %58 = vector.extract_strided_slice %22 {offsets = [0, 0, 0], sizes = [7, 2, 128], strides = [1, 1, 1]} : vector<8x2x128xf32> to vector<7x2x128xf32>
    %59 = vector.extract_strided_slice %15 {offsets = [1, 0, 0], sizes = [7, 2, 1], strides = [1, 1, 1]} : vector<8x2x1xf32> to vector<7x2x1xf32>
    %60 = vector.broadcast %59 : vector<7x2x1xf32> to vector<7x2x128xf32>
    %61 = arith.mulf %58, %60 : vector<7x2x128xf32>
    %cst_15 = arith.constant dense<0.000000e+00> : vector<2x128xf32>
    %62 = vector.multi_reduction <add>, %61, %cst_15 [0] : vector<7x2x128xf32> to vector<2x128xf32>
    %63 = arith.subf %57, %62 : vector<2x128xf32>
    %64 = vector.broadcast %10 : vector<1x128xf32> to vector<2x128xf32>
    %65 = arith.mulf %63, %64 : vector<2x128xf32>
    %66 = vector.shape_cast %65 : vector<2x128xf32> to vector<1x2x128xf32>
    %cst_16 = arith.constant dense<0.000000e+00> : vector<1xf32>
    %67 = vector.multi_reduction <add>, %66, %cst_16 [1, 2] : vector<1x2x128xf32> to vector<1xf32>
    %68 = vector.shape_cast %67 : vector<1xf32> to vector<1x1x1xf32>
    %69 = vector.extract %68[0, 0, 0] : f32 from vector<1x1x1xf32>
    %70 = arith.addf %29, %42 : f32
    %71 = arith.addf %70, %54 : f32
    %72 = arith.addf %71, %69 : f32
    %73 = vector.extract_strided_slice %17 {offsets = [0, 0, 0], sizes = [1, 2, 128], strides = [1, 1, 1]} : vector<8x2x128xf32> to vector<1x2x128xf32>
    %74 = vector.shape_cast %73 : vector<1x2x128xf32> to vector<2x128xf32>
    %75 = vector.broadcast %8 : vector<1x128xf32> to vector<2x128xf32>
    %76 = arith.addf %74, %75 : vector<2x128xf32>
    %c1_i32 = arith.constant 1 : i32
    %c7_i32 = arith.constant 7 : i32
    %77 = arith.addi %c1_i32, %c7_i32 : i32
    %c1_i32_17 = arith.constant 1 : i32
    %78:2 = scf.for %arg8 = %c1_i32 to %77 step %c1_i32_17 iter_args(%arg9 = %76, %arg10 = %76) -> (vector<2x128xf32>, vector<2x128xf32>)  : i32 {
      %119 = arith.index_cast %arg8 : i32 to index
      %c0_34 = arith.constant 0 : index
      %c0_35 = arith.constant 0 : index
      %120 = vector.load %arg1[%119, %c0_34, %c0_35] : memref<8x2x128xf32, #tpu.memory_space<vmem>>, vector<1x2x128xf32>
      %121 = vector.shape_cast %120 : vector<1x2x128xf32> to vector<2x128xf32>
      %122 = arith.index_cast %arg8 : i32 to index
      %c0_36 = arith.constant 0 : index
      %c0_37 = arith.constant 0 : index
      %123 = vector.load %arg3[%122, %c0_36, %c0_37] : memref<8x2x1xf32, #tpu.memory_space<vmem>>, vector<1x2x1xf32>
      %124 = vector.shape_cast %123 : vector<1x2x1xf32> to vector<2x1xf32>
      %cst_38 = arith.constant 0.000000e+00 : f32
      %125 = vector.broadcast %cst_38 : f32 to vector<2x1xf32>
      %126 = arith.cmpf ogt, %124, %125 : vector<2x1xf32>
      %cst_39 = arith.constant dense<0xFF800000> : vector<2xf32>
      %127 = vector.multi_reduction <maximumf>, %arg9, %cst_39 [1] : vector<2x128xf32> to vector<2xf32>
      %128 = vector.shape_cast %127 : vector<2xf32> to vector<2x1xf32>
      %129 = vector.broadcast %128 : vector<2x1xf32> to vector<2x128xf32>
      %130 = arith.subf %arg9, %129 : vector<2x128xf32>
      %131 = math.exp %130 : vector<2x128xf32>
      %cst_40 = arith.constant dense<0.000000e+00> : vector<2x128xf32>
      %132 = tpu.matmul %131, %7, %cst_40 {dimension_numbers = #tpu.dot_dimension_numbers<[1], [0], [0], [1], [0, 0, 1, 1], [], []>} : vector<2x128xf32>, vector<128x128xf32>, vector<2x128xf32> -> vector<2x128xf32>
      %133 = vector.broadcast %4 : f32 to vector<2x1xf32>
      %134 = arith.addf %128, %133 : vector<2x1xf32>
      %135 = math.log %132 : vector<2x128xf32>
      %136 = vector.broadcast %134 : vector<2x1xf32> to vector<2x128xf32>
      %137 = arith.addf %136, %135 : vector<2x128xf32>
      %138 = arith.addf %137, %121 : vector<2x128xf32>
      %139 = vector.shape_cast %126 : vector<2x1xi1> to vector<2x1xi1>
      %140 = vector.broadcast %139 : vector<2x1xi1> to vector<2x128xi1>
      %141 = arith.select %140, %138, %arg9 : vector<2x128xi1>, vector<2x128xf32>
      %142 = vector.extract_strided_slice %arg10 {offsets = [0, 0], sizes = [2, 16], strides = [1, 1]} : vector<2x128xf32> to vector<2x16xf32>
      %143 = vector.shape_cast %142 : vector<2x16xf32> to vector<2x16x1xf32>
      %144 = vector.shape_cast %11 : vector<16x128xf32> to vector<1x16x128xf32>
      %145 = vector.broadcast %143 : vector<2x16x1xf32> to vector<2x16x128xf32>
      %146 = vector.broadcast %144 : vector<1x16x128xf32> to vector<2x16x128xf32>
      %147 = arith.addf %145, %146 : vector<2x16x128xf32>
      %cst_41 = arith.constant dense<0xFF800000> : vector<2x128xf32>
      %148 = vector.multi_reduction <maximumf>, %147, %cst_41 [1] : vector<2x16x128xf32> to vector<2x128xf32>
      %149 = vector.shape_cast %148 : vector<2x128xf32> to vector<2x1x128xf32>
      %150 = vector.broadcast %149 : vector<2x1x128xf32> to vector<2x16x128xf32>
      %151 = arith.cmpf oge, %147, %150 : vector<2x16x128xf32>
      %cst_42 = arith.constant 1.600000e+01 : f32
      %152 = vector.broadcast %cst_42 : f32 to vector<2x16x128xf32>
      %153 = arith.select %151, %14, %152 : vector<2x16x128xi1>, vector<2x16x128xf32>
      %cst_43 = arith.constant dense<0x7F800000> : vector<2x128xf32>
      %154 = vector.multi_reduction <minimumf>, %153, %cst_43 [1] : vector<2x16x128xf32> to vector<2x128xf32>
      %155 = arith.fptosi %154 : vector<2x128xf32> to vector<2x128xi32>
      %156 = arith.addf %148, %121 : vector<2x128xf32>
      %157 = vector.shape_cast %126 : vector<2x1xi1> to vector<2x1xi1>
      %158 = vector.broadcast %157 : vector<2x1xi1> to vector<2x128xi1>
      %159 = arith.select %158, %156, %arg10 : vector<2x128xi1>, vector<2x128xf32>
      %160 = vector.shape_cast %126 : vector<2x1xi1> to vector<2x1xi1>
      %161 = vector.broadcast %160 : vector<2x1xi1> to vector<2x128xi1>
      %162 = arith.select %161, %155, %12 : vector<2x128xi1>, vector<2x128xi32>
      %163 = arith.index_cast %arg8 : i32 to index
      %c0_44 = arith.constant 0 : index
      %c0_45 = arith.constant 0 : index
      %164 = vector.load %arg7[%163, %c0_44, %c0_45] : memref<8x2x128xi32, #tpu.memory_space<vmem>>, vector<1x2x128xi32>
      %165 = vector.shape_cast %164 : vector<1x2x128xi32> to vector<2x128xi32>
      %166 = vector.shape_cast %162 : vector<2x128xi32> to vector<1x2x128xi32>
      tpu.vector_store %arg7[%163, %c0_44, %c0_45], %166 {strides = array<i32>} : memref<8x2x128xi32, #tpu.memory_space<vmem>>, vector<1x2x128xi32>,
      scf.yield %141, %159 : vector<2x128xf32>, vector<2x128xf32>
    }
    %c7_i32_18 = arith.constant 7 : i32
    %cst_19 = arith.constant dense<0xFF800000> : vector<2xf32>
    %79 = vector.multi_reduction <maximumf>, %78#0, %cst_19 [1] : vector<2x128xf32> to vector<2xf32>
    %80 = vector.shape_cast %79 : vector<2xf32> to vector<2x1xf32>
    %81 = vector.broadcast %80 : vector<2x1xf32> to vector<2x128xf32>
    %82 = arith.subf %78#0, %81 : vector<2x128xf32>
    %83 = math.exp %82 : vector<2x128xf32>
    %cst_20 = arith.constant dense<0.000000e+00> : vector<2x128xf32>
    %84 = tpu.matmul %83, %7, %cst_20 {dimension_numbers = #tpu.dot_dimension_numbers<[1], [0], [0], [1], [0, 0, 1, 1], [], []>} : vector<2x128xf32>, vector<128x128xf32>, vector<2x128xf32> -> vector<2x128xf32>
    %85 = vector.broadcast %4 : f32 to vector<2x1xf32>
    %86 = arith.addf %80, %85 : vector<2x1xf32>
    %87 = math.log %84 : vector<2x128xf32>
    %88 = vector.broadcast %86 : vector<2x1xf32> to vector<2x128xf32>
    %89 = arith.addf %88, %87 : vector<2x128xf32>
    %90 = vector.extract_strided_slice %89 {offsets = [0, 8], sizes = [2, 1], strides = [1, 1]} : vector<2x128xf32> to vector<2x1xf32>
    %91 = vector.shape_cast %90 : vector<2x1xf32> to vector<1x2x1xf32>
    %cst_21 = arith.constant dense<0.000000e+00> : vector<1xf32>
    %92 = vector.multi_reduction <add>, %91, %cst_21 [1, 2] : vector<1x2x1xf32> to vector<1xf32>
    %93 = vector.shape_cast %92 : vector<1xf32> to vector<1x1x1xf32>
    %94 = vector.extract %93[0, 0, 0] : f32 from vector<1x1x1xf32>
    %95 = arith.subf %94, %72 : f32
    %c0_22 = arith.constant 0 : index
    %c0_23 = arith.constant 0 : index
    %96 = memref.load %arg5[%c0_22, %c0_23] : memref<1x1xf32, #tpu.memory_space<smem>>
    memref.store %95, %arg5[%c0_22, %c0_23] : memref<1x1xf32, #tpu.memory_space<smem>>
    %97 = vector.broadcast %10 : vector<1x128xf32> to vector<2x128xf32>
    %98 = arith.addf %78#1, %97 : vector<2x128xf32>
    %cst_24 = arith.constant dense<0xFF800000> : vector<2xf32>
    %99 = vector.multi_reduction <maximumf>, %98, %cst_24 [1] : vector<2x128xf32> to vector<2xf32>
    %100 = vector.shape_cast %99 : vector<2xf32> to vector<2x1xf32>
    %101 = vector.broadcast %100 : vector<2x1xf32> to vector<2x128xf32>
    %102 = arith.cmpf oge, %98, %101 : vector<2x128xf32>
    %103 = arith.sitofp %12 : vector<2x128xi32> to vector<2x128xf32>
    %cst_25 = arith.constant 1.280000e+02 : f32
    %104 = vector.broadcast %cst_25 : f32 to vector<2x128xf32>
    %105 = arith.select %102, %103, %104 : vector<2x128xi1>, vector<2x128xf32>
    %cst_26 = arith.constant dense<0x7F800000> : vector<2xf32>
    %106 = vector.multi_reduction <minimumf>, %105, %cst_26 [1] : vector<2x128xf32> to vector<2xf32>
    %107 = vector.shape_cast %106 : vector<2xf32> to vector<2x1xf32>
    %108 = arith.fptosi %107 : vector<2x1xf32> to vector<2x1xi32>
    %109 = tpu.iota {dimensions = array<i32: 1>} : vector<2x8xi32>
    %c7_i32_27 = arith.constant 7 : i32
    %110 = vector.broadcast %c7_i32_27 : i32 to vector<2x8xi32>
    %111 = arith.cmpi eq, %109, %110 : vector<2x8xi32>
    %c0_i32 = arith.constant 0 : i32
    %112 = vector.shape_cast %108 : vector<2x1xi32> to vector<2x1xi32>
    %113 = vector.broadcast %112 : vector<2x1xi32> to vector<2x8xi32>
    %114 = vector.broadcast %c0_i32 : i32 to vector<2x8xi32>
    %115 = arith.select %111, %113, %114 : vector<2x8xi1>, vector<2x8xi32>
    %c0_i32_28 = arith.constant 0 : i32
    %c7_i32_29 = arith.constant 7 : i32
    %116 = arith.addi %c0_i32_28, %c7_i32_29 : i32
    %c1_i32_30 = arith.constant 1 : i32
    %117:2 = scf.for %arg8 = %c0_i32_28 to %116 step %c1_i32_30 iter_args(%arg9 = %108, %arg10 = %115) -> (vector<2x1xi32>, vector<2x8xi32>)  : i32 {
      %c7_i32_34 = arith.constant 7 : i32
      %119 = arith.subi %c7_i32_34, %arg8 : i32
      %120 = arith.index_cast %119 : i32 to index
      %c0_35 = arith.constant 0 : index
      %c0_36 = arith.constant 0 : index
      %121 = vector.load %arg7[%120, %c0_35, %c0_36] : memref<8x2x128xi32, #tpu.memory_space<vmem>>, vector<1x2x128xi32>
      %122 = vector.shape_cast %121 : vector<1x2x128xi32> to vector<2x128xi32>
      %123 = arith.sitofp %122 : vector<2x128xi32> to vector<2x128xf32>
      %124 = vector.broadcast %arg9 : vector<2x1xi32> to vector<2x128xi32>
      %125 = arith.cmpi eq, %12, %124 : vector<2x128xi32>
      %cst_37 = arith.constant 0.000000e+00 : f32
      %126 = vector.broadcast %cst_37 : f32 to vector<2x128xf32>
      %127 = arith.select %125, %123, %126 : vector<2x128xi1>, vector<2x128xf32>
      %cst_38 = arith.constant dense<0.000000e+00> : vector<2xf32>
      %128 = vector.multi_reduction <add>, %127, %cst_38 [1] : vector<2x128xf32> to vector<2xf32>
      %129 = vector.shape_cast %128 : vector<2xf32> to vector<2x1xf32>
      %130 = arith.fptosi %129 : vector<2x1xf32> to vector<2x1xi32>
      %c1_i32_39 = arith.constant 1 : i32
      %131 = arith.subi %119, %c1_i32_39 : i32
      %132 = vector.broadcast %131 : i32 to vector<2x8xi32>
      %133 = arith.cmpi eq, %109, %132 : vector<2x8xi32>
      %134 = vector.shape_cast %130 : vector<2x1xi32> to vector<2x1xi32>
      %135 = vector.broadcast %134 : vector<2x1xi32> to vector<2x8xi32>
      %136 = arith.select %133, %135, %arg10 : vector<2x8xi1>, vector<2x8xi32>
      scf.yield %130, %136 : vector<2x1xi32>, vector<2x8xi32>
    }
    %c7_i32_31 = arith.constant 7 : i32
    %c0_32 = arith.constant 0 : index
    %c0_33 = arith.constant 0 : index
    %118 = vector.load %arg6[%c0_32, %c0_33] : memref<2x8xi32, #tpu.memory_space<vmem>>, vector<2x8xi32>
    tpu.vector_store %arg6[%c0_32, %c0_33], %117#1 {strides = array<i32>} : memref<2x8xi32, #tpu.memory_space<vmem>>, vector<2x8xi32>,
    return
  }
  func.func @transform_0(%arg0: i32) -> (i32, i32, i32) {
    %c0_i32 = arith.constant 0 : i32
    %c0_i32_0 = arith.constant 0 : i32
    %c0_i32_1 = arith.constant 0 : i32
    return %c0_i32, %arg0, %c0_i32_0 : i32, i32, i32
  }
  func.func @transform_1(%arg0: i32) -> (i32, i32) {
    %c0_i32 = arith.constant 0 : i32
    %c0_i32_0 = arith.constant 0 : i32
    %c0_i32_1 = arith.constant 0 : i32
    return %c0_i32, %c0_i32_0 : i32, i32
  }
  func.func @transform_2(%arg0: i32) -> (i32, i32, i32) {
    %c0_i32 = arith.constant 0 : i32
    %c0_i32_0 = arith.constant 0 : i32
    %c0_i32_1 = arith.constant 0 : i32
    return %c0_i32, %arg0, %c0_i32_0 : i32, i32, i32
  }
  func.func @transform_3(%arg0: i32) -> (i32, i32, i32) {
    %c0_i32 = arith.constant 0 : i32
    %c0_i32_0 = arith.constant 0 : i32
    %c0_i32_1 = arith.constant 0 : i32
    return %c0_i32, %arg0, %c0_i32_0 : i32, i32, i32
  }
  func.func @transform_4(%arg0: i32) -> (i32, i32) {
    %c0_i32 = arith.constant 0 : i32
    %c0_i32_0 = arith.constant 0 : i32
    return %arg0, %c0_i32 : i32, i32
  }
  func.func @transform_5(%arg0: i32) -> (i32, i32) {
    %c0_i32 = arith.constant 0 : i32
    %c0_i32_0 = arith.constant 0 : i32
    return %arg0, %c0_i32 : i32, i32
  }
}

</mosaic_0001>

<llo_original>
// kernel: _lambda_.12
$region0: #{_lambda_.12}
  #allocation0 [shape = 'u32[]', space=smem, size = 0x4, offset = 0x4, fixed_abs, tag = 'smem constant byte address 0x4 - core index']
  #allocation1 [shape = 'u32[144,128]{1,0:T(1,128)}', space=vmem, size = 0x12000, scoped, tag = 'internal scratch']
  %s0 = inlined_call_operand.vmem [shape: f32[16,32], index: 0, kind: input, shape index: {}]
  %s1 = inlined_call_operand.vmem [shape: f32[1,32], index: 1, kind: input, shape index: {}]
  %s2 = inlined_call_operand.vmem [shape: f32[1,32], index: 2, kind: input, shape index: {}]
  %s3 = inlined_call_operand.vmem [shape: bf16[16,32], index: 3, kind: output, shape index: {}]
  %s4 = sld [smem:[#allocation0]]
  $region22: #{_lambda_.12} parent=0
    _
  %s6 = ssub.s32 1, %s4
  %s7 = scalar_select 0, %s6, %s4
  // Predicated region
  $region2: #{_lambda_.12} parent=0 // pred_check
    _
  $region3: #{_lambda_.12} parent=0 // pred_check_branch
    %9 = sbr.rel (0) target = $region5
  $region4: #{_lambda_.12} parent=0 // pred_region
    _
  $region5: #{_lambda_.12} parent=0 // pred_fallthru
    _
  // Predicated region
  $region6: #{_lambda_.12} parent=0 // pred_check
    _
  $region7: #{_lambda_.12} parent=0 // pred_check_branch
    %11 = sbr.rel (0) target = $region9
  $region8: #{_lambda_.12} parent=0 // pred_region
    _
  $region9: #{_lambda_.12} parent=0 // pred_fallthru
    _
  // Predicated region
  $region10: #{_lambda_.12} parent=0 // pred_check
    _
  $region11: #{_lambda_.12} parent=0 // pred_check_branch
    %13 = sbr.rel (0) target = $region13
  $region12: #{_lambda_.12} parent=0 // pred_region
    _
  $region13: #{_lambda_.12} parent=0 // pred_fallthru
    _
  %v14 = vld [vmem:[%s0] sm:$0xff]
  %v15 = vld [vmem:[%s0 + $0x8] sm:$0xff]
  %vm16 = vcmask 261120
  %v17 = vsel %vm16, %v14, 0.0
  %18 = vadd.xlane.f32.xlu0 %v17
  %v19 = vpop.xlane.xlu0 %18
  %v20 = vsel %vm16, %v15, 0.0
  %21 = vadd.xlane.f32.xlu0 %v20
  %v22 = vpop.xlane.xlu0 %21
  %v23 = vrcp.pop 32.0
  %v24 = vmul.f32 %v19, %v23
  %v25 = vmul.f32 %v22, %v23
  %v26 = vsub.f32 %v14, %v24
  %v27 = vsub.f32 %v15, %v25
  %v28 = vmul.f32 %v26, %v26
  %v29 = vmul.f32 %v27, %v27
  %v30 = vsel %vm16, %v28, 0.0
  %31 = vadd.xlane.f32.xlu0 %v30
  %v32 = vpop.xlane.xlu0 %31
  %v33 = vsel %vm16, %v29, 0.0
  %34 = vadd.xlane.f32.xlu0 %v33
  %v35 = vpop.xlane.xlu0 %34
  %v36 = vmul.f32 %v32, %v23
  %v37 = vmul.f32 %v35, %v23
  %v38 = vadd.f32 %v36, 1e-12
  %v39 = vadd.f32 %v37, 1e-12
  %v40 = vrsqrt.pop %v38
  %v41 = vrsqrt.pop %v39
  %v42 = vmul.f32 %v26, %v40
  %v43 = vmul.f32 %v27, %v41
  %v44 = vld [vmem:[%s1] sm:$0x1]
  %v46 = vlaneseq
  %v47 = vshrl.u32 %v46, 7
  %v48 = vsub.s32 0, %v47
  %v49 = vrot.slane %v44, %v48
  %v51 = vmul.f32 %v42, %v49
  %v52 = vmul.f32 %v43, %v49
  %v53 = vld [vmem:[%s2] sm:$0x1]
  %v55 = vlaneseq
  %v56 = vshrl.u32 %v55, 7
  %v57 = vsub.s32 0, %v56
  %v58 = vrot.slane %v53, %v57
  %v60 = vadd.f32 %v51, %v58
  %v61 = vadd.f32 %v52, %v58
  %v62 = vpack.c.bf16 %v61, %v60
  %v64 = vunpack.c.l.b16 %v62
  %v65 = vunpack.c.h.b16 %v62
  %v66 = vpack.c.b16 %v64, %v64
  %v67 = vpack.c.b16 %v65, %v65
  %vm70 = vcmask 257024
  %71 = vst.msk [vmem:[%s3] sm:$0xf] %vm70, %v66
  %72 = vst.msk [vmem:[%s3 + $0x4] sm:$0xf] %vm70, %v67
  // Predicated region
  $region14: #{_lambda_.12} parent=0 // pred_check
    _
  $region15: #{_lambda_.12} parent=0 // pred_check_branch
    %74 = sbr.rel (0) target = $region17
  $region16: #{_lambda_.12} parent=0 // pred_region
    _
  $region17: #{_lambda_.12} parent=0 // pred_fallthru
    _
  // Predicated region
  $region18: #{_lambda_.12} parent=0 // pred_check
    _
  $region19: #{_lambda_.12} parent=0 // pred_check_branch
    %76 = sbr.rel (0) target = $region21
  $region20: #{_lambda_.12} parent=0 // pred_region
    _
  $region21: #{_lambda_.12} parent=0 // pred_fallthru
    _

// kernel: _lambda_.13
$region0: #{_lambda_.13}
  #allocation0 [shape = 'u32[]', space=smem, size = 0x4, offset = 0x4, fixed_abs, tag = 'smem constant byte address 0x4 - core index']
  #allocation1 [shape = 'u32[144,128]{1,0:T(1,128)}', space=vmem, size = 0x12000, scoped, tag = 'internal scratch']
  %s0 = inlined_call_operand.vmem [shape: bf16[16,32], index: 0, kind: input, shape index: {}]
  %s1 = inlined_call_operand.vmem [shape: bf16[32,96], index: 1, kind: input, shape index: {}]
  %s2 = inlined_call_operand.vmem [shape: f32[1,96], index: 2, kind: input, shape index: {}]
  %s3 = inlined_call_operand.vmem [shape: bf16[16,96], index: 3, kind: output, shape index: {}]
  %s4 = sld [smem:[#allocation0]]
  $region22: #{_lambda_.13} parent=0
    _
  %s6 = ssub.s32 1, %s4
  %s7 = scalar_select 0, %s6, %s4
  // Predicated region
  $region2: #{_lambda_.13} parent=0 // pred_check
    _
  $region3: #{_lambda_.13} parent=0 // pred_check_branch
    %9 = sbr.rel (0) target = $region5
  $region4: #{_lambda_.13} parent=0 // pred_region
    _
  $region5: #{_lambda_.13} parent=0 // pred_fallthru
    _
  // Predicated region
  $region6: #{_lambda_.13} parent=0 // pred_check
    _
  $region7: #{_lambda_.13} parent=0 // pred_check_branch
    %11 = sbr.rel (0) target = $region9
  $region8: #{_lambda_.13} parent=0 // pred_region
    _
  $region9: #{_lambda_.13} parent=0 // pred_fallthru
    _
  // Predicated region
  $region10: #{_lambda_.13} parent=0 // pred_check
    _
  $region11: #{_lambda_.13} parent=0 // pred_check_branch
    %13 = sbr.rel (0) target = $region13
  $region12: #{_lambda_.13} parent=0 // pred_region
    _
  $region13: #{_lambda_.13} parent=0 // pred_fallthru
    _
  %v15 = vld [vmem:[%s0] sm:$0xf]
  %v16 = vld [vmem:[%s0 + $0x4] sm:$0xf]
  %v17 = vld [vmem:[%s1] sm:$0xf]
  %v18 = vld [vmem:[%s1 + $0x4] sm:$0xf]
  %v19 = vld [vmem:[%s1 + $0x8] sm:$0xf]
  %v20 = vld [vmem:[%s1 + $0xc] sm:$0xf]
  %v21 = vld [vmem:[%s2] sm:$0x1]
  %v23 = vlaneseq
  %v24 = vshrl.u32 %v23, 7
  %v25 = vsub.s32 0, %v24
  %v26 = vrot.slane %v21, %v25
  %v30 = vunpack.c.l.b16 %v15
  %v31 = vunpack.c.l.b16 %v16
  %v32 = vpack.c.b16 %v31, %v30
  %v37 = vunpack.c.l.b16 %v17
  %v38 = vunpack.c.l.b16 %v18
  %v39 = vunpack.c.l.b16 %v19
  %v40 = vunpack.c.l.b16 %v20
  %v41 = vpack.c.b16 %v38, %v37
  %v42 = vpack.c.b16 %v40, %v39
  %vm45 = vcmask 261120
  %v47 = vsel %vm45, %v32, 0
  %49 = vmatprep.subr.bf16.mxu0 0
  %50 = vmatpush1.bf16.msra.mxu0 %v41
  %51 = vmatprep.subr.bf16.mxu0 0
  %52 = vmatpush1.bf16.msra.mxu0 %v42
  %53 = vmatprep.subr.bf16.mxu0 0
  %54 = vmatpush1.bf16.msra.mxu0 0
  %55 = vmatprep.subr.bf16.mxu0 0
  %56 = vmatpush1.bf16.msra.mxu0 0
  %57 = vmatprep.subr.bf16.mxu0 0
  %58 = vmatpush1.bf16.msra.mxu0 0
  %59 = vmatprep.subr.bf16.mxu0 0
  %60 = vmatpush1.bf16.msra.mxu0 0
  %61 = vmatprep.subr.bf16.mxu0 0
  %62 = vmatpush1.bf16.msra.mxu0 0
  %63 = vmatprep.subr.bf16.mxu0 0
  %64 = vmatpush1.bf16.msra.mxu0 0
  %65 = vmatprep.subr.bf16.mxu0 0
  %66 = vmatpush1.bf16.msra.mxu0 0
  %67 = vmatprep.subr.bf16.mxu0 0
  %68 = vmatpush1.bf16.msra.mxu0 0
  %69 = vmatprep.subr.bf16.mxu0 0
  %70 = vmatpush1.bf16.msra.mxu0 0
  %71 = vmatprep.subr.bf16.mxu0 0
  %72 = vmatpush1.bf16.msra.mxu0 0
  %73 = vmatprep.subr.bf16.mxu0 0
  %74 = vmatpush1.bf16.msra.mxu0 0
  %75 = vmatprep.subr.bf16.mxu0 0
  %76 = vmatpush1.bf16.msra.mxu0 0
  %77 = vmatprep.subr.bf16.mxu0 0
  %78 = vmatpush1.bf16.msra.mxu0 0
  %79 = vmatprep.subr.bf16.mxu0 0
  %80 = vmatpush1.bf16.msra.mxu0 0
  %81 = vmatprep.mubr.bf16.mxu0 0
  %82 = vmatmul.mubr.bf16.gmra.mrb[0].mxu0 %v47
  %v83 = vpop.f32.mrb[0].mxu0
  %v84 = vadd.f32 %v26, %v83
  %v85 = vpop.f32.mrb[0].mxu0
  %v86 = vpop.f32.mrb[0].mxu0
  %v87 = vadd.f32 %v26, %v86
  %v88 = vpop.f32.mrb[0].mxu0
  %89 = vdwg.mxu0
  %v90 = vpack.c.bf16 %v87, %v84
  %v92 = vunpack.c.l.b16 %v90
  %v93 = vunpack.c.h.b16 %v90
  %v94 = vpack.c.b16 %v92, %v92
  %v95 = vpack.c.b16 %v93, %v93
  %vm98 = vcmask 781312
  %99 = vst.msk [vmem:[%s3] sm:$0xf] %vm98, %v94
  %100 = vst.msk [vmem:[%s3 + $0x4] sm:$0xf] %vm98, %v95
  // Predicated region
  $region14: #{_lambda_.13} parent=0 // pred_check
    _
  $region15: #{_lambda_.13} parent=0 // pred_check_branch
    %102 = sbr.rel (0) target = $region17
  $region16: #{_lambda_.13} parent=0 // pred_region
    _
  $region17: #{_lambda_.13} parent=0 // pred_fallthru
    _
  // Predicated region
  $region18: #{_lambda_.13} parent=0 // pred_check
    _
  $region19: #{_lambda_.13} parent=0 // pred_check_branch
    %104 = sbr.rel (0) target = $region21
  $region20: #{_lambda_.13} parent=0 // pred_region
    _
  $region21: #{_lambda_.13} parent=0 // pred_fallthru
    _

// kernel: _lambda_.14
$region0: #{_lambda_.14}
  #allocation0 [shape = 'u32[]', space=smem, size = 0x4, offset = 0x4, fixed_abs, tag = 'smem constant byte address 0x4 - core index']
  #allocation1 [shape = 'u32[144,128]{1,0:T(1,128)}', space=vmem, size = 0x12000, scoped, tag = 'internal scratch']
  %s0 = inlined_call_operand.vmem [shape: bf16[2,8,96], index: 0, kind: input, shape index: {}]
  %s1 = inlined_call_operand.vmem [shape: f32[2,1,8], index: 1, kind: input, shape index: {}]
  %s2 = inlined_call_operand.vmem [shape: bf16[2,8,32], index: 2, kind: output, shape index: {}]
  %s3 = sld [smem:[#allocation0]]
  $region41: #{_lambda_.14} parent=0
    _
  %s5 = ssub.s32 1, %s3
  %s6 = scalar_select 0, %s5, %s3
  loop: start=0, step=1, limit=4
  $region2: #{_lambda_.14} parent=0 // loop_pre_header
    _
  $region3: #{_lambda_.14} parent=0 // loop_header
    %s8 = sphi 0, %s12
    %p9 = scmp.ge.s32.totalorder %s8, 4
    %s18 = sphi 0, %s20
    %s21 = sphi 0, %s18
    %s22 = sphi 0, %s21
    %s38 = sphi 0, %s22
    %s44 = sphi 0, %s46
    %s47 = sphi 0, %s44
    %s48 = sphi 0, %s47
    %s64 = sphi 0, %s48
    %s70 = sphi 0, %s72
    %s73 = sphi 0, %s70
    %s74 = sphi 0, %s73
    %s90 = sphi 0, %s74
  $region4: #{_lambda_.14} parent=0 // loop_header_branch
    %11 = sbr.rel (%p9) target = $region8
  $region5: #{_lambda_.14} parent=0 // loop_body
    %s13 = ssub.s32 %s8, 1
    %s14 = ssub.s32 %s8, 2
    %s15 = sadd.s32 %s8, 1
    %s16 = ssub.s32 %s8, %s15
    %p17 = scmp.eq.s32.totalorder %s16, 0
    %s19 = sadd.s32 %s18, 1
    %s20 = scalar_select %p17, %s18, %s19
    %p23 = pneg %p17
    %p24 = scmp.eq.s32.totalorder %s8, 1
    %p25 = por %p23, %p24
    %p26 = scmp.ne.s32.totalorder %s18, %s21
    %p27 = scmp.eq.s32.totalorder %s8, 0
    %p28 = por %p26, %p27
    %p29 = scmp.ne.s32.totalorder %s18, %s21
    %p30 = scmp.eq.s32.totalorder %s13, 1
    %p31 = por %p29, %p30
    %p32 = scmp.ne.s32.totalorder %s21, %s22
    %p33 = scmp.eq.s32.totalorder %s13, 0
    %p34 = por %p32, %p33
    %p35 = scmp.ne.s32.totalorder %s21, %s22
    %p36 = scmp.eq.s32.totalorder %s14, 1
    %p37 = por %p35, %p36
    %p39 = scmp.ne.s32.totalorder %s22, %s38
    %p40 = scmp.eq.s32.totalorder %s14, 0
    %p41 = por %p39, %p40
    %s42 = ssub.s32 %s8, %s15
    %p43 = scmp.eq.s32.totalorder %s42, 0
    %s45 = sadd.s32 %s44, 1
    %s46 = scalar_select %p43, %s44, %s45
    %p49 = pneg %p43
    %p50 = scmp.eq.s32.totalorder %s8, 1
    %p51 = por %p49, %p50
    %p52 = scmp.ne.s32.totalorder %s44, %s47
    %p53 = scmp.eq.s32.totalorder %s8, 0
    %p54 = por %p52, %p53
    %p55 = scmp.ne.s32.totalorder %s44, %s47
    %p56 = scmp.eq.s32.totalorder %s13, 1
    %p57 = por %p55, %p56
    %p58 = scmp.ne.s32.totalorder %s47, %s48
    %p59 = scmp.eq.s32.totalorder %s13, 0
    %p60 = por %p58, %p59
    %p61 = scmp.ne.s32.totalorder %s47, %s48
    %p62 = scmp.eq.s32.totalorder %s14, 1
    %p63 = por %p61, %p62
    %p65 = scmp.ne.s32.totalorder %s48, %s64
    %p66 = scmp.eq.s32.totalorder %s14, 0
    %p67 = por %p65, %p66
    %s68 = ssub.s32 %s8, %s15
    %p69 = scmp.eq.s32.totalorder %s68, 0
    %s71 = sadd.s32 %s70, 1
    %s72 = scalar_select %p69, %s70, %s71
    %p75 = pneg %p69
    %p76 = scmp.eq.s32.totalorder %s8, 1
    %p77 = por %p75, %p76
    %p78 = scmp.ne.s32.totalorder %s70, %s73
    %p79 = scmp.eq.s32.totalorder %s8, 0
    %p80 = por %p78, %p79
    %p81 = scmp.ne.s32.totalorder %s70, %s73
    %p82 = scmp.eq.s32.totalorder %s13, 1
    %p83 = por %p81, %p82
    %p84 = scmp.ne.s32.totalorder %s73, %s74
    %p85 = scmp.eq.s32.totalorder %s13, 0
    %p86 = por %p84, %p85
    %p87 = scmp.ne.s32.totalorder %s73, %s74
    %p88 = scmp.eq.s32.totalorder %s14, 1
    %p89 = por %p87, %p88
    %p91 = scmp.ne.s32.totalorder %s74, %s90
    %p92 = scmp.eq.s32.totalorder %s14, 0
    %p93 = por %p91, %p92
    %p94 = scmp.le.s32.totalorder 1, %s8
    %p95 = scmp.lt.s32.totalorder %s8, 3
    %p96 = pnand %p94, %p95
    %p97 = pneg %p96
    // Predicated region
    $region9: #{_lambda_.14} parent=5 // pred_check
      _
    $region10: #{_lambda_.14} parent=5 // pred_check_branch
      %99 = sbr.rel (%p96) target = $region12
    $region11: #{_lambda_.14} parent=5 // pred_region
      %s100 = ssub.s32 %s8, 1
    $region12: #{_lambda_.14} parent=5 // pred_fallthru
      _
    %p101 = scmp.lt.s32.totalorder %s8, 2
    // Predicated region
    $region13: #{_lambda_.14} parent=5 // pred_check
      %p102 = pneg %p101
    $region14: #{_lambda_.14} parent=5 // pred_check_branch
      %104 = sbr.rel (%p102) target = $region16
    $region15: #{_lambda_.14} parent=5 // pred_region
      // Predicated region
      $region17: #{_lambda_.14} parent=15 // pred_check
        %p105 = pneg %p28
      $region18: #{_lambda_.14} parent=15 // pred_check_branch
        %107 = sbr.rel (%p105) target = $region20
      $region19: #{_lambda_.14} parent=15 // pred_region
        %p108 = scmp.lt.s32.totalorder %s8, 1
        %s109 = scalar_select %p108, %s8, 1
        %s110 = smul.addr %s109, 4
        %s111 = scalar_lea.vmem %s0, %s110
      $region20: #{_lambda_.14} parent=15 // pred_fallthru
        _
      // Predicated region
      $region21: #{_lambda_.14} parent=15 // pred_check
        %p112 = pneg %p54
      $region22: #{_lambda_.14} parent=15 // pred_check_branch
        %114 = sbr.rel (%p112) target = $region24
      $region23: #{_lambda_.14} parent=15 // pred_region
        %p115 = scmp.lt.s32.totalorder %s8, 1
        %s116 = scalar_select %p115, %s8, 1
        %s117 = scalar_lea.vmem %s1, %s116
      $region24: #{_lambda_.14} parent=15 // pred_fallthru
        _
    $region16: #{_lambda_.14} parent=5 // pred_fallthru
      _
    %p118 = scmp.le.s32.totalorder 1, %s8
    %p119 = scmp.lt.s32.totalorder %s8, 3
    %p120 = pnand %p118, %p119
    %p121 = pneg %p120
    // Predicated region
    $region25: #{_lambda_.14} parent=5 // pred_check
      _
    $region26: #{_lambda_.14} parent=5 // pred_check_branch
      %123 = sbr.rel (%p120) target = $region28
    $region27: #{_lambda_.14} parent=5 // pred_region
      %s124 = ssub.s32 %s8, 1
      %p125 = scmp.lt.s32.totalorder %s13, 1
      %s126 = scalar_select %p125, %s13, 1
      %s127 = smul.addr %s126, 4
      %s128 = scalar_lea.vmem %s0, %s127
      %p129 = pneg %p34
      %p130 = pneg %p31
      %p131 = scmp.lt.s32.totalorder %s13, 1
      %s132 = scalar_select %p131, %s13, 1
      %s133 = scalar_lea.vmem %s1, %s132
      %p134 = pneg %p60
      %p135 = pneg %p57
      %p136 = pneg %p86
      %p137 = pneg %p83
      %p138 = scmp.lt.s32.totalorder %s13, 1
      %s139 = scalar_select %p138, %s13, 1
      %s140 = smul.addr %s139, 4
      %s141 = scalar_lea.vmem %s2, %s140
      %p142 = scmp.lt.s32.totalorder %s13, 1
      %s143 = scalar_select %p142, %s13, 1
      %s144 = smul.addr %s143, 4
      %s145 = scalar_lea.vmem %s0, %s144
      %p146 = scmp.lt.s32.totalorder %s13, 1
      %s147 = scalar_select %p146, %s13, 1
      %s148 = scalar_lea.vmem %s1, %s147
      %p149 = scmp.lt.s32.totalorder %s13, 1
      %s150 = scalar_select %p149, %s13, 1
      %s151 = smul.addr %s150, 4
      %s152 = scalar_lea.vmem %s2, %s151
      %v154 = vld [vmem:[%s145] sm:$0xf]
      %v155 = vld [vmem:[%s148] sm:$0x1]
      %v157 = vunpack.c.l.b16 %v154
      %v158 = vpack.c.b16 %v157, %v157
      %159 = vrot.lane.b32.xlu0 %v158, 96
      %v160 = vpop.permute.xlu0 %159
      %vm161 = vcmask 64512
      %v163 = vsel %vm161, %v154, 0
      %v166 = vsel %vm161, %v160, 0
      %168 = vmatprep.subr.bf16.mxu0 0
      %169 = vmatpush1.bf16.xpose.msra.mxu0 %v166
      %170 = vmatprep.subr.bf16.mxu0 0
      %171 = vmatpush1.bf16.xpose.msra.mxu0 0
      %172 = vmatprep.subr.bf16.mxu0 0
      %173 = vmatpush1.bf16.xpose.msra.mxu0 0
      %174 = vmatprep.subr.bf16.mxu0 0
      %175 = vmatpush1.bf16.xpose.msra.mxu0 0
      %176 = vmatprep.subr.bf16.mxu0 0
      %177 = vmatpush1.bf16.xpose.msra.mxu0 0
      %178 = vmatprep.subr.bf16.mxu0 0
      %179 = vmatpush1.bf16.xpose.msra.mxu0 0
      %180 = vmatprep.subr.bf16.mxu0 0
      %181 = vmatpush1.bf16.xpose.msra.mxu0 0
      %182 = vmatprep.subr.bf16.mxu0 0
      %183 = vmatpush1.bf16.xpose.msra.mxu0 0
      %184 = vmatprep.subr.bf16.mxu0 0
      %185 = vmatpush1.bf16.xpose.msra.mxu0 0
      %186 = vmatprep.subr.bf16.mxu0 0
      %187 = vmatpush1.bf16.xpose.msra.mxu0 0
      %188 = vmatprep.subr.bf16.mxu0 0
      %189 = vmatpush1.bf16.xpose.msra.mxu0 0
      %190 = vmatprep.subr.bf16.mxu0 0
      %191 = vmatpush1.bf16.xpose.msra.mxu0 0
      %192 = vmatprep.subr.bf16.mxu0 0
      %193 = vmatpush1.bf16.xpose.msra.mxu0 0
      %194 = vmatprep.subr.bf16.mxu0 0
      %195 = vmatpush1.bf16.xpose.msra.mxu0 0
      %196 = vmatprep.subr.bf16.mxu0 0
      %197 = vmatpush1.bf16.xpose.msra.mxu0 0
      %198 = vmatprep.subr.bf16.mxu0 0
      %199 = vmatpush1.bf16.xpose.msra.mxu0 0
      %200 = vmatprep.mubr.bf16.mxu0 0
      %201 = vmatmul.mubr.bf16.gmra.mrb[0].mxu0 %v163
      %v202 = vpop.f32.mrb[0].mxu0
      %v203 = vadd.f32 0.0, %v202
      %v204 = vpop.f32.mrb[0].mxu0
      %v205 = vpop.f32.mrb[0].mxu0
      %v206 = vpop.f32.mrb[0].mxu0
      %207 = vdwg.mxu0
      %v208 = vmul.f32 %v203, 0.35355338
      %v210 = vlaneseq
      %v211 = vshrl.u32 %v210, 7
      %v212 = vsub.s32 0, %v211
      %v213 = vrot.slane %v155, %v212
      %v215 = vadd.f32 %v208, %v213
      %v216 = vsel %vm161, %v215, -inf
      %217 = vmax.xlane.f32.xlu0 %v216
      %v218 = vpop.xlane.xlu0 %217
      %v219 = vsub.f32 %v215, %v218
      %v220 = vmul.f32 %v219, 1.442695
      %v221 = vpow.pop %v220
      %v222 = vsel %vm161, %v221, 0.0
      %223 = vadd.xlane.f32.xlu0 %v222
      %v224 = vpop.xlane.xlu0 %223
      %v225 = vrcp.pop %v224
      %v226 = vmul.f32 %v221, %v225
      %v227 = vpack.c.bf16 %v226, %v226
      %228 = vrot.lane.b32.xlu0 %v158, 64
      %v229 = vpop.permute.xlu0 %228
      %v231 = vsel %vm161, %v227, 0
      %vm233 = vcmask 1043456
      %v235 = vsel %vm233, %v229, 0
      %237 = vmatprep.subr.bf16.mxu0 0
      %238 = vmatpush1.bf16.msra.mxu0 %v235
      %239 = vmatprep.subr.bf16.mxu0 0
      %240 = vmatpush1.bf16.msra.mxu0 0
      %241 = vmatprep.subr.bf16.mxu0 0
      %242 = vmatpush1.bf16.msra.mxu0 0
      %243 = vmatprep.subr.bf16.mxu0 0
      %244 = vmatpush1.bf16.msra.mxu0 0
      %245 = vmatprep.subr.bf16.mxu0 0
      %246 = vmatpush1.bf16.msra.mxu0 0
      %247 = vmatprep.subr.bf16.mxu0 0
      %248 = vmatpush1.bf16.msra.mxu0 0
      %249 = vmatprep.subr.bf16.mxu0 0
      %250 = vmatpush1.bf16.msra.mxu0 0
      %251 = vmatprep.subr.bf16.mxu0 0
      %252 = vmatpush1.bf16.msra.mxu0 0
      %253 = vmatprep.subr.bf16.mxu0 0
      %254 = vmatpush1.bf16.msra.mxu0 0
      %255 = vmatprep.subr.bf16.mxu0 0
      %256 = vmatpush1.bf16.msra.mxu0 0
      %257 = vmatprep.subr.bf16.mxu0 0
      %258 = vmatpush1.bf16.msra.mxu0 0
      %259 = vmatprep.subr.bf16.mxu0 0
      %260 = vmatpush1.bf16.msra.mxu0 0
      %261 = vmatprep.subr.bf16.mxu0 0
      %262 = vmatpush1.bf16.msra.mxu0 0
      %263 = vmatprep.subr.bf16.mxu0 0
      %264 = vmatpush1.bf16.msra.mxu0 0
      %265 = vmatprep.subr.bf16.mxu0 0
      %266 = vmatpush1.bf16.msra.mxu0 0
      %267 = vmatprep.subr.bf16.mxu0 0
      %268 = vmatpush1.bf16.msra.mxu0 0
      %269 = vmatprep.mubr.bf16.mxu0 0
      %270 = vmatmul.mubr.bf16.gmra.mrb[0].mxu0 %v231
      %v271 = vpop.f32.mrb[0].mxu0
      %v272 = vadd.f32 0.0, %v271
      %v273 = vpop.f32.mrb[0].mxu0
      %v274 = vpop.f32.mrb[0].mxu0
      %v275 = vpop.f32.mrb[0].mxu0
      %276 = vdwg.mxu0
      %v277 = vpack.c.bf16 %v272, %v272
      %vm278 = vcmask 60416
      %279 = vst.msk [vmem:[%s152] sm:$0xf] %vm278, %v277
      %280 = vrot.lane.b32.xlu0 %v158, 120
      %v281 = vpop.permute.xlu0 %280
      %282 = vrot.lane.b32.xlu0 %v158, 88
      %v283 = vpop.permute.xlu0 %282
      %v285 = vsel %vm161, %v281, 0
      %v288 = vsel %vm161, %v283, 0
      %290 = vmatprep.subr.bf16.mxu0 0
      %291 = vmatpush1.bf16.xpose.msra.mxu0 %v288
      %292 = vmatprep.subr.bf16.mxu0 0
      %293 = vmatpush1.bf16.xpose.msra.mxu0 0
      %294 = vmatprep.subr.bf16.mxu0 0
      %295 = vmatpush1.bf16.xpose.msra.mxu0 0
      %296 = vmatprep.subr.bf16.mxu0 0
      %297 = vmatpush1.bf16.xpose.msra.mxu0 0
      %298 = vmatprep.subr.bf16.mxu0 0
      %299 = vmatpush1.bf16.xpose.msra.mxu0 0
      %300 = vmatprep.subr.bf16.mxu0 0
      %301 = vmatpush1.bf16.xpose.msra.mxu0 0
      %302 = vmatprep.subr.bf16.mxu0 0
      %303 = vmatpush1.bf16.xpose.msra.mxu0 0
      %304 = vmatprep.subr.bf16.mxu0 0
      %305 = vmatpush1.bf16.xpose.msra.mxu0 0
      %306 = vmatprep.subr.bf16.mxu0 0
      %307 = vmatpush1.bf16.xpose.msra.mxu0 0
      %308 = vmatprep.subr.bf16.mxu0 0
      %309 = vmatpush1.bf16.xpose.msra.mxu0 0
      %310 = vmatprep.subr.bf16.mxu0 0
      %311 = vmatpush1.bf16.xpose.msra.mxu0 0
      %312 = vmatprep.subr.bf16.mxu0 0
      %313 = vmatpush1.bf16.xpose.msra.mxu0 0
      %314 = vmatprep.subr.bf16.mxu0 0
      %315 = vmatpush1.bf16.xpose.msra.mxu0 0
      %316 = vmatprep.subr.bf16.mxu0 0
      %317 = vmatpush1.bf16.xpose.msra.mxu0 0
      %318 = vmatprep.subr.bf16.mxu0 0
      %319 = vmatpush1.bf16.xpose.msra.mxu0 0
      %320 = vmatprep.subr.bf16.mxu0 0
      %321 = vmatpush1.bf16.xpose.msra.mxu0 0
      %322 = vmatprep.mubr.bf16.mxu0 0
      %323 = vmatmul.mubr.bf16.gmra.mrb[0].mxu0 %v285
      %v324 = vpop.f32.mrb[0].mxu0
      %v325 = vadd.f32 0.0, %v324
      %v326 = vpop.f32.mrb[0].mxu0
      %v327 = vpop.f32.mrb[0].mxu0
      %v328 = vpop.f32.mrb[0].mxu0
      %329 = vdwg.mxu0
      %v330 = vmul.f32 %v325, 0.35355338
      %v331 = vadd.f32 %v330, %v213
      %v332 = vsel %vm161, %v331, -inf
      %333 = vmax.xlane.f32.xlu0 %v332
      %v334 = vpop.xlane.xlu0 %333
      %v335 = vsub.f32 %v331, %v334
      %v336 = vmul.f32 %v335, 1.442695
      %v337 = vpow.pop %v336
      %v338 = vsel %vm161, %v337, 0.0
      %339 = vadd.xlane.f32.xlu0 %v338
      %v340 = vpop.xlane.xlu0 %339
      %v341 = vrcp.pop %v340
      %v342 = vmul.f32 %v337, %v341
      %v343 = vpack.c.bf16 %v342, %v342
      %344 = vrot.lane.b32.xlu0 %v158, 56
      %v345 = vpop.permute.xlu0 %344
      %v347 = vsel %vm161, %v343, 0
      %v350 = vsel %vm233, %v345, 0
      %352 = vmatprep.subr.bf16.mxu0 0
      %353 = vmatpush1.bf16.msra.mxu0 %v350
      %354 = vmatprep.subr.bf16.mxu0 0
      %355 = vmatpush1.bf16.msra.mxu0 0
      %356 = vmatprep.subr.bf16.mxu0 0
      %357 = vmatpush1.bf16.msra.mxu0 0
      %358 = vmatprep.subr.bf16.mxu0 0
      %359 = vmatpush1.bf16.msra.mxu0 0
      %360 = vmatprep.subr.bf16.mxu0 0
      %361 = vmatpush1.bf16.msra.mxu0 0
      %362 = vmatprep.subr.bf16.mxu0 0
      %363 = vmatpush1.bf16.msra.mxu0 0
      %364 = vmatprep.subr.bf16.mxu0 0
      %365 = vmatpush1.bf16.msra.mxu0 0
      %366 = vmatprep.subr.bf16.mxu0 0
      %367 = vmatpush1.bf16.msra.mxu0 0
      %368 = vmatprep.subr.bf16.mxu0 0
      %369 = vmatpush1.bf16.msra.mxu0 0
      %370 = vmatprep.subr.bf16.mxu0 0
      %371 = vmatpush1.bf16.msra.mxu0 0
      %372 = vmatprep.subr.bf16.mxu0 0
      %373 = vmatpush1.bf16.msra.mxu0 0
      %374 = vmatprep.subr.bf16.mxu0 0
      %375 = vmatpush1.bf16.msra.mxu0 0
      %376 = vmatprep.subr.bf16.mxu0 0
      %377 = vmatpush1.bf16.msra.mxu0 0
      %378 = vmatprep.subr.bf16.mxu0 0
      %379 = vmatpush1.bf16.msra.mxu0 0
      %380 = vmatprep.subr.bf16.mxu0 0
      %381 = vmatpush1.bf16.msra.mxu0 0
      %382 = vmatprep.subr.bf16.mxu0 0
      %383 = vmatpush1.bf16.msra.mxu0 0
      %384 = vmatprep.mubr.bf16.mxu0 0
      %385 = vmatmul.mubr.bf16.gmra.mrb[0].mxu0 %v347
      %v386 = vpop.f32.mrb[0].mxu0
      %v387 = vadd.f32 0.0, %v386
      %v388 = vpop.f32.mrb[0].mxu0
      %v389 = vpop.f32.mrb[0].mxu0
      %v390 = vpop.f32.mrb[0].mxu0
      %391 = vdwg.mxu0
      %v392 = vpack.c.bf16 %v387, %v387
      %v394 = vunpack.c.l.b16 %v392
      %v395 = vpack.c.b16 %v394, %v394
      %396 = vrot.lane.b32.xlu0 %v395, 8
      %v397 = vpop.permute.xlu0 %396
      %vm399 = vcmask 126016
      %400 = vst.msk [vmem:[%s152] sm:$0xf] %vm399, %v397
      %401 = vrot.lane.b32.xlu0 %v158, 112
      %v402 = vpop.permute.xlu0 %401
      %403 = vrot.lane.b32.xlu0 %v158, 80
      %v404 = vpop.permute.xlu0 %403
      %v406 = vsel %vm161, %v402, 0
      %v409 = vsel %vm161, %v404, 0
      %411 = vmatprep.subr.bf16.mxu0 0
      %412 = vmatpush1.bf16.xpose.msra.mxu0 %v409
      %413 = vmatprep.subr.bf16.mxu0 0
      %414 = vmatpush1.bf16.xpose.msra.mxu0 0
      %415 = vmatprep.subr.bf16.mxu0 0
      %416 = vmatpush1.bf16.xpose.msra.mxu0 0
      %417 = vmatprep.subr.bf16.mxu0 0
      %418 = vmatpush1.bf16.xpose.msra.mxu0 0
      %419 = vmatprep.subr.bf16.mxu0 0
      %420 = vmatpush1.bf16.xpose.msra.mxu0 0
      %421 = vmatprep.subr.bf16.mxu0 0
      %422 = vmatpush1.bf16.xpose.msra.mxu0 0
      %423 = vmatprep.subr.bf16.mxu0 0
      %424 = vmatpush1.bf16.xpose.msra.mxu0 0
      %425 = vmatprep.subr.bf16.mxu0 0
      %426 = vmatpush1.bf16.xpose.msra.mxu0 0
      %427 = vmatprep.subr.bf16.mxu0 0
      %428 = vmatpush1.bf16.xpose.msra.mxu0 0
      %429 = vmatprep.subr.bf16.mxu0 0
      %430 = vmatpush1.bf16.xpose.msra.mxu0 0
      %431 = vmatprep.subr.bf16.mxu0 0
      %432 = vmatpush1.bf16.xpose.msra.mxu0 0
      %433 = vmatprep.subr.bf16.mxu0 0
      %434 = vmatpush1.bf16.xpose.msra.mxu0 0
      %435 = vmatprep.subr.bf16.mxu0 0
      %436 = vmatpush1.bf16.xpose.msra.mxu0 0
      %437 = vmatprep.subr.bf16.mxu0 0
      %438 = vmatpush1.bf16.xpose.msra.mxu0 0
      %439 = vmatprep.subr.bf16.mxu0 0
      %440 = vmatpush1.bf16.xpose.msra.mxu0 0
      %441 = vmatprep.subr.bf16.mxu0 0
      %442 = vmatpush1.bf16.xpose.msra.mxu0 0
      %443 = vmatprep.mubr.bf16.mxu0 0
      %444 = vmatmul.mubr.bf16.gmra.mrb[0].mxu0 %v406
      %v445 = vpop.f32.mrb[0].mxu0
      %v446 = vadd.f32 0.0, %v445
      %v447 = vpop.f32.mrb[0].mxu0
      %v448 = vpop.f32.mrb[0].mxu0
      %v449 = vpop.f32.mrb[0].mxu0
      %450 = vdwg.mxu0
      %v451 = vmul.f32 %v446, 0.35355338
      %v452 = vadd.f32 %v451, %v213
      %v453 = vsel %vm161, %v452, -inf
      %454 = vmax.xlane.f32.xlu0 %v453
      %v455 = vpop.xlane.xlu0 %454
      %v456 = vsub.f32 %v452, %v455
      %v457 = vmul.f32 %v456, 1.442695
      %v458 = vpow.pop %v457
      %v459 = vsel %vm161, %v458, 0.0
      %460 = vadd.xlane.f32.xlu0 %v459
      %v461 = vpop.xlane.xlu0 %460
      %v462 = vrcp.pop %v461
      %v463 = vmul.f32 %v458, %v462
      %v464 = vpack.c.bf16 %v463, %v463
      %465 = vrot.lane.b32.xlu0 %v158, 48
      %v466 = vpop.permute.xlu0 %465
      %v468 = vsel %vm161, %v464, 0
      %v471 = vsel %vm233, %v466, 0
      %473 = vmatprep.subr.bf16.mxu0 0
      %474 = vmatpush1.bf16.msra.mxu0 %v471
      %475 = vmatprep.subr.bf16.mxu0 0
      %476 = vmatpush1.bf16.msra.mxu0 0
      %477 = vmatprep.subr.bf16.mxu0 0
      %478 = vmatpush1.bf16.msra.mxu0 0
      %479 = vmatprep.subr.bf16.mxu0 0
      %480 = vmatpush1.bf16.msra.mxu0 0
      %481 = vmatprep.subr.bf16.mxu0 0
      %482 = vmatpush1.bf16.msra.mxu0 0
      %483 = vmatprep.subr.bf16.mxu0 0
      %484 = vmatpush1.bf16.msra.mxu0 0
      %485 = vmatprep.subr.bf16.mxu0 0
      %486 = vmatpush1.bf16.msra.mxu0 0
      %487 = vmatprep.subr.bf16.mxu0 0
      %488 = vmatpush1.bf16.msra.mxu0 0
      %489 = vmatprep.subr.bf16.mxu0 0
      %490 = vmatpush1.bf16.msra.mxu0 0
      %491 = vmatprep.subr.bf16.mxu0 0
      %492 = vmatpush1.bf16.msra.mxu0 0
      %493 = vmatprep.subr.bf16.mxu0 0
      %494 = vmatpush1.bf16.msra.mxu0 0
      %495 = vmatprep.subr.bf16.mxu0 0
      %496 = vmatpush1.bf16.msra.mxu0 0
      %497 = vmatprep.subr.bf16.mxu0 0
      %498 = vmatpush1.bf16.msra.mxu0 0
      %499 = vmatprep.subr.bf16.mxu0 0
      %500 = vmatpush1.bf16.msra.mxu0 0
      %501 = vmatprep.subr.bf16.mxu0 0
      %502 = vmatpush1.bf16.msra.mxu0 0
      %503 = vmatprep.subr.bf16.mxu0 0
      %504 = vmatpush1.bf16.msra.mxu0 0
      %505 = vmatprep.mubr.bf16.mxu0 0
      %506 = vmatmul.mubr.bf16.gmra.mrb[0].mxu0 %v468
      %v507 = vpop.f32.mrb[0].mxu0
      %v508 = vadd.f32 0.0, %v507
      %v509 = vpop.f32.mrb[0].mxu0
      %v510 = vpop.f32.mrb[0].mxu0
      %v511 = vpop.f32.mrb[0].mxu0
      %512 = vdwg.mxu0
      %v513 = vpack.c.bf16 %v508, %v508
      %v515 = vunpack.c.l.b16 %v513
      %v516 = vpack.c.b16 %v515, %v515
      %517 = vrot.lane.b32.xlu0 %v516, 16
      %v518 = vpop.permute.xlu0 %517
      %vm520 = vcmask 191616
      %521 = vst.msk [vmem:[%s152] sm:$0xf] %vm520, %v518
      %522 = vrot.lane.b32.xlu0 %v158, 104
      %v523 = vpop.permute.xlu0 %522
      %524 = vrot.lane.b32.xlu0 %v158, 72
      %v525 = vpop.permute.xlu0 %524
      %v527 = vsel %vm161, %v523, 0
      %v530 = vsel %vm161, %v525, 0
      %532 = vmatprep.subr.bf16.mxu0 0
      %533 = vmatpush1.bf16.xpose.msra.mxu0 %v530
      %534 = vmatprep.subr.bf16.mxu0 0
      %535 = vmatpush1.bf16.xpose.msra.mxu0 0
      %536 = vmatprep.subr.bf16.mxu0 0
      %537 = vmatpush1.bf16.xpose.msra.mxu0 0
      %538 = vmatprep.subr.bf16.mxu0 0
      %539 = vmatpush1.bf16.xpose.msra.mxu0 0
      %540 = vmatprep.subr.bf16.mxu0 0
      %541 = vmatpush1.bf16.xpose.msra.mxu0 0
      %542 = vmatprep.subr.bf16.mxu0 0
      %543 = vmatpush1.bf16.xpose.msra.mxu0 0
      %544 = vmatprep.subr.bf16.mxu0 0
      %545 = vmatpush1.bf16.xpose.msra.mxu0 0
      %546 = vmatprep.subr.bf16.mxu0 0
      %547 = vmatpush1.bf16.xpose.msra.mxu0 0
      %548 = vmatprep.subr.bf16.mxu0 0
      %549 = vmatpush1.bf16.xpose.msra.mxu0 0
      %550 = vmatprep.subr.bf16.mxu0 0
      %551 = vmatpush1.bf16.xpose.msra.mxu0 0
      %552 = vmatprep.subr.bf16.mxu0 0
      %553 = vmatpush1.bf16.xpose.msra.mxu0 0
      %554 = vmatprep.subr.bf16.mxu0 0
      %555 = vmatpush1.bf16.xpose.msra.mxu0 0
      %556 = vmatprep.subr.bf16.mxu0 0
      %557 = vmatpush1.bf16.xpose.msra.mxu0 0
      %558 = vmatprep.subr.bf16.mxu0 0
      %559 = vmatpush1.bf16.xpose.msra.mxu0 0
      %560 = vmatprep.subr.bf16.mxu0 0
      %561 = vmatpush1.bf16.xpose.msra.mxu0 0
      %562 = vmatprep.subr.bf16.mxu0 0
      %563 = vmatpush1.bf16.xpose.msra.mxu0 0
      %564 = vmatprep.mubr.bf16.mxu0 0
      %565 = vmatmul.mubr.bf16.gmra.mrb[0].mxu0 %v527
      %v566 = vpop.f32.mrb[0].mxu0
      %v567 = vadd.f32 0.0, %v566
      %v568 = vpop.f32.mrb[0].mxu0
      %v569 = vpop.f32.mrb[0].mxu0
      %v570 = vpop.f32.mrb[0].mxu0
      %571 = vdwg.mxu0
      %v572 = vmul.f32 %v567, 0.35355338
      %v573 = vadd.f32 %v572, %v213
      %v574 = vsel %vm161, %v573, -inf
      %575 = vmax.xlane.f32.xlu0 %v574
      %v576 = vpop.xlane.xlu0 %575
      %v577 = vsub.f32 %v573, %v576
      %v578 = vmul.f32 %v577, 1.442695
      %v579 = vpow.pop %v578
      %v580 = vsel %vm161, %v579, 0.0
      %581 = vadd.xlane.f32.xlu0 %v580
      %v582 = vpop.xlane.xlu0 %581
      %v583 = vrcp.pop %v582
      %v584 = vmul.f32 %v579, %v583
      %v585 = vpack.c.bf16 %v584, %v584
      %586 = vrot.lane.b32.xlu0 %v158, 40
      %v587 = vpop.permute.xlu0 %586
      %v589 = vsel %vm161, %v585, 0
      %v592 = vsel %vm233, %v587, 0
      %594 = vmatprep.subr.bf16.mxu0 0
      %595 = vmatpush1.bf16.msra.mxu0 %v592
      %596 = vmatprep.subr.bf16.mxu0 0
      %597 = vmatpush1.bf16.msra.mxu0 0
      %598 = vmatprep.subr.bf16.mxu0 0
      %599 = vmatpush1.bf16.msra.mxu0 0
      %600 = vmatprep.subr.bf16.mxu0 0
      %601 = vmatpush1.bf16.msra.mxu0 0
      %602 = vmatprep.subr.bf16.mxu0 0
      %603 = vmatpush1.bf16.msra.mxu0 0
      %604 = vmatprep.subr.bf16.mxu0 0
      %605 = vmatpush1.bf16.msra.mxu0 0
      %606 = vmatprep.subr.bf16.mxu0 0
      %607 = vmatpush1.bf16.msra.mxu0 0
      %608 = vmatprep.subr.bf16.mxu0 0
      %609 = vmatpush1.bf16.msra.mxu0 0
      %610 = vmatprep.subr.bf16.mxu0 0
      %611 = vmatpush1.bf16.msra.mxu0 0
      %612 = vmatprep.subr.bf16.mxu0 0
      %613 = vmatpush1.bf16.msra.mxu0 0
      %614 = vmatprep.subr.bf16.mxu0 0
      %615 = vmatpush1.bf16.msra.mxu0 0
      %616 = vmatprep.subr.bf16.mxu0 0
      %617 = vmatpush1.bf16.msra.mxu0 0
      %618 = vmatprep.subr.bf16.mxu0 0
      %619 = vmatpush1.bf16.msra.mxu0 0
      %620 = vmatprep.subr.bf16.mxu0 0
      %621 = vmatpush1.bf16.msra.mxu0 0
      %622 = vmatprep.subr.bf16.mxu0 0
      %623 = vmatpush1.bf16.msra.mxu0 0
      %624 = vmatprep.subr.bf16.mxu0 0
      %625 = vmatpush1.bf16.msra.mxu0 0
      %626 = vmatprep.mubr.bf16.mxu0 0
      %627 = vmatmul.mubr.bf16.gmra.mrb[0].mxu0 %v589
      %v628 = vpop.f32.mrb[0].mxu0
      %v629 = vadd.f32 0.0, %v628
      %v630 = vpop.f32.mrb[0].mxu0
      %v631 = vpop.f32.mrb[0].mxu0
      %v632 = vpop.f32.mrb[0].mxu0
      %633 = vdwg.mxu0
      %v634 = vpack.c.bf16 %v629, %v629
      %v636 = vunpack.c.l.b16 %v634
      %v637 = vpack.c.b16 %v636, %v636
      %638 = vrot.lane.b32.xlu0 %v637, 24
      %v639 = vpop.permute.xlu0 %638
      %vm641 = vcmask 257216
      %642 = vst.msk [vmem:[%s152] sm:$0xf] %vm641, %v639
      %p643 = scmp.lt.s32.totalorder %s13, 1
      %s644 = scalar_select %p643, %s13, 1
      %s645 = smul.addr %s644, 4
      %s646 = scalar_lea.vmem %s2, %s645
      // Predicated region
      $region29: #{_lambda_.14} parent=27 // pred_check
        %p647 = pneg %p83
      $region30: #{_lambda_.14} parent=27 // pred_check_branch
        %649 = sbr.rel (%p647) target = $region32
      $region31: #{_lambda_.14} parent=27 // pred_region
        _
      $region32: #{_lambda_.14} parent=27 // pred_fallthru
        _
    $region28: #{_lambda_.14} parent=5 // pred_fallthru
      _
    %p650 = scmp.le.s32.totalorder 2, %s8
    // Predicated region
    $region33: #{_lambda_.14} parent=5 // pred_check
      %p651 = pneg %p650
    $region34: #{_lambda_.14} parent=5 // pred_check_branch
      %653 = sbr.rel (%p651) target = $region36
    $region35: #{_lambda_.14} parent=5 // pred_region
      %s654 = ssub.s32 %s8, 2
      // Predicated region
      $region37: #{_lambda_.14} parent=35 // pred_check
        %p655 = pneg %p89
      $region38: #{_lambda_.14} parent=35 // pred_check_branch
        %657 = sbr.rel (%p655) target = $region40
      $region39: #{_lambda_.14} parent=35 // pred_region
        %p658 = scmp.lt.s32.totalorder %s14, 1
        %s659 = scalar_select %p658, %s14, 1
        %s660 = smul.addr %s659, 4
        %s661 = scalar_lea.vmem %s2, %s660
      $region40: #{_lambda_.14} parent=35 // pred_fallthru
        _
    $region36: #{_lambda_.14} parent=5 // pred_fallthru
      _
  $region6: #{_lambda_.14} parent=0 // loop_footer
    %s12 = sadd.s32 1, %s8
  $region7: #{_lambda_.14} parent=0 // loop_footer_branch
    %7 = sbr.rel target = $region3
  $region8: #{_lambda_.14} parent=0 // loop_exit
    _

// kernel: _lambda_.15
$region0: #{_lambda_.15}
  #allocation0 [shape = 'u32[]', space=smem, size = 0x4, offset = 0x4, fixed_abs, tag = 'smem constant byte address 0x4 - core index']
  #allocation1 [shape = 'u32[144,128]{1,0:T(1,128)}', space=vmem, size = 0x12000, scoped, tag = 'internal scratch']
  %s0 = inlined_call_operand.vmem [shape: bf16[16,32], index: 0, kind: input, shape index: {}]
  %s1 = inlined_call_operand.vmem [shape: bf16[32,32], index: 1, kind: input, shape index: {}]
  %s2 = inlined_call_operand.vmem [shape: f32[1,32], index: 2, kind: input, shape index: {}]
  %s3 = inlined_call_operand.vmem [shape: bf16[16,32], index: 3, kind: input, shape index: {}]
  %s4 = inlined_call_operand.vmem [shape: f32[1,32], index: 4, kind: input, shape index: {}]
  %s5 = inlined_call_operand.vmem [shape: f32[1,32], index: 5, kind: input, shape index: {}]
  %s6 = inlined_call_operand.vmem [shape: bf16[16,32], index: 6, kind: output, shape index: {}]
  %s7 = sld [smem:[#allocation0]]
  $region34: #{_lambda_.15} parent=0
    _
  %s9 = ssub.s32 1, %s7
  %s10 = scalar_select 0, %s9, %s7
  // Predicated region
  $region2: #{_lambda_.15} parent=0 // pred_check
    _
  $region3: #{_lambda_.15} parent=0 // pred_check_branch
    %12 = sbr.rel (0) target = $region5
  $region4: #{_lambda_.15} parent=0 // pred_region
    _
  $region5: #{_lambda_.15} parent=0 // pred_fallthru
    _
  // Predicated region
  $region6: #{_lambda_.15} parent=0 // pred_check
    _
  $region7: #{_lambda_.15} parent=0 // pred_check_branch
    %14 = sbr.rel (0) target = $region9
  $region8: #{_lambda_.15} parent=0 // pred_region
    _
  $region9: #{_lambda_.15} parent=0 // pred_fallthru
    _
  // Predicated region
  $region10: #{_lambda_.15} parent=0 // pred_check
    _
  $region11: #{_lambda_.15} parent=0 // pred_check_branch
    %16 = sbr.rel (0) target = $region13
  $region12: #{_lambda_.15} parent=0 // pred_region
    _
  $region13: #{_lambda_.15} parent=0 // pred_fallthru
    _
  // Predicated region
  $region14: #{_lambda_.15} parent=0 // pred_check
    _
  $region15: #{_lambda_.15} parent=0 // pred_check_branch
    %18 = sbr.rel (0) target = $region17
  $region16: #{_lambda_.15} parent=0 // pred_region
    _
  $region17: #{_lambda_.15} parent=0 // pred_fallthru
    _
  // Predicated region
  $region18: #{_lambda_.15} parent=0 // pred_check
    _
  $region19: #{_lambda_.15} parent=0 // pred_check_branch
    %20 = sbr.rel (0) target = $region21
  $region20: #{_lambda_.15} parent=0 // pred_region
    _
  $region21: #{_lambda_.15} parent=0 // pred_fallthru
    _
  // Predicated region
  $region22: #{_lambda_.15} parent=0 // pred_check
    _
  $region23: #{_lambda_.15} parent=0 // pred_check_branch
    %22 = sbr.rel (0) target = $region25
  $region24: #{_lambda_.15} parent=0 // pred_region
    _
  $region25: #{_lambda_.15} parent=0 // pred_fallthru
    _
  %v24 = vld [vmem:[%s0] sm:$0xf]
  %v25 = vld [vmem:[%s0 + $0x4] sm:$0xf]
  %v26 = vld [vmem:[%s1] sm:$0xf]
  %v27 = vld [vmem:[%s1 + $0x4] sm:$0xf]
  %v28 = vld [vmem:[%s1 + $0x8] sm:$0xf]
  %v29 = vld [vmem:[%s1 + $0xc] sm:$0xf]
  %v30 = vld [vmem:[%s2] sm:$0x1]
  %v32 = vlaneseq
  %v33 = vshrl.u32 %v32, 7
  %v34 = vsub.s32 0, %v33
  %v35 = vrot.slane %v30, %v34
  %v39 = vunpack.c.l.b16 %v24
  %v40 = vunpack.c.l.b16 %v25
  %v41 = vpack.c.b16 %v40, %v39
  %v46 = vunpack.c.l.b16 %v26
  %v47 = vunpack.c.l.b16 %v27
  %v48 = vunpack.c.l.b16 %v28
  %v49 = vunpack.c.l.b16 %v29
  %v50 = vpack.c.b16 %v47, %v46
  %v51 = vpack.c.b16 %v49, %v48
  %vm54 = vcmask 261120
  %v56 = vsel %vm54, %v41, 0
  %58 = vmatprep.subr.bf16.mxu0 0
  %59 = vmatpush1.bf16.msra.mxu0 %v50
  %60 = vmatprep.subr.bf16.mxu0 0
  %61 = vmatpush1.bf16.msra.mxu0 %v51
  %62 = vmatprep.subr.bf16.mxu0 0
  %63 = vmatpush1.bf16.msra.mxu0 0
  %64 = vmatprep.subr.bf16.mxu0 0
  %65 = vmatpush1.bf16.msra.mxu0 0
  %66 = vmatprep.subr.bf16.mxu0 0
  %67 = vmatpush1.bf16.msra.mxu0 0
  %68 = vmatprep.subr.bf16.mxu0 0
  %69 = vmatpush1.bf16.msra.mxu0 0
  %70 = vmatprep.subr.bf16.mxu0 0
  %71 = vmatpush1.bf16.msra.mxu0 0
  %72 = vmatprep.subr.bf16.mxu0 0
  %73 = vmatpush1.bf16.msra.mxu0 0
  %74 = vmatprep.subr.bf16.mxu0 0
  %75 = vmatpush1.bf16.msra.mxu0 0
  %76 = vmatprep.subr.bf16.mxu0 0
  %77 = vmatpush1.bf16.msra.mxu0 0
  %78 = vmatprep.subr.bf16.mxu0 0
  %79 = vmatpush1.bf16.msra.mxu0 0
  %80 = vmatprep.subr.bf16.mxu0 0
  %81 = vmatpush1.bf16.msra.mxu0 0
  %82 = vmatprep.subr.bf16.mxu0 0
  %83 = vmatpush1.bf16.msra.mxu0 0
  %84 = vmatprep.subr.bf16.mxu0 0
  %85 = vmatpush1.bf16.msra.mxu0 0
  %86 = vmatprep.subr.bf16.mxu0 0
  %87 = vmatpush1.bf16.msra.mxu0 0
  %88 = vmatprep.subr.bf16.mxu0 0
  %89 = vmatpush1.bf16.msra.mxu0 0
  %90 = vmatprep.mubr.bf16.mxu0 0
  %91 = vmatmul.mubr.bf16.gmra.mrb[0].mxu0 %v56
  %v92 = vpop.f32.mrb[0].mxu0
  %v93 = vadd.f32 %v35, %v92
  %v94 = vpop.f32.mrb[0].mxu0
  %v95 = vpop.f32.mrb[0].mxu0
  %v96 = vadd.f32 %v35, %v95
  %v97 = vpop.f32.mrb[0].mxu0
  %98 = vdwg.mxu0
  %v99 = vld [vmem:[%s3] sm:$0xf]
  %v100 = vld [vmem:[%s3 + $0x4] sm:$0xf]
  %v101 = vunpack.c.l.bf16 %v99
  %v102 = vunpack.c.l.bf16 %v100
  %v103 = vadd.f32 %v93, %v101
  %v104 = vadd.f32 %v96, %v102
  %v105 = vsel %vm54, %v103, 0.0
  %106 = vadd.xlane.f32.xlu0 %v105
  %v107 = vpop.xlane.xlu0 %106
  %v108 = vsel %vm54, %v104, 0.0
  %109 = vadd.xlane.f32.xlu0 %v108
  %v110 = vpop.xlane.xlu0 %109
  %v111 = vrcp.pop 32.0
  %v112 = vmul.f32 %v107, %v111
  %v113 = vmul.f32 %v110, %v111
  %v114 = vsub.f32 %v103, %v112
  %v115 = vsub.f32 %v104, %v113
  %v116 = vmul.f32 %v114, %v114
  %v117 = vmul.f32 %v115, %v115
  %v118 = vsel %vm54, %v116, 0.0
  %119 = vadd.xlane.f32.xlu0 %v118
  %v120 = vpop.xlane.xlu0 %119
  %v121 = vsel %vm54, %v117, 0.0
  %122 = vadd.xlane.f32.xlu0 %v121
  %v123 = vpop.xlane.xlu0 %122
  %v124 = vmul.f32 %v120, %v111
  %v125 = vmul.f32 %v123, %v111
  %v126 = vadd.f32 %v124, 1e-12
  %v127 = vadd.f32 %v125, 1e-12
  %v128 = vrsqrt.pop %v126
  %v129 = vrsqrt.pop %v127
  %v130 = vmul.f32 %v114, %v128
  %v131 = vmul.f32 %v115, %v129
  %v132 = vld [vmem:[%s4] sm:$0x1]
  %v134 = vlaneseq
  %v135 = vshrl.u32 %v134, 7
  %v136 = vsub.s32 0, %v135
  %v137 = vrot.slane %v132, %v136
  %v139 = vmul.f32 %v130, %v137
  %v140 = vmul.f32 %v131, %v137
  %v141 = vld [vmem:[%s5] sm:$0x1]
  %v143 = vlaneseq
  %v144 = vshrl.u32 %v143, 7
  %v145 = vsub.s32 0, %v144
  %v146 = vrot.slane %v141, %v145
  %v148 = vadd.f32 %v139, %v146
  %v149 = vadd.f32 %v140, %v146
  %v150 = vpack.c.bf16 %v149, %v148
  %v152 = vunpack.c.l.b16 %v150
  %v153 = vunpack.c.h.b16 %v150
  %v154 = vpack.c.b16 %v152, %v152
  %v155 = vpack.c.b16 %v153, %v153
  %vm158 = vcmask 257024
  %159 = vst.msk [vmem:[%s6] sm:$0xf] %vm158, %v154
  %160 = vst.msk [vmem:[%s6 + $0x4] sm:$0xf] %vm158, %v155
  // Predicated region
  $region26: #{_lambda_.15} parent=0 // pred_check
    _
  $region27: #{_lambda_.15} parent=0 // pred_check_branch
    %162 = sbr.rel (0) target = $region29
  $region28: #{_lambda_.15} parent=0 // pred_region
    _
  $region29: #{_lambda_.15} parent=0 // pred_fallthru
    _
  // Predicated region
  $region30: #{_lambda_.15} parent=0 // pred_check
    _
  $region31: #{_lambda_.15} parent=0 // pred_check_branch
    %164 = sbr.rel (0) target = $region33
  $region32: #{_lambda_.15} parent=0 // pred_region
    _
  $region33: #{_lambda_.15} parent=0 // pred_fallthru
    _

// kernel: _lambda_.21
$region0: #{_lambda_.21}
  #allocation0 [shape = 'u32[]', space=smem, size = 0x4, offset = 0x4, fixed_abs, tag = 'smem constant byte address 0x4 - core index']
  #allocation1 [shape = 'u32[144,128]{1,0:T(1,128)}', space=vmem, size = 0x12000, scoped, tag = 'internal scratch']
  %s0 = inlined_call_operand.vmem [shape: bf16[16,32], index: 0, kind: input, shape index: {}]
  %s1 = inlined_call_operand.vmem [shape: bf16[32,128], index: 1, kind: input, shape index: {}]
  %s2 = inlined_call_operand.vmem [shape: f32[1,128], index: 2, kind: input, shape index: {}]
  %s3 = inlined_call_operand.vmem [shape: bf16[16,128], index: 3, kind: output, shape index: {}]
  %s4 = sld [smem:[#allocation0]]
  $region22: #{_lambda_.21} parent=0
    _
  %s6 = ssub.s32 1, %s4
  %s7 = scalar_select 0, %s6, %s4
  // Predicated region
  $region2: #{_lambda_.21} parent=0 // pred_check
    _
  $region3: #{_lambda_.21} parent=0 // pred_check_branch
    %9 = sbr.rel (0) target = $region5
  $region4: #{_lambda_.21} parent=0 // pred_region
    _
  $region5: #{_lambda_.21} parent=0 // pred_fallthru
    _
  // Predicated region
  $region6: #{_lambda_.21} parent=0 // pred_check
    _
  $region7: #{_lambda_.21} parent=0 // pred_check_branch
    %11 = sbr.rel (0) target = $region9
  $region8: #{_lambda_.21} parent=0 // pred_region
    _
  $region9: #{_lambda_.21} parent=0 // pred_fallthru
    _
  // Predicated region
  $region10: #{_lambda_.21} parent=0 // pred_check
    _
  $region11: #{_lambda_.21} parent=0 // pred_check_branch
    %13 = sbr.rel (0) target = $region13
  $region12: #{_lambda_.21} parent=0 // pred_region
    _
  $region13: #{_lambda_.21} parent=0 // pred_fallthru
    _
  %v15 = vld [vmem:[%s0] sm:$0xf]
  %v16 = vld [vmem:[%s0 + $0x4] sm:$0xf]
  %v17 = vld [vmem:[%s1] sm:$0xf]
  %v18 = vld [vmem:[%s1 + $0x4] sm:$0xf]
  %v19 = vld [vmem:[%s1 + $0x8] sm:$0xf]
  %v20 = vld [vmem:[%s1 + $0xc] sm:$0xf]
  %v21 = vld [vmem:[%s2] sm:$0x1]
  %v23 = vlaneseq
  %v24 = vshrl.u32 %v23, 7
  %v25 = vsub.s32 0, %v24
  %v26 = vrot.slane %v21, %v25
  %v30 = vunpack.c.l.b16 %v15
  %v31 = vunpack.c.l.b16 %v16
  %v32 = vpack.c.b16 %v31, %v30
  %v37 = vunpack.c.l.b16 %v17
  %v38 = vunpack.c.l.b16 %v18
  %v39 = vunpack.c.l.b16 %v19
  %v40 = vunpack.c.l.b16 %v20
  %v41 = vpack.c.b16 %v38, %v37
  %v42 = vpack.c.b16 %v40, %v39
  %vm45 = vcmask 261120
  %v47 = vsel %vm45, %v32, 0
  %49 = vmatprep.subr.bf16.mxu0 0
  %50 = vmatpush1.bf16.msra.mxu0 %v41
  %51 = vmatprep.subr.bf16.mxu0 0
  %52 = vmatpush1.bf16.msra.mxu0 %v42
  %53 = vmatprep.subr.bf16.mxu0 0
  %54 = vmatpush1.bf16.msra.mxu0 0
  %55 = vmatprep.subr.bf16.mxu0 0
  %56 = vmatpush1.bf16.msra.mxu0 0
  %57 = vmatprep.subr.bf16.mxu0 0
  %58 = vmatpush1.bf16.msra.mxu0 0
  %59 = vmatprep.subr.bf16.mxu0 0
  %60 = vmatpush1.bf16.msra.mxu0 0
  %61 = vmatprep.subr.bf16.mxu0 0
  %62 = vmatpush1.bf16.msra.mxu0 0
  %63 = vmatprep.subr.bf16.mxu0 0
  %64 = vmatpush1.bf16.msra.mxu0 0
  %65 = vmatprep.subr.bf16.mxu0 0
  %66 = vmatpush1.bf16.msra.mxu0 0
  %67 = vmatprep.subr.bf16.mxu0 0
  %68 = vmatpush1.bf16.msra.mxu0 0
  %69 = vmatprep.subr.bf16.mxu0 0
  %70 = vmatpush1.bf16.msra.mxu0 0
  %71 = vmatprep.subr.bf16.mxu0 0
  %72 = vmatpush1.bf16.msra.mxu0 0
  %73 = vmatprep.subr.bf16.mxu0 0
  %74 = vmatpush1.bf16.msra.mxu0 0
  %75 = vmatprep.subr.bf16.mxu0 0
  %76 = vmatpush1.bf16.msra.mxu0 0
  %77 = vmatprep.subr.bf16.mxu0 0
  %78 = vmatpush1.bf16.msra.mxu0 0
  %79 = vmatprep.subr.bf16.mxu0 0
  %80 = vmatpush1.bf16.msra.mxu0 0
  %81 = vmatprep.mubr.bf16.mxu0 0
  %82 = vmatmul.mubr.bf16.gmra.mrb[0].mxu0 %v47
  %v83 = vpop.f32.mrb[0].mxu0
  %v84 = vadd.f32 %v26, %v83
  %v85 = vpop.f32.mrb[0].mxu0
  %v86 = vpop.f32.mrb[0].mxu0
  %v87 = vadd.f32 %v26, %v86
  %v88 = vpop.f32.mrb[0].mxu0
  %89 = vdwg.mxu0
  %v90 = vmax.f32 %v84, 0.0
  %v91 = vmax.f32 %v87, 0.0
  %v92 = vpack.c.bf16 %v91, %v90
  %v94 = vunpack.c.l.b16 %v92
  %v95 = vunpack.c.h.b16 %v92
  %v96 = vpack.c.b16 %v94, %v94
  %v97 = vpack.c.b16 %v95, %v95
  %100 = vst [vmem:[%s3] sm:$0xf] %v96
  %101 = vst [vmem:[%s3 + $0x4] sm:$0xf] %v97
  // Predicated region
  $region14: #{_lambda_.21} parent=0 // pred_check
    _
  $region15: #{_lambda_.21} parent=0 // pred_check_branch
    %103 = sbr.rel (0) target = $region17
  $region16: #{_lambda_.21} parent=0 // pred_region
    _
  $region17: #{_lambda_.21} parent=0 // pred_fallthru
    _
  // Predicated region
  $region18: #{_lambda_.21} parent=0 // pred_check
    _
  $region19: #{_lambda_.21} parent=0 // pred_check_branch
    %105 = sbr.rel (0) target = $region21
  $region20: #{_lambda_.21} parent=0 // pred_region
    _
  $region21: #{_lambda_.21} parent=0 // pred_fallthru
    _

// kernel: mul.3
$region0: #{mul.3}
  #allocation2 [shape = 's32[1]{0}', space=sflag, size = 0x4, scoped, tag = 'scoped memory for mul.3']
  %s0 = inlined_call_operand.vmem [shape: s32[2,8], index: 0, kind: input, shape index: {}]
  %s1 = inlined_call_operand.vmem [shape: s32[2,8], index: 1, kind: input, shape index: {}]
  %s2 = inlined_call_operand.hbm [shape: s32[2,8], index: 2, kind: output, shape index: {}]
  $region1: #{mul.3} parent=0
    #allocation0 [shape = 'u8[1024]{0}', space=vmem, size = 0x400, scoped, tag = 'operand span for operand 2']
    #allocation1 [shape = 's32[1]{0}', space=sflag, size = 0x4, scoped, tag = 'scoped memory for mul.3']
    %3 = vsyncpa [#allocation1], 0
    %v4 = vld [vmem:[%s0] sm:$0x3]
    %v5 = vld [vmem:[%s1] sm:$0x3]
    %6 = xla_tuple %v4, %v5
    %7 = xla_tuple %6
    %v8 = vmul.u32 %v4, %v5
    %9 = xla_tuple %v8
    %10 = vst [vmem:[#allocation0] sm:$0x3] %v8
    %s12 = ssub.s32 32, 32
    %13 = vsyncadd [#allocation1], %s12
    %s15 = sshll.u32 [#allocation0], 4
    %s16 = int_to_ptr.vmem [resolvable:$true] %s15
    %18 = dma.vmem_to_hbm [thread:$0]  %s16, 32, %s2, [#allocation1]
    %19 = dma.done [#allocation1], 32
    %20 = vsyncpa [#allocation1], 1

// kernel: _lambda_.16
$region0: #{_lambda_.16}
  #allocation0 [shape = 'u32[]', space=smem, size = 0x4, offset = 0x4, fixed_abs, tag = 'smem constant byte address 0x4 - core index']
  #allocation1 [shape = 'u32[144,128]{1,0:T(1,128)}', space=vmem, size = 0x12000, scoped, tag = 'internal scratch']
  %s0 = inlined_call_operand.vmem [shape: bf16[16,32], index: 0, kind: input, shape index: {}]
  %s1 = inlined_call_operand.vmem [shape: bf16[32,64], index: 1, kind: input, shape index: {}]
  %s2 = inlined_call_operand.vmem [shape: f32[1,64], index: 2, kind: input, shape index: {}]
  %s3 = inlined_call_operand.vmem [shape: bf16[64,32], index: 3, kind: input, shape index: {}]
  %s4 = inlined_call_operand.vmem [shape: f32[1,32], index: 4, kind: input, shape index: {}]
  %s5 = inlined_call_operand.vmem [shape: f32[1,32], index: 5, kind: input, shape index: {}]
  %s6 = inlined_call_operand.vmem [shape: f32[1,32], index: 6, kind: input, shape index: {}]
  %s7 = inlined_call_operand.vmem [shape: bf16[16,32], index: 7, kind: output, shape index: {}]
  %s8 = sld [smem:[#allocation0]]
  $region38: #{_lambda_.16} parent=0
    _
  %s10 = ssub.s32 1, %s8
  %s11 = scalar_select 0, %s10, %s8
  // Predicated region
  $region2: #{_lambda_.16} parent=0 // pred_check
    _
  $region3: #{_lambda_.16} parent=0 // pred_check_branch
    %13 = sbr.rel (0) target = $region5
  $region4: #{_lambda_.16} parent=0 // pred_region
    _
  $region5: #{_lambda_.16} parent=0 // pred_fallthru
    _
  // Predicated region
  $region6: #{_lambda_.16} parent=0 // pred_check
    _
  $region7: #{_lambda_.16} parent=0 // pred_check_branch
    %15 = sbr.rel (0) target = $region9
  $region8: #{_lambda_.16} parent=0 // pred_region
    _
  $region9: #{_lambda_.16} parent=0 // pred_fallthru
    _
  // Predicated region
  $region10: #{_lambda_.16} parent=0 // pred_check
    _
  $region11: #{_lambda_.16} parent=0 // pred_check_branch
    %17 = sbr.rel (0) target = $region13
  $region12: #{_lambda_.16} parent=0 // pred_region
    _
  $region13: #{_lambda_.16} parent=0 // pred_fallthru
    _
  // Predicated region
  $region14: #{_lambda_.16} parent=0 // pred_check
    _
  $region15: #{_lambda_.16} parent=0 // pred_check_branch
    %19 = sbr.rel (0) target = $region17
  $region16: #{_lambda_.16} parent=0 // pred_region
    _
  $region17: #{_lambda_.16} parent=0 // pred_fallthru
    _
  // Predicated region
  $region18: #{_lambda_.16} parent=0 // pred_check
    _
  $region19: #{_lambda_.16} parent=0 // pred_check_branch
    %21 = sbr.rel (0) target = $region21
  $region20: #{_lambda_.16} parent=0 // pred_region
    _
  $region21: #{_lambda_.16} parent=0 // pred_fallthru
    _
  // Predicated region
  $region22: #{_lambda_.16} parent=0 // pred_check
    _
  $region23: #{_lambda_.16} parent=0 // pred_check_branch
    %23 = sbr.rel (0) target = $region25
  $region24: #{_lambda_.16} parent=0 // pred_region
    _
  $region25: #{_lambda_.16} parent=0 // pred_fallthru
    _
  // Predicated region
  $region26: #{_lambda_.16} parent=0 // pred_check
    _
  $region27: #{_lambda_.16} parent=0 // pred_check_branch
    %25 = sbr.rel (0) target = $region29
  $region28: #{_lambda_.16} parent=0 // pred_region
    _
  $region29: #{_lambda_.16} parent=0 // pred_fallthru
    _
  %v27 = vld [vmem:[%s0] sm:$0xf]
  %v28 = vld [vmem:[%s0 + $0x4] sm:$0xf]
  %v29 = vld [vmem:[%s1] sm:$0xf]
  %v30 = vld [vmem:[%s1 + $0x4] sm:$0xf]
  %v31 = vld [vmem:[%s1 + $0x8] sm:$0xf]
  %v32 = vld [vmem:[%s1 + $0xc] sm:$0xf]
  %v33 = vld [vmem:[%s2] sm:$0x1]
  %v35 = vlaneseq
  %v36 = vshrl.u32 %v35, 7
  %v37 = vsub.s32 0, %v36
  %v38 = vrot.slane %v33, %v37
  %v42 = vunpack.c.l.b16 %v27
  %v43 = vunpack.c.l.b16 %v28
  %v44 = vpack.c.b16 %v43, %v42
  %v49 = vunpack.c.l.b16 %v29
  %v50 = vunpack.c.l.b16 %v30
  %v51 = vunpack.c.l.b16 %v31
  %v52 = vunpack.c.l.b16 %v32
  %v53 = vpack.c.b16 %v50, %v49
  %v54 = vpack.c.b16 %v52, %v51
  %vm57 = vcmask 261120
  %v59 = vsel %vm57, %v44, 0
  %61 = vmatprep.subr.bf16.mxu0 0
  %62 = vmatpush1.bf16.msra.mxu0 %v53
  %63 = vmatprep.subr.bf16.mxu0 0
  %64 = vmatpush1.bf16.msra.mxu0 %v54
  %65 = vmatprep.subr.bf16.mxu0 0
  %66 = vmatpush1.bf16.msra.mxu0 0
  %67 = vmatprep.subr.bf16.mxu0 0
  %68 = vmatpush1.bf16.msra.mxu0 0
  %69 = vmatprep.subr.bf16.mxu0 0
  %70 = vmatpush1.bf16.msra.mxu0 0
  %71 = vmatprep.subr.bf16.mxu0 0
  %72 = vmatpush1.bf16.msra.mxu0 0
  %73 = vmatprep.subr.bf16.mxu0 0
  %74 = vmatpush1.bf16.msra.mxu0 0
  %75 = vmatprep.subr.bf16.mxu0 0
  %76 = vmatpush1.bf16.msra.mxu0 0
  %77 = vmatprep.subr.bf16.mxu0 0
  %78 = vmatpush1.bf16.msra.mxu0 0
  %79 = vmatprep.subr.bf16.mxu0 0
  %80 = vmatpush1.bf16.msra.mxu0 0
  %81 = vmatprep.subr.bf16.mxu0 0
  %82 = vmatpush1.bf16.msra.mxu0 0
  %83 = vmatprep.subr.bf16.mxu0 0
  %84 = vmatpush1.bf16.msra.mxu0 0
  %85 = vmatprep.subr.bf16.mxu0 0
  %86 = vmatpush1.bf16.msra.mxu0 0
  %87 = vmatprep.subr.bf16.mxu0 0
  %88 = vmatpush1.bf16.msra.mxu0 0
  %89 = vmatprep.subr.bf16.mxu0 0
  %90 = vmatpush1.bf16.msra.mxu0 0
  %91 = vmatprep.subr.bf16.mxu0 0
  %92 = vmatpush1.bf16.msra.mxu0 0
  %93 = vmatprep.mubr.bf16.mxu0 0
  %94 = vmatmul.mubr.bf16.gmra.mrb[0].mxu0 %v59
  %v95 = vpop.f32.mrb[0].mxu0
  %v96 = vadd.f32 %v38, %v95
  %v97 = vpop.f32.mrb[0].mxu0
  %v98 = vpop.f32.mrb[0].mxu0
  %v99 = vadd.f32 %v38, %v98
  %v100 = vpop.f32.mrb[0].mxu0
  %101 = vdwg.mxu0
  %v102 = vmul.f32 %v96, 0.5
  %v103 = vmul.f32 %v99, 0.5
  %v104 = vmul.f32 %v96, 0.044715
  %v105 = vmul.f32 %v99, 0.044715
  %v106 = vmul.f32 %v104, %v96
  %v107 = vmul.f32 %v105, %v99
  %v108 = vmul.f32 %v106, %v96
  %v109 = vmul.f32 %v107, %v99
  %v110 = vadd.f32 %v96, %v108
  %v111 = vadd.f32 %v99, %v109
  %v112 = vmul.f32 %v110, 0.7978846
  %v113 = vmul.f32 %v111, 0.7978846
  %v114 = vtanh.pop %v112
  %v115 = vtanh.pop %v113
  %v116 = vadd.f32 %v114, 1.0
  %v117 = vadd.f32 %v115, 1.0
  %v118 = vmul.f32 %v102, %v116
  %v119 = vmul.f32 %v103, %v117
  %v120 = vpack.c.bf16 %v119, %v118
  %v121 = vld [vmem:[%s3] sm:$0xf]
  %v122 = vld [vmem:[%s3 + $0x4] sm:$0xf]
  %v123 = vld [vmem:[%s3 + $0x8] sm:$0xf]
  %v124 = vld [vmem:[%s3 + $0xc] sm:$0xf]
  %v125 = vld [vmem:[%s3 + $0x10] sm:$0xf]
  %v126 = vld [vmem:[%s3 + $0x14] sm:$0xf]
  %v127 = vld [vmem:[%s3 + $0x18] sm:$0xf]
  %v128 = vld [vmem:[%s3 + $0x1c] sm:$0xf]
  %v129 = vld [vmem:[%s4] sm:$0x1]
  %v131 = vlaneseq
  %v132 = vshrl.u32 %v131, 7
  %v133 = vsub.s32 0, %v132
  %v134 = vrot.slane %v129, %v133
  %v144 = vunpack.c.l.b16 %v121
  %v145 = vunpack.c.l.b16 %v122
  %v146 = vunpack.c.l.b16 %v123
  %v147 = vunpack.c.l.b16 %v124
  %v148 = vunpack.c.l.b16 %v125
  %v149 = vunpack.c.l.b16 %v126
  %v150 = vunpack.c.l.b16 %v127
  %v151 = vunpack.c.l.b16 %v128
  %v152 = vpack.c.b16 %v145, %v144
  %v153 = vpack.c.b16 %v147, %v146
  %v154 = vpack.c.b16 %v149, %v148
  %v155 = vpack.c.b16 %v151, %v150
  %vm160 = vcmask 523264
  %v162 = vsel %vm160, %v120, 0
  %164 = vmatprep.subr.bf16.mxu0 0
  %165 = vmatpush1.bf16.msra.mxu0 %v152
  %166 = vmatprep.subr.bf16.mxu0 0
  %167 = vmatpush1.bf16.msra.mxu0 %v153
  %168 = vmatprep.subr.bf16.mxu0 0
  %169 = vmatpush1.bf16.msra.mxu0 %v154
  %170 = vmatprep.subr.bf16.mxu0 0
  %171 = vmatpush1.bf16.msra.mxu0 %v155
  %172 = vmatprep.subr.bf16.mxu0 0
  %173 = vmatpush1.bf16.msra.mxu0 0
  %174 = vmatprep.subr.bf16.mxu0 0
  %175 = vmatpush1.bf16.msra.mxu0 0
  %176 = vmatprep.subr.bf16.mxu0 0
  %177 = vmatpush1.bf16.msra.mxu0 0
  %178 = vmatprep.subr.bf16.mxu0 0
  %179 = vmatpush1.bf16.msra.mxu0 0
  %180 = vmatprep.subr.bf16.mxu0 0
  %181 = vmatpush1.bf16.msra.mxu0 0
  %182 = vmatprep.subr.bf16.mxu0 0
  %183 = vmatpush1.bf16.msra.mxu0 0
  %184 = vmatprep.subr.bf16.mxu0 0
  %185 = vmatpush1.bf16.msra.mxu0 0
  %186 = vmatprep.subr.bf16.mxu0 0
  %187 = vmatpush1.bf16.msra.mxu0 0
  %188 = vmatprep.subr.bf16.mxu0 0
  %189 = vmatpush1.bf16.msra.mxu0 0
  %190 = vmatprep.subr.bf16.mxu0 0
  %191 = vmatpush1.bf16.msra.mxu0 0
  %192 = vmatprep.subr.bf16.mxu0 0
  %193 = vmatpush1.bf16.msra.mxu0 0
  %194 = vmatprep.subr.bf16.mxu0 0
  %195 = vmatpush1.bf16.msra.mxu0 0
  %196 = vmatprep.mubr.bf16.mxu0 0
  %197 = vmatmul.mubr.bf16.gmra.mrb[0].mxu0 %v162
  %v198 = vpop.f32.mrb[0].mxu0
  %v199 = vadd.f32 %v134, %v198
  %v200 = vpop.f32.mrb[0].mxu0
  %v201 = vpop.f32.mrb[0].mxu0
  %v202 = vadd.f32 %v134, %v201
  %v203 = vpop.f32.mrb[0].mxu0
  %204 = vdwg.mxu0
  %v205 = vunpack.c.l.bf16 %v27
  %v206 = vunpack.c.l.bf16 %v28
  %v207 = vadd.f32 %v199, %v205
  %v208 = vadd.f32 %v202, %v206
  %v209 = vsel %vm57, %v207, 0.0
  %210 = vadd.xlane.f32.xlu0 %v209
  %v211 = vpop.xlane.xlu0 %210
  %v212 = vsel %vm57, %v208, 0.0
  %213 = vadd.xlane.f32.xlu0 %v212
  %v214 = vpop.xlane.xlu0 %213
  %v215 = vrcp.pop 32.0
  %v216 = vmul.f32 %v211, %v215
  %v217 = vmul.f32 %v214, %v215
  %v218 = vsub.f32 %v207, %v216
  %v219 = vsub.f32 %v208, %v217
  %v220 = vmul.f32 %v218, %v218
  %v221 = vmul.f32 %v219, %v219
  %v222 = vsel %vm57, %v220, 0.0
  %223 = vadd.xlane.f32.xlu0 %v222
  %v224 = vpop.xlane.xlu0 %223
  %v225 = vsel %vm57, %v221, 0.0
  %226 = vadd.xlane.f32.xlu0 %v225
  %v227 = vpop.xlane.xlu0 %226
  %v228 = vmul.f32 %v224, %v215
  %v229 = vmul.f32 %v227, %v215
  %v230 = vadd.f32 %v228, 1e-12
  %v231 = vadd.f32 %v229, 1e-12
  %v232 = vrsqrt.pop %v230
  %v233 = vrsqrt.pop %v231
  %v234 = vmul.f32 %v218, %v232
  %v235 = vmul.f32 %v219, %v233
  %v236 = vld [vmem:[%s5] sm:$0x1]
  %v238 = vlaneseq
  %v239 = vshrl.u32 %v238, 7
  %v240 = vsub.s32 0, %v239
  %v241 = vrot.slane %v236, %v240
  %v243 = vmul.f32 %v234, %v241
  %v244 = vmul.f32 %v235, %v241
  %v245 = vld [vmem:[%s6] sm:$0x1]
  %v247 = vlaneseq
  %v248 = vshrl.u32 %v247, 7
  %v249 = vsub.s32 0, %v248
  %v250 = vrot.slane %v245, %v249
  %v252 = vadd.f32 %v243, %v250
  %v253 = vadd.f32 %v244, %v250
  %v254 = vpack.c.bf16 %v253, %v252
  %v256 = vunpack.c.l.b16 %v254
  %v257 = vunpack.c.h.b16 %v254
  %v258 = vpack.c.b16 %v256, %v256
  %v259 = vpack.c.b16 %v257, %v257
  %vm262 = vcmask 257024
  %263 = vst.msk [vmem:[%s7] sm:$0xf] %vm262, %v258
  %264 = vst.msk [vmem:[%s7 + $0x4] sm:$0xf] %vm262, %v259
  // Predicated region
  $region30: #{_lambda_.16} parent=0 // pred_check
    _
  $region31: #{_lambda_.16} parent=0 // pred_check_branch
    %266 = sbr.rel (0) target = $region33
  $region32: #{_lambda_.16} parent=0 // pred_region
    _
  $region33: #{_lambda_.16} parent=0 // pred_fallthru
    _
  // Predicated region
  $region34: #{_lambda_.16} parent=0 // pred_check
    _
  $region35: #{_lambda_.16} parent=0 // pred_check_branch
    %268 = sbr.rel (0) target = $region37
  $region36: #{_lambda_.16} parent=0 // pred_region
    _
  $region37: #{_lambda_.16} parent=0 // pred_fallthru
    _

// kernel: _lambda_.22
$region0: #{_lambda_.22}
  #allocation0 [shape = 'u32[]', space=smem, size = 0x4, offset = 0x4, fixed_abs, tag = 'smem constant byte address 0x4 - core index']
  #allocation1 [shape = 'u32[144,128]{1,0:T(1,128)}', space=vmem, size = 0x12000, scoped, tag = 'internal scratch']
  %s0 = inlined_call_operand.vmem [shape: bf16[16,128], index: 0, kind: input, shape index: {}]
  %s1 = inlined_call_operand.vmem [shape: bf16[128,128], index: 1, kind: input, shape index: {}]
  %s2 = inlined_call_operand.vmem [shape: f32[1,128], index: 2, kind: input, shape index: {}]
  %s3 = inlined_call_operand.vmem [shape: f32[16,128], index: 3, kind: output, shape index: {}]
  %s4 = sld [smem:[#allocation0]]
  $region22: #{_lambda_.22} parent=0
    _
  %s6 = ssub.s32 1, %s4
  %s7 = scalar_select 0, %s6, %s4
  // Predicated region
  $region2: #{_lambda_.22} parent=0 // pred_check
    _
  $region3: #{_lambda_.22} parent=0 // pred_check_branch
    %9 = sbr.rel (0) target = $region5
  $region4: #{_lambda_.22} parent=0 // pred_region
    _
  $region5: #{_lambda_.22} parent=0 // pred_fallthru
    _
  // Predicated region
  $region6: #{_lambda_.22} parent=0 // pred_check
    _
  $region7: #{_lambda_.22} parent=0 // pred_check_branch
    %11 = sbr.rel (0) target = $region9
  $region8: #{_lambda_.22} parent=0 // pred_region
    _
  $region9: #{_lambda_.22} parent=0 // pred_fallthru
    _
  // Predicated region
  $region10: #{_lambda_.22} parent=0 // pred_check
    _
  $region11: #{_lambda_.22} parent=0 // pred_check_branch
    %13 = sbr.rel (0) target = $region13
  $region12: #{_lambda_.22} parent=0 // pred_region
    _
  $region13: #{_lambda_.22} parent=0 // pred_fallthru
    _
  %v15 = vld [vmem:[%s0] sm:$0xf]
  %v16 = vld [vmem:[%s0 + $0x4] sm:$0xf]
  %v17 = vld [vmem:[%s1] sm:$0xf]
  %v18 = vld [vmem:[%s1 + $0x4] sm:$0xf]
  %v19 = vld [vmem:[%s1 + $0x8] sm:$0xf]
  %v20 = vld [vmem:[%s1 + $0xc] sm:$0xf]
  %v21 = vld [vmem:[%s1 + $0x10] sm:$0xf]
  %v22 = vld [vmem:[%s1 + $0x14] sm:$0xf]
  %v23 = vld [vmem:[%s1 + $0x18] sm:$0xf]
  %v24 = vld [vmem:[%s1 + $0x1c] sm:$0xf]
  %v25 = vld [vmem:[%s1 + $0x20] sm:$0xf]
  %v26 = vld [vmem:[%s1 + $0x24] sm:$0xf]
  %v27 = vld [vmem:[%s1 + $0x28] sm:$0xf]
  %v28 = vld [vmem:[%s1 + $0x2c] sm:$0xf]
  %v29 = vld [vmem:[%s1 + $0x30] sm:$0xf]
  %v30 = vld [vmem:[%s1 + $0x34] sm:$0xf]
  %v31 = vld [vmem:[%s1 + $0x38] sm:$0xf]
  %v32 = vld [vmem:[%s1 + $0x3c] sm:$0xf]
  %v33 = vld [vmem:[%s2] sm:$0x1]
  %v35 = vlaneseq
  %v36 = vshrl.u32 %v35, 7
  %v37 = vsub.s32 0, %v36
  %v38 = vrot.slane %v33, %v37
  %v42 = vunpack.c.l.b16 %v15
  %v43 = vunpack.c.l.b16 %v16
  %v44 = vpack.c.b16 %v43, %v42
  %v62 = vunpack.c.l.b16 %v17
  %v63 = vunpack.c.l.b16 %v18
  %v64 = vunpack.c.l.b16 %v19
  %v65 = vunpack.c.l.b16 %v20
  %v66 = vunpack.c.l.b16 %v21
  %v67 = vunpack.c.l.b16 %v22
  %v68 = vunpack.c.l.b16 %v23
  %v69 = vunpack.c.l.b16 %v24
  %v70 = vunpack.c.l.b16 %v25
  %v71 = vunpack.c.l.b16 %v26
  %v72 = vunpack.c.l.b16 %v27
  %v73 = vunpack.c.l.b16 %v28
  %v74 = vunpack.c.l.b16 %v29
  %v75 = vunpack.c.l.b16 %v30
  %v76 = vunpack.c.l.b16 %v31
  %v77 = vunpack.c.l.b16 %v32
  %v78 = vpack.c.b16 %v63, %v62
  %v79 = vpack.c.b16 %v65, %v64
  %v80 = vpack.c.b16 %v67, %v66
  %v81 = vpack.c.b16 %v69, %v68
  %v82 = vpack.c.b16 %v71, %v70
  %v83 = vpack.c.b16 %v73, %v72
  %v84 = vpack.c.b16 %v75, %v74
  %v85 = vpack.c.b16 %v77, %v76
  %94 = vmatprep.subr.bf16.mxu0 0
  %95 = vmatpush1.bf16.msra.mxu0 %v78
  %96 = vmatprep.subr.bf16.mxu0 0
  %97 = vmatpush1.bf16.msra.mxu0 %v79
  %98 = vmatprep.subr.bf16.mxu0 0
  %99 = vmatpush1.bf16.msra.mxu0 %v80
  %100 = vmatprep.subr.bf16.mxu0 0
  %101 = vmatpush1.bf16.msra.mxu0 %v81
  %102 = vmatprep.subr.bf16.mxu0 0
  %103 = vmatpush1.bf16.msra.mxu0 %v82
  %104 = vmatprep.subr.bf16.mxu0 0
  %105 = vmatpush1.bf16.msra.mxu0 %v83
  %106 = vmatprep.subr.bf16.mxu0 0
  %107 = vmatpush1.bf16.msra.mxu0 %v84
  %108 = vmatprep.subr.bf16.mxu0 0
  %109 = vmatpush1.bf16.msra.mxu0 %v85
  %110 = vmatprep.subr.bf16.mxu0 0
  %111 = vmatpush1.bf16.msra.mxu0 0
  %112 = vmatprep.subr.bf16.mxu0 0
  %113 = vmatpush1.bf16.msra.mxu0 0
  %114 = vmatprep.subr.bf16.mxu0 0
  %115 = vmatpush1.bf16.msra.mxu0 0
  %116 = vmatprep.subr.bf16.mxu0 0
  %117 = vmatpush1.bf16.msra.mxu0 0
  %118 = vmatprep.subr.bf16.mxu0 0
  %119 = vmatpush1.bf16.msra.mxu0 0
  %120 = vmatprep.subr.bf16.mxu0 0
  %121 = vmatpush1.bf16.msra.mxu0 0
  %122 = vmatprep.subr.bf16.mxu0 0
  %123 = vmatpush1.bf16.msra.mxu0 0
  %124 = vmatprep.subr.bf16.mxu0 0
  %125 = vmatpush1.bf16.msra.mxu0 0
  %126 = vmatprep.mubr.bf16.mxu0 0
  %127 = vmatmul.mubr.bf16.gmra.mrb[0].mxu0 %v44
  %v128 = vpop.f32.mrb[0].mxu0
  %v129 = vadd.f32 %v38, %v128
  %v130 = vpop.f32.mrb[0].mxu0
  %v131 = vpop.f32.mrb[0].mxu0
  %v132 = vadd.f32 %v38, %v131
  %v133 = vpop.f32.mrb[0].mxu0
  %134 = vdwg.mxu0
  %135 = vst [vmem:[%s3] sm:$0xff] %v129
  %136 = vst [vmem:[%s3 + $0x8] sm:$0xff] %v132
  // Predicated region
  $region14: #{_lambda_.22} parent=0 // pred_check
    _
  $region15: #{_lambda_.22} parent=0 // pred_check_branch
    %138 = sbr.rel (0) target = $region17
  $region16: #{_lambda_.22} parent=0 // pred_region
    _
  $region17: #{_lambda_.22} parent=0 // pred_fallthru
    _
  // Predicated region
  $region18: #{_lambda_.22} parent=0 // pred_check
    _
  $region19: #{_lambda_.22} parent=0 // pred_check_branch
    %140 = sbr.rel (0) target = $region21
  $region20: #{_lambda_.22} parent=0 // pred_region
    _
  $region21: #{_lambda_.22} parent=0 // pred_fallthru
    _

// kernel: _lambda_.23
$region0: #{_lambda_.23}
  #allocation0 [shape = 'u32[]', space=smem, size = 0x4, offset = 0x4, fixed_abs, tag = 'smem constant byte address 0x4 - core index']
  #allocation1 [shape = 'u32[144,128]{1,0:T(1,128)}', space=vmem, size = 0x12000, scoped, tag = 'internal scratch']
  #allocation2 [shape = 's32[8,2,128]{2,1,0:T(2,128)}', space=vmem, size = 0x2000, scoped, tag = 'scratch operand']
  %s0 = inlined_call_operand.vmem [shape: f32[8,2,128], index: 0, kind: input, shape index: {}]
  %s1 = inlined_call_operand.vmem [shape: f32[128,128], index: 1, kind: input, shape index: {}]
  %s2 = inlined_call_operand.vmem [shape: f32[8,2,1], index: 2, kind: input, shape index: {}]
  %s3 = inlined_call_operand.vmem [shape: s32[8,2,1], index: 3, kind: input, shape index: {}]
  %s4 = inlined_call_operand.hbm [shape: f32[1,1], index: 4, kind: output, shape index: {0}]
  %s5 = inlined_call_operand.vmem [shape: s32[2,8], index: 5, kind: output, shape index: {1}]
  %6 = xla_tuple %s4, %s5
  %s7 = sld [smem:[#allocation0]]
  $region48: #{_lambda_.23} parent=0
    _
  %s9 = ssub.s32 1, %s7
  %s10 = scalar_select 0, %s9, %s7
  $region1: #{_lambda_.23} parent=0
    #allocation3 [shape = 'u8[512]{0}', space=smem, size = 0x200, scoped, tag = 'output window, operand 0, single buffered']
    #allocation4 [shape = 's32[1]{0}', space=sflag, size = 0x4, scoped, tag = 'scoped memory for _lambda_.23']
    %11 = vsyncpa [#allocation4], 0
    // Predicated region
    $region2: #{_lambda_.23} parent=1 // pred_check
      _
    $region3: #{_lambda_.23} parent=1 // pred_check_branch
      %13 = sbr.rel (0) target = $region5
    $region4: #{_lambda_.23} parent=1 // pred_region
      _
    $region5: #{_lambda_.23} parent=1 // pred_fallthru
      _
    // Predicated region
    $region6: #{_lambda_.23} parent=1 // pred_check
      _
    $region7: #{_lambda_.23} parent=1 // pred_check_branch
      %15 = sbr.rel (0) target = $region9
    $region8: #{_lambda_.23} parent=1 // pred_region
      _
    $region9: #{_lambda_.23} parent=1 // pred_fallthru
      _
    // Predicated region
    $region10: #{_lambda_.23} parent=1 // pred_check
      _
    $region11: #{_lambda_.23} parent=1 // pred_check_branch
      %17 = sbr.rel (0) target = $region13
    $region12: #{_lambda_.23} parent=1 // pred_region
      _
    $region13: #{_lambda_.23} parent=1 // pred_fallthru
      _
    // Predicated region
    $region14: #{_lambda_.23} parent=1 // pred_check
      _
    $region15: #{_lambda_.23} parent=1 // pred_check_branch
      %19 = sbr.rel (0) target = $region17
    $region16: #{_lambda_.23} parent=1 // pred_region
      _
    $region17: #{_lambda_.23} parent=1 // pred_fallthru
      _
    %v20 = vld [vmem:[%s1] sm:$0xff]
    %v21 = vld [vmem:[%s1 + $0x8] sm:$0xff]
    %v22 = vld [vmem:[%s1 + $0x10] sm:$0xff]
    %v23 = vld [vmem:[%s1 + $0x18] sm:$0xff]
    %v24 = vld [vmem:[%s1 + $0x20] sm:$0xff]
    %v25 = vld [vmem:[%s1 + $0x28] sm:$0xff]
    %v26 = vld [vmem:[%s1 + $0x30] sm:$0xff]
    %v27 = vld [vmem:[%s1 + $0x38] sm:$0xff]
    %v28 = vld [vmem:[%s1 + $0x40] sm:$0xff]
    %v29 = vld [vmem:[%s1 + $0x48] sm:$0xff]
    %v30 = vld [vmem:[%s1 + $0x50] sm:$0xff]
    %v31 = vld [vmem:[%s1 + $0x58] sm:$0xff]
    %v32 = vld [vmem:[%s1 + $0x60] sm:$0xff]
    %v33 = vld [vmem:[%s1 + $0x68] sm:$0xff]
    %v34 = vld [vmem:[%s1 + $0x70] sm:$0xff]
    %v35 = vld [vmem:[%s1 + $0x78] sm:$0xff]
    %v36 = vmax.f32 %v20, %v24
    %v37 = vmax.f32 %v21, %v25
    %v38 = vmax.f32 %v22, %v26
    %v39 = vmax.f32 %v23, %v27
    %v40 = vmax.f32 %v36, %v28
    %v41 = vmax.f32 %v37, %v29
    %v42 = vmax.f32 %v38, %v30
    %v43 = vmax.f32 %v39, %v31
    %v44 = vmax.f32 %v40, %v32
    %v45 = vmax.f32 %v41, %v33
    %v46 = vmax.f32 %v42, %v34
    %v47 = vmax.f32 %v43, %v35
    %v48 = vmax.f32 %v44, %v45
    %v49 = vmax.f32 %v46, %v47
    %v50 = vmax.f32 %v48, %v49
    %51 = vmax.xlane.f32.xlu0 %v50
    %v52 = vpop.xlane.xlu0 %51
    %v53 = vrot.slane %v52, 4
    %v54 = vmax.f32 %v52, %v53
    %v55 = vrot.slane %v54, 2
    %v56 = vmax.f32 %v54, %v55
    %v57 = vrot.slane %v56, 1
    %v58 = vmax.f32 %v56, %v57
    %s59 = vtos %v58
    %v60 = vstv %s59
    %v61 = vsub.f32 %v20, %v60
    %v62 = vsub.f32 %v21, %v60
    %v63 = vsub.f32 %v22, %v60
    %v64 = vsub.f32 %v23, %v60
    %v65 = vsub.f32 %v24, %v60
    %v66 = vsub.f32 %v25, %v60
    %v67 = vsub.f32 %v26, %v60
    %v68 = vsub.f32 %v27, %v60
    %v69 = vsub.f32 %v28, %v60
    %v70 = vsub.f32 %v29, %v60
    %v71 = vsub.f32 %v30, %v60
    %v72 = vsub.f32 %v31, %v60
    %v73 = vsub.f32 %v32, %v60
    %v74 = vsub.f32 %v33, %v60
    %v75 = vsub.f32 %v34, %v60
    %v76 = vsub.f32 %v35, %v60
    %v77 = vmul.f32 %v61, 1.442695
    %v78 = vpow.pop %v77
    %v79 = vmul.f32 %v62, 1.442695
    %v80 = vpow.pop %v79
    %v81 = vmul.f32 %v63, 1.442695
    %v82 = vpow.pop %v81
    %v83 = vmul.f32 %v64, 1.442695
    %v84 = vpow.pop %v83
    %v85 = vmul.f32 %v65, 1.442695
    %v86 = vpow.pop %v85
    %v87 = vmul.f32 %v66, 1.442695
    %v88 = vpow.pop %v87
    %v89 = vmul.f32 %v67, 1.442695
    %v90 = vpow.pop %v89
    %v91 = vmul.f32 %v68, 1.442695
    %v92 = vpow.pop %v91
    %v93 = vmul.f32 %v69, 1.442695
    %v94 = vpow.pop %v93
    %v95 = vmul.f32 %v70, 1.442695
    %v96 = vpow.pop %v95
    %v97 = vmul.f32 %v71, 1.442695
    %v98 = vpow.pop %v97
    %v99 = vmul.f32 %v72, 1.442695
    %v100 = vpow.pop %v99
    %v101 = vmul.f32 %v73, 1.442695
    %v102 = vpow.pop %v101
    %v103 = vmul.f32 %v74, 1.442695
    %v104 = vpow.pop %v103
    %v105 = vmul.f32 %v75, 1.442695
    %v106 = vpow.pop %v105
    %v107 = vmul.f32 %v76, 1.442695
    %v108 = vpow.pop %v107
    %109 = vxpose.xlu0.b32.start [1/16] %v20, 128
    %110 = vxpose.xlu0.b32.cont [2/16] %v21, 128
    %111 = vxpose.xlu0.b32.cont [3/16] %v22, 128
    %112 = vxpose.xlu0.b32.cont [4/16] %v23, 128
    %113 = vxpose.xlu0.b32.cont [5/16] %v24, 128
    %114 = vxpose.xlu0.b32.cont [6/16] %v25, 128
    %115 = vxpose.xlu0.b32.cont [7/16] %v26, 128
    %116 = vxpose.xlu0.b32.cont [8/16] %v27, 128
    %117 = vxpose.xlu0.b32.cont [9/16] %v28, 128
    %118 = vxpose.xlu0.b32.cont [10/16] %v29, 128
    %119 = vxpose.xlu0.b32.cont [11/16] %v30, 128
    %120 = vxpose.xlu0.b32.cont [12/16] %v31, 128
    %121 = vxpose.xlu0.b32.cont [13/16] %v32, 128
    %122 = vxpose.xlu0.b32.cont [14/16] %v33, 128
    %123 = vxpose.xlu0.b32.cont [15/16] %v34, 128
    %124 = vxpose.xlu0.b32.end [16/16] %v35, 128
    %v125 = vpop.trf.xlu0
    %v126 = vpop.trf.xlu0
    %v127 = vpop.trf.xlu0
    %v128 = vpop.trf.xlu0
    %v129 = vpop.trf.xlu0
    %v130 = vpop.trf.xlu0
    %v131 = vpop.trf.xlu0
    %v132 = vpop.trf.xlu0
    %v133 = vpop.trf.xlu0
    %v134 = vpop.trf.xlu0
    %v135 = vpop.trf.xlu0
    %v136 = vpop.trf.xlu0
    %v137 = vpop.trf.xlu0
    %v138 = vpop.trf.xlu0
    %v139 = vpop.trf.xlu0
    %v140 = vpop.trf.xlu0
    %v141 = vlaneseq
    %v142 = vand.u32 %v141, 127
    %v143 = vlaneseq
    %v144 = vshrl.u32 %v143, 7
    %v145 = vadd.s32 %v144, 8
    %v146 = vcvt.s32.f32 %v144
    %v147 = vcvt.s32.f32 %v145
    %v148 = vld [vmem:[%s2] sm:$0x3]
    %v149 = vld [vmem:[%s2 + $0x2] sm:$0x3]
    %v150 = vld [vmem:[%s2 + $0x4] sm:$0x3]
    %v151 = vld [vmem:[%s2 + $0x6] sm:$0x3]
    %v152 = vld [vmem:[%s2 + $0x8] sm:$0x3]
    %v153 = vld [vmem:[%s2 + $0xa] sm:$0x3]
    %v154 = vld [vmem:[%s2 + $0xc] sm:$0x3]
    %v155 = vld [vmem:[%s2 + $0xe] sm:$0x3]
    %v156 = vld [vmem:[%s3] sm:$0x3]
    %v157 = vld [vmem:[%s3 + $0x2] sm:$0x3]
    %v158 = vld [vmem:[%s3 + $0x4] sm:$0x3]
    %v159 = vld [vmem:[%s3 + $0x6] sm:$0x3]
    %v160 = vld [vmem:[%s3 + $0x8] sm:$0x3]
    %v161 = vld [vmem:[%s3 + $0xa] sm:$0x3]
    %v162 = vld [vmem:[%s3 + $0xc] sm:$0x3]
    %v163 = vld [vmem:[%s3 + $0xe] sm:$0x3]
    %v164 = vld [vmem:[%s0] sm:$0x3]
    %v165 = vld [vmem:[%s0 + $0x2] sm:$0x3]
    %v166 = vld [vmem:[%s0 + $0x4] sm:$0x3]
    %v167 = vld [vmem:[%s0 + $0x6] sm:$0x3]
    %v168 = vld [vmem:[%s0 + $0x8] sm:$0x3]
    %v169 = vld [vmem:[%s0 + $0xa] sm:$0x3]
    %v170 = vld [vmem:[%s0 + $0xc] sm:$0x3]
    %v171 = vld [vmem:[%s0 + $0xe] sm:$0x3]
    %172 = vset.pattern.permute.xlu0 0
    %173 = vperm.xlu0 %172, %v156
    %v174 = vpop.permute.xlu0 %173
    %175 = vset.pattern.permute.xlu0 0
    %176 = vperm.xlu0 %175, %v157
    %v177 = vpop.permute.xlu0 %176
    %178 = vset.pattern.permute.xlu0 0
    %179 = vperm.xlu0 %178, %v158
    %v180 = vpop.permute.xlu0 %179
    %181 = vset.pattern.permute.xlu0 0
    %182 = vperm.xlu0 %181, %v159
    %v183 = vpop.permute.xlu0 %182
    %184 = vset.pattern.permute.xlu0 0
    %185 = vperm.xlu0 %184, %v160
    %v186 = vpop.permute.xlu0 %185
    %187 = vset.pattern.permute.xlu0 0
    %188 = vperm.xlu0 %187, %v161
    %v189 = vpop.permute.xlu0 %188
    %190 = vset.pattern.permute.xlu0 0
    %191 = vperm.xlu0 %190, %v162
    %v192 = vpop.permute.xlu0 %191
    %193 = vset.pattern.permute.xlu0 0
    %194 = vperm.xlu0 %193, %v163
    %v195 = vpop.permute.xlu0 %194
    %vm196 = vcmp.eq.s32.totalorder %v142, %v174
    %vm197 = vcmp.eq.s32.totalorder %v142, %v177
    %vm198 = vcmp.eq.s32.totalorder %v142, %v180
    %vm199 = vcmp.eq.s32.totalorder %v142, %v183
    %vm200 = vcmp.eq.s32.totalorder %v142, %v186
    %vm201 = vcmp.eq.s32.totalorder %v142, %v189
    %vm202 = vcmp.eq.s32.totalorder %v142, %v192
    %vm203 = vcmp.eq.s32.totalorder %v142, %v195
    %v204 = vsel %vm196, 1, 0
    %v205 = vsel %vm197, 1, 0
    %v206 = vsel %vm198, 1, 0
    %v207 = vsel %vm199, 1, 0
    %v208 = vsel %vm200, 1, 0
    %v209 = vsel %vm201, 1, 0
    %v210 = vsel %vm202, 1, 0
    %v211 = vsel %vm203, 1, 0
    %v212 = vcvt.s32.f32 %v204
    %v213 = vcvt.s32.f32 %v205
    %v214 = vcvt.s32.f32 %v206
    %v215 = vcvt.s32.f32 %v207
    %v216 = vcvt.s32.f32 %v208
    %v217 = vcvt.s32.f32 %v209
    %v218 = vcvt.s32.f32 %v210
    %v219 = vcvt.s32.f32 %v211
    %v220 = vmul.f32 %v164, %v212
    %v221 = vmul.f32 %v165, %v213
    %v222 = vmul.f32 %v166, %v214
    %v223 = vmul.f32 %v167, %v215
    %v224 = vmul.f32 %v168, %v216
    %v225 = vmul.f32 %v169, %v217
    %v226 = vmul.f32 %v170, %v218
    %v227 = vmul.f32 %v171, %v219
    %229 = vset.pattern.permute.xlu0 0
    %230 = vperm.xlu0 %229, %v148
    %v231 = vpop.permute.xlu0 %230
    %234 = vset.pattern.permute.xlu0 0
    %235 = vperm.xlu0 %234, %v149
    %v236 = vpop.permute.xlu0 %235
    %239 = vset.pattern.permute.xlu0 0
    %240 = vperm.xlu0 %239, %v150
    %v241 = vpop.permute.xlu0 %240
    %244 = vset.pattern.permute.xlu0 0
    %245 = vperm.xlu0 %244, %v151
    %v246 = vpop.permute.xlu0 %245
    %249 = vset.pattern.permute.xlu0 0
    %250 = vperm.xlu0 %249, %v152
    %v251 = vpop.permute.xlu0 %250
    %254 = vset.pattern.permute.xlu0 0
    %255 = vperm.xlu0 %254, %v153
    %v256 = vpop.permute.xlu0 %255
    %259 = vset.pattern.permute.xlu0 0
    %260 = vperm.xlu0 %259, %v154
    %v261 = vpop.permute.xlu0 %260
    %264 = vset.pattern.permute.xlu0 0
    %265 = vperm.xlu0 %264, %v155
    %v266 = vpop.permute.xlu0 %265
    %v268 = vmul.f32 %v220, %v231
    %v269 = vmul.f32 %v221, %v236
    %v270 = vmul.f32 %v222, %v241
    %v271 = vmul.f32 %v223, %v246
    %v272 = vmul.f32 %v224, %v251
    %v273 = vmul.f32 %v225, %v256
    %v274 = vmul.f32 %v226, %v261
    %v275 = vmul.f32 %v227, %v266
    %vm276 = vcmask 1041408
    %v277 = vsel %vm276, %v268, 0.0
    %v278 = vsel %vm276, %v269, 0.0
    %v279 = vadd.f32 %v277, %v278
    %v280 = vsel %vm276, %v270, 0.0
    %v281 = vadd.f32 %v279, %v280
    %v282 = vsel %vm276, %v271, 0.0
    %v283 = vadd.f32 %v281, %v282
    %v284 = vsel %vm276, %v272, 0.0
    %v285 = vadd.f32 %v283, %v284
    %v286 = vsel %vm276, %v273, 0.0
    %v287 = vadd.f32 %v285, %v286
    %v288 = vsel %vm276, %v274, 0.0
    %v289 = vadd.f32 %v287, %v288
    %v290 = vsel %vm276, %v275, 0.0
    %v291 = vadd.f32 %v289, %v290
    %292 = vadd.xlane.f32.xlu0 %v291
    %v293 = vpop.xlane.xlu0 %292
    %v294 = vrot.slane %v293, 4
    %v295 = vadd.f32 %v293, %v294
    %v296 = vrot.slane %v295, 2
    %v297 = vadd.f32 %v295, %v296
    %v298 = vrot.slane %v297, 1
    %v299 = vadd.f32 %v297, %v298
    %s300 = vtos %v299
    %v308 = vcombine.low %v212, %v213
    %v309 = vcombine.low %v214, %v215
    %v311 = vunpack.c.l.s4 1983009808
    %v312 = vunpack.c.0.s8 %v311
    %v313 = vlaneseq
    %v314 = vshrl.u32 %v313, 7
    %v315 = vsub.s32 %v312, %v314
    %v316 = vrot.slane %v308, %v315
    %v318 = vunpack.c.l.s4 1983009808
    %v319 = vunpack.c.0.s8 %v318
    %v320 = vlaneseq
    %v321 = vshrl.u32 %v320, 7
    %v322 = vsub.s32 %v319, %v321
    %v323 = vrot.slane %v309, %v322
    %v324 = vcombine.low %v316, %v323
    %v325 = vcombine.low %v216, %v217
    %v327 = vunpack.c.l.s4 1983009808
    %v328 = vunpack.c.0.s8 %v327
    %v329 = vlaneseq
    %v330 = vshrl.u32 %v329, 7
    %v331 = vsub.s32 %v328, %v330
    %v332 = vrot.slane %v325, %v331
    %v334 = vunpack.c.l.s4 1983009808
    %v335 = vunpack.c.0.s8 %v334
    %v336 = vlaneseq
    %v337 = vshrl.u32 %v336, 7
    %v338 = vsub.s32 %v335, %v337
    %v339 = vrot.slane %v218, %v338
    %v340 = vcombine.low %v332, %v339
    %343 = vmatprep.subr.mxu0 0.0
    %344 = vmatpush1.msra.mxu0 %v20
    %345 = vmatprep.subr.mxu0 0.0
    %346 = vmatpush1.msra.mxu0 %v21
    %347 = vmatprep.subr.mxu0 0.0
    %348 = vmatpush1.msra.mxu0 %v22
    %349 = vmatprep.subr.mxu0 0.0
    %350 = vmatpush1.msra.mxu0 %v23
    %351 = vmatprep.subr.mxu0 0.0
    %352 = vmatpush1.msra.mxu0 %v24
    %353 = vmatprep.subr.mxu0 0.0
    %354 = vmatpush1.msra.mxu0 %v25
    %355 = vmatprep.subr.mxu0 0.0
    %356 = vmatpush1.msra.mxu0 %v26
    %357 = vmatprep.subr.mxu0 0.0
    %358 = vmatpush1.msra.mxu0 %v27
    %359 = vmatprep.subr.mxu0 0.0
    %360 = vmatpush1.msra.mxu0 %v28
    %361 = vmatprep.subr.mxu0 0.0
    %362 = vmatpush1.msra.mxu0 %v29
    %363 = vmatprep.subr.mxu0 0.0
    %364 = vmatpush1.msra.mxu0 %v30
    %365 = vmatprep.subr.mxu0 0.0
    %366 = vmatpush1.msra.mxu0 %v31
    %367 = vmatprep.subr.mxu0 0.0
    %368 = vmatpush1.msra.mxu0 %v32
    %369 = vmatprep.subr.mxu0 0.0
    %370 = vmatpush1.msra.mxu0 %v33
    %371 = vmatprep.subr.mxu0 0.0
    %372 = vmatpush1.msra.mxu0 %v34
    %373 = vmatprep.subr.mxu0 0.0
    %374 = vmatpush1.msra.mxu0 %v35
    %375 = vmatprep.subr.mxu0 0.0
    %376 = vmatpush1.msra.mxu0 0.0
    %377 = vmatprep.subr.mxu0 0.0
    %378 = vmatpush1.msra.mxu0 0.0
    %379 = vmatprep.subr.mxu0 0.0
    %380 = vmatpush1.msra.mxu0 0.0
    %381 = vmatprep.subr.mxu0 0.0
    %382 = vmatpush1.msra.mxu0 0.0
    %383 = vmatprep.subr.mxu0 0.0
    %384 = vmatpush1.msra.mxu0 0.0
    %385 = vmatprep.subr.mxu0 0.0
    %386 = vmatpush1.msra.mxu0 0.0
    %387 = vmatprep.subr.mxu0 0.0
    %388 = vmatpush1.msra.mxu0 0.0
    %389 = vmatprep.subr.mxu0 0.0
    %390 = vmatpush1.msra.mxu0 0.0
    %391 = vmatprep.subr.mxu0 0.0
    %392 = vmatpush1.msra.mxu0 0.0
    %393 = vmatprep.subr.mxu0 0.0
    %394 = vmatpush1.msra.mxu0 0.0
    %395 = vmatprep.subr.mxu0 0.0
    %396 = vmatpush1.msra.mxu0 0.0
    %397 = vmatprep.subr.mxu0 0.0
    %398 = vmatpush1.msra.mxu0 0.0
    %399 = vmatprep.subr.mxu0 0.0
    %400 = vmatpush1.msra.mxu0 0.0
    %401 = vmatprep.subr.mxu0 0.0
    %402 = vmatpush1.msra.mxu0 0.0
    %403 = vmatprep.subr.mxu0 0.0
    %404 = vmatpush1.msra.mxu0 0.0
    %405 = vmatprep.subr.mxu0 0.0
    %406 = vmatpush1.msra.mxu0 0.0
    %407 = vmatprep.mubr.f32.mxu0 0.0
    %408 = vmatmul.mubr.f32.gmra.mrb[0].mxu0 %v324
    %v409 = vpop.f32.mrb[0].mxu0
    %v410 = vadd.f32 0.0, %v409
    %v411 = vpop.f32.mrb[0].mxu0
    %412 = vmatprep.mubr.f32.mxu0 0.0
    %413 = vmatmul.mubr.f32.gmra.mrb[0].mxu0 %v340
    %v414 = vpop.f32.mrb[0].mxu0
    %v415 = vadd.f32 0.0, %v414
    %v416 = vpop.f32.mrb[0].mxu0
    %417 = vdwg.mxu0
    %v420 = vcombine.high %v410, %v410
    %v422 = vunpack.c.l.s4 1983009808
    %v423 = vunpack.c.0.s8 %v422
    %v424 = vlaneseq
    %v425 = vshrl.u32 %v424, 7
    %v426 = vsub.s32 %v423, %v425
    %v427 = vrot.slane %v410, %v426
    %v429 = vunpack.c.l.s4 1983009808
    %v430 = vunpack.c.0.s8 %v429
    %v431 = vlaneseq
    %v432 = vshrl.u32 %v431, 7
    %v433 = vsub.s32 %v430, %v432
    %v434 = vrot.slane %v420, %v433
    %v435 = vcombine.high %v427, %v427
    %v436 = vcombine.high %v434, %v434
    %v437 = vcombine.high %v415, %v415
    %v439 = vunpack.c.l.s4 1983009808
    %v440 = vunpack.c.0.s8 %v439
    %v441 = vlaneseq
    %v442 = vshrl.u32 %v441, 7
    %v443 = vsub.s32 %v440, %v442
    %v444 = vrot.slane %v415, %v443
    %v446 = vunpack.c.l.s4 1983009808
    %v447 = vunpack.c.0.s8 %v446
    %v448 = vlaneseq
    %v449 = vshrl.u32 %v448, 7
    %v450 = vsub.s32 %v447, %v449
    %v451 = vrot.slane %v437, %v450
    %v452 = vcombine.high %v444, %v444
    %v460 = vmul.f32 %v427, %v213
    %v461 = vmul.f32 %v435, %v214
    %v462 = vmul.f32 %v434, %v215
    %v463 = vmul.f32 %v436, %v216
    %v464 = vmul.f32 %v444, %v217
    %v465 = vmul.f32 %v452, %v218
    %v466 = vmul.f32 %v451, %v219
    %v467 = vmul.f32 %v460, %v236
    %v468 = vmul.f32 %v461, %v241
    %v469 = vmul.f32 %v462, %v246
    %v470 = vmul.f32 %v463, %v251
    %v471 = vmul.f32 %v464, %v256
    %v472 = vmul.f32 %v465, %v261
    %v473 = vmul.f32 %v466, %v266
    %v474 = vsel %vm276, %v467, 0.0
    %v475 = vsel %vm276, %v468, 0.0
    %v476 = vadd.f32 %v474, %v475
    %v477 = vsel %vm276, %v469, 0.0
    %v478 = vadd.f32 %v476, %v477
    %v479 = vsel %vm276, %v470, 0.0
    %v480 = vadd.f32 %v478, %v479
    %v481 = vsel %vm276, %v471, 0.0
    %v482 = vadd.f32 %v480, %v481
    %v483 = vsel %vm276, %v472, 0.0
    %v484 = vadd.f32 %v482, %v483
    %v485 = vsel %vm276, %v473, 0.0
    %v486 = vadd.f32 %v484, %v485
    %487 = vadd.xlane.f32.xlu0 %v486
    %v488 = vpop.xlane.xlu0 %487
    %v489 = vrot.slane %v488, 4
    %v490 = vadd.f32 %v488, %v489
    %v491 = vrot.slane %v490, 2
    %v492 = vadd.f32 %v490, %v491
    %v493 = vrot.slane %v492, 1
    %v494 = vadd.f32 %v492, %v493
    %s495 = vtos %v494
    %v496 = vlaneseq
    %v497 = vshrl.u32 %v496, 7
    %v498 = vsub.s32 7, %v497
    %v499 = vrot.slane %v20, %v498
    %v500 = vmul.f32 %v499, %v212
    %v501 = vmul.f32 %v500, %v231
    %v502 = vsel %vm276, %v501, 0.0
    %503 = vadd.xlane.f32.xlu0 %v502
    %v504 = vpop.xlane.xlu0 %503
    %v505 = vrot.slane %v504, 4
    %v506 = vadd.f32 %v504, %v505
    %v507 = vrot.slane %v506, 2
    %v508 = vadd.f32 %v506, %v507
    %v509 = vrot.slane %v508, 1
    %v510 = vadd.f32 %v508, %v509
    %s511 = vtos %v510
    %v512 = vmul.f32 %v212, %v231
    %v513 = vmul.f32 %v213, %v236
    %v514 = vmul.f32 %v214, %v241
    %v515 = vmul.f32 %v215, %v246
    %v516 = vmul.f32 %v216, %v251
    %v517 = vmul.f32 %v217, %v256
    %v518 = vmul.f32 %v218, %v261
    %v519 = vmul.f32 %v219, %v266
    %v520 = vsel %vm276, %v512, 0.0
    %v521 = vsel %vm276, %v513, 0.0
    %v522 = vadd.f32 %v520, %v521
    %v523 = vsel %vm276, %v514, 0.0
    %v524 = vadd.f32 %v522, %v523
    %v525 = vsel %vm276, %v515, 0.0
    %v526 = vadd.f32 %v524, %v525
    %v527 = vsel %vm276, %v516, 0.0
    %v528 = vadd.f32 %v526, %v527
    %v529 = vsel %vm276, %v517, 0.0
    %v530 = vadd.f32 %v528, %v529
    %v531 = vsel %vm276, %v518, 0.0
    %v532 = vadd.f32 %v530, %v531
    %v533 = vsel %vm276, %v519, 0.0
    %v534 = vadd.f32 %v532, %v533
    %v535 = vmul.f32 %v212, %v236
    %v536 = vmul.f32 %v213, %v241
    %v537 = vmul.f32 %v214, %v246
    %v538 = vmul.f32 %v215, %v251
    %v539 = vmul.f32 %v216, %v256
    %v540 = vmul.f32 %v217, %v261
    %v541 = vmul.f32 %v218, %v266
    %v542 = vsel %vm276, %v535, 0.0
    %v543 = vsel %vm276, %v536, 0.0
    %v544 = vadd.f32 %v542, %v543
    %v545 = vsel %vm276, %v537, 0.0
    %v546 = vadd.f32 %v544, %v545
    %v547 = vsel %vm276, %v538, 0.0
    %v548 = vadd.f32 %v546, %v547
    %v549 = vsel %vm276, %v539, 0.0
    %v550 = vadd.f32 %v548, %v549
    %v551 = vsel %vm276, %v540, 0.0
    %v552 = vadd.f32 %v550, %v551
    %v553 = vsel %vm276, %v541, 0.0
    %v554 = vadd.f32 %v552, %v553
    %v555 = vsub.f32 %v534, %v554
    %v556 = vlaneseq
    %v557 = vshrl.u32 %v556, 7
    %v558 = vsub.s32 0, %v557
    %v559 = vrot.slane %v126, %v558
    %v560 = vmul.f32 %v555, %v559
    %v561 = vsel %vm276, %v560, 0.0
    %562 = vadd.xlane.f32.xlu0 %v561
    %v563 = vpop.xlane.xlu0 %562
    %v564 = vrot.slane %v563, 4
    %v565 = vadd.f32 %v563, %v564
    %v566 = vrot.slane %v565, 2
    %v567 = vadd.f32 %v565, %v566
    %v568 = vrot.slane %v567, 1
    %v569 = vadd.f32 %v567, %v568
    %s570 = vtos %v569
    %s571 = sadd.f32 %s300, %s495
    %s572 = sadd.f32 %s571, %s511
    %s573 = sadd.f32 %s572, %s570
    %v574 = vadd.f32 %v164, %v499
    loop: start=1, step=1, limit=8
    $region18: #{_lambda_.23} parent=1 // loop_pre_header
      _
    $region19: #{_lambda_.23} parent=1 // loop_header
      %s576 = sphi 1, %s580
      %p577 = scmp.ge.s32.totalorder %s576, 8
      %v581 = vphi %v574, %v675
      %v582 = vphi %v574, %v752
    $region20: #{_lambda_.23} parent=1 // loop_header_branch
      %579 = sbr.rel (%p577) target = $region24
    $region21: #{_lambda_.23} parent=1 // loop_body
      %s583 = smul.u32 %s576, 2
      %s584 = scalar_lea.vmem %s0, %s583
      %v585 = vld [vmem:[%s584] sm:$0x3]
      %s586 = scalar_lea.vmem %s2, %s583
      %v587 = vld [vmem:[%s586] sm:$0x3]
      %vm588 = vcmp.gt.f32.partialorder %v587, 0.0
      %v589 = vsel %vm276, %v581, -inf
      %590 = vmax.xlane.f32.xlu0 %v589
      %v591 = vpop.xlane.xlu0 %590
      %v592 = vsub.f32 %v581, %v591
      %v593 = vmul.f32 %v592, 1.442695
      %v594 = vpow.pop %v593
      %595 = vmatprep.subr.mxu0 0.0
      %596 = vmatpush1.msra.mxu0 %v78
      %597 = vmatprep.subr.mxu0 0.0
      %598 = vmatpush1.msra.mxu0 %v80
      %599 = vmatprep.subr.mxu0 0.0
      %600 = vmatpush1.msra.mxu0 %v82
      %601 = vmatprep.subr.mxu0 0.0
      %602 = vmatpush1.msra.mxu0 %v84
      %603 = vmatprep.subr.mxu0 0.0
      %604 = vmatpush1.msra.mxu0 %v86
      %605 = vmatprep.subr.mxu0 0.0
      %606 = vmatpush1.msra.mxu0 %v88
      %607 = vmatprep.subr.mxu0 0.0
      %608 = vmatpush1.msra.mxu0 %v90
      %609 = vmatprep.subr.mxu0 0.0
      %610 = vmatpush1.msra.mxu0 %v92
      %611 = vmatprep.subr.mxu0 0.0
      %612 = vmatpush1.msra.mxu0 %v94
      %613 = vmatprep.subr.mxu0 0.0
      %614 = vmatpush1.msra.mxu0 %v96
      %615 = vmatprep.subr.mxu0 0.0
      %616 = vmatpush1.msra.mxu0 %v98
      %617 = vmatprep.subr.mxu0 0.0
      %618 = vmatpush1.msra.mxu0 %v100
      %619 = vmatprep.subr.mxu0 0.0
      %620 = vmatpush1.msra.mxu0 %v102
      %621 = vmatprep.subr.mxu0 0.0
      %622 = vmatpush1.msra.mxu0 %v104
      %623 = vmatprep.subr.mxu0 0.0
      %624 = vmatpush1.msra.mxu0 %v106
      %625 = vmatprep.subr.mxu0 0.0
      %626 = vmatpush1.msra.mxu0 %v108
      %627 = vmatprep.subr.mxu0 0.0
      %628 = vmatpush1.msra.mxu0 0.0
      %629 = vmatprep.subr.mxu0 0.0
      %630 = vmatpush1.msra.mxu0 0.0
      %631 = vmatprep.subr.mxu0 0.0
      %632 = vmatpush1.msra.mxu0 0.0
      %633 = vmatprep.subr.mxu0 0.0
      %634 = vmatpush1.msra.mxu0 0.0
      %635 = vmatprep.subr.mxu0 0.0
      %636 = vmatpush1.msra.mxu0 0.0
      %637 = vmatprep.subr.mxu0 0.0
      %638 = vmatpush1.msra.mxu0 0.0
      %639 = vmatprep.subr.mxu0 0.0
      %640 = vmatpush1.msra.mxu0 0.0
      %641 = vmatprep.subr.mxu0 0.0
      %642 = vmatpush1.msra.mxu0 0.0
      %643 = vmatprep.subr.mxu0 0.0
      %644 = vmatpush1.msra.mxu0 0.0
      %645 = vmatprep.subr.mxu0 0.0
      %646 = vmatpush1.msra.mxu0 0.0
      %647 = vmatprep.subr.mxu0 0.0
      %648 = vmatpush1.msra.mxu0 0.0
      %649 = vmatprep.subr.mxu0 0.0
      %650 = vmatpush1.msra.mxu0 0.0
      %651 = vmatprep.subr.mxu0 0.0
      %652 = vmatpush1.msra.mxu0 0.0
      %653 = vmatprep.subr.mxu0 0.0
      %654 = vmatpush1.msra.mxu0 0.0
      %655 = vmatprep.subr.mxu0 0.0
      %656 = vmatpush1.msra.mxu0 0.0
      %657 = vmatprep.subr.mxu0 0.0
      %658 = vmatpush1.msra.mxu0 0.0
      %659 = vmatprep.mubr.f32.mxu0 0.0
      %660 = vmatmul.mubr.f32.gmra.mrb[0].mxu0 %v594
      %v661 = vpop.f32.mrb[0].mxu0
      %v662 = vadd.f32 0.0, %v661
      %v663 = vpop.f32.mrb[0].mxu0
      %664 = vdwg.mxu0
      %v665 = vadd.f32 %v591, %v60
      %v666 = vlog2.pop %v662
      %v667 = vmul.f32 %v666, 0.6931472
      %v668 = vadd.f32 %v665, %v667
      %v669 = vadd.f32 %v668, %v585
      %v670 = vsel %vm588, 1, 0
      %671 = vset.pattern.permute.xlu0 0
      %672 = vperm.xlu0 %671, %v670
      %v673 = vpop.permute.xlu0 %672
      %vm674 = vcmp.eq.s32.totalorder %v673, 1
      %v675 = vsel %vm674, %v669, %v581
      %v676 = vlaneseq
      %v677 = vshrl.u32 %v676, 7
      %v678 = vsub.s32 0, %v677
      %v679 = vrot.slane %v582, %v678
      %681 = vbcast.lane.b32.xlu0 %v679, 256
      %v682 = vpop.permute.xlu0 %681
      %s684 = sor.u32 256, 8
      %685 = vbcast.lane.b32.xlu0 %v679, %s684
      %v686 = vpop.permute.xlu0 %685
      %v687 = vlaneseq
      %v688 = vshrl.u32 %v687, 7
      %v689 = vsub.s32 1, %v688
      %v690 = vrot.slane %v582, %v689
      %692 = vbcast.lane.b32.xlu0 %v690, 256
      %v693 = vpop.permute.xlu0 %692
      %s695 = sor.u32 256, 8
      %696 = vbcast.lane.b32.xlu0 %v690, %s695
      %v697 = vpop.permute.xlu0 %696
      %v698 = vadd.f32 %v682, %v20
      %v699 = vadd.f32 %v686, %v21
      %v700 = vadd.f32 %v693, %v20
      %v701 = vadd.f32 %v697, %v21
      %v702 = vmax.f32 %v698, %v699
      %v703 = vrot.slane %v702, 4
      %v704 = vmax.f32 %v702, %v703
      %v705 = vrot.slane %v704, 2
      %v706 = vmax.f32 %v704, %v705
      %v707 = vrot.slane %v706, 1
      %v708 = vmax.f32 %v706, %v707
      %v709 = vmax.f32 %v700, %v701
      %v710 = vrot.slane %v709, 4
      %v711 = vmax.f32 %v709, %v710
      %v712 = vrot.slane %v711, 2
      %v713 = vmax.f32 %v711, %v712
      %v714 = vrot.slane %v713, 1
      %v715 = vmax.f32 %v713, %v714
      %vm716 = vcmp.ge.f32.partialorder %v698, %v708
      %vm717 = vcmp.ge.f32.partialorder %v699, %v708
      %vm718 = vcmp.ge.f32.partialorder %v700, %v715
      %vm719 = vcmp.ge.f32.partialorder %v701, %v715
      %v720 = vsel %vm716, %v146, 16.0
      %v721 = vsel %vm717, %v147, 16.0
      %v722 = vsel %vm718, %v146, 16.0
      %v723 = vsel %vm719, %v147, 16.0
      %v724 = vmin.f32 %v720, %v721
      %v725 = vrot.slane %v724, 4
      %v726 = vmin.f32 %v724, %v725
      %v727 = vrot.slane %v726, 2
      %v728 = vmin.f32 %v726, %v727
      %v729 = vrot.slane %v728, 1
      %v730 = vmin.f32 %v728, %v729
      %v731 = vmin.f32 %v722, %v723
      %v732 = vrot.slane %v731, 4
      %v733 = vmin.f32 %v731, %v732
      %v734 = vrot.slane %v733, 2
      %v735 = vmin.f32 %v733, %v734
      %v736 = vrot.slane %v735, 1
      %v737 = vmin.f32 %v735, %v736
      %v738 = vcvt.f32.s32.to.zero.pseudo %v730
      %v739 = vcvt.f32.s32.to.zero.pseudo %v737
      %v741 = vrot.slane %v585, 1
      %v744 = vadd.f32 %v708, %v585
      %v745 = vadd.f32 %v715, %v741
      %v748 = vrot.slane %v745, 7
      %vm749 = vcmask 1041409
      %v750 = vsel %vm749, %v748, %v744
      %v752 = vsel %vm674, %v750, %v582
      %v753 = vsel %vm749, %v739, %v738
      %v754 = vsel %vm674, %v753, %v142
      %s755 = scalar_lea.vmem [#allocation2], %s583
      %756 = vst [vmem:[%s755] sm:$0x3] %v754
    $region22: #{_lambda_.23} parent=1 // loop_footer
      %s580 = sadd.s32 1, %s576
    $region23: #{_lambda_.23} parent=1 // loop_footer_branch
      %575 = sbr.rel target = $region19
    $region24: #{_lambda_.23} parent=1 // loop_exit
      _
    %v757 = vsel %vm276, %v581, -inf
    %758 = vmax.xlane.f32.xlu0 %v757
    %v759 = vpop.xlane.xlu0 %758
    %v760 = vsub.f32 %v581, %v759
    %v761 = vmul.f32 %v760, 1.442695
    %v762 = vpow.pop %v761
    %763 = vmatprep.subr.mxu0 0.0
    %764 = vmatpush1.msra.mxu0 %v78
    %765 = vmatprep.subr.mxu0 0.0
    %766 = vmatpush1.msra.mxu0 %v80
    %767 = vmatprep.subr.mxu0 0.0
    %768 = vmatpush1.msra.mxu0 %v82
    %769 = vmatprep.subr.mxu0 0.0
    %770 = vmatpush1.msra.mxu0 %v84
    %771 = vmatprep.subr.mxu0 0.0
    %772 = vmatpush1.msra.mxu0 %v86
    %773 = vmatprep.subr.mxu0 0.0
    %774 = vmatpush1.msra.mxu0 %v88
    %775 = vmatprep.subr.mxu0 0.0
    %776 = vmatpush1.msra.mxu0 %v90
    %777 = vmatprep.subr.mxu0 0.0
    %778 = vmatpush1.msra.mxu0 %v92
    %779 = vmatprep.subr.mxu0 0.0
    %780 = vmatpush1.msra.mxu0 %v94
    %781 = vmatprep.subr.mxu0 0.0
    %782 = vmatpush1.msra.mxu0 %v96
    %783 = vmatprep.subr.mxu0 0.0
    %784 = vmatpush1.msra.mxu0 %v98
    %785 = vmatprep.subr.mxu0 0.0
    %786 = vmatpush1.msra.mxu0 %v100
    %787 = vmatprep.subr.mxu0 0.0
    %788 = vmatpush1.msra.mxu0 %v102
    %789 = vmatprep.subr.mxu0 0.0
    %790 = vmatpush1.msra.mxu0 %v104
    %791 = vmatprep.subr.mxu0 0.0
    %792 = vmatpush1.msra.mxu0 %v106
    %793 = vmatprep.subr.mxu0 0.0
    %794 = vmatpush1.msra.mxu0 %v108
    %795 = vmatprep.subr.mxu0 0.0
    %796 = vmatpush1.msra.mxu0 0.0
    %797 = vmatprep.subr.mxu0 0.0
    %798 = vmatpush1.msra.mxu0 0.0
    %799 = vmatprep.subr.mxu0 0.0
    %800 = vmatpush1.msra.mxu0 0.0
    %801 = vmatprep.subr.mxu0 0.0
    %802 = vmatpush1.msra.mxu0 0.0
    %803 = vmatprep.subr.mxu0 0.0
    %804 = vmatpush1.msra.mxu0 0.0
    %805 = vmatprep.subr.mxu0 0.0
    %806 = vmatpush1.msra.mxu0 0.0
    %807 = vmatprep.subr.mxu0 0.0
    %808 = vmatpush1.msra.mxu0 0.0
    %809 = vmatprep.subr.mxu0 0.0
    %810 = vmatpush1.msra.mxu0 0.0
    %811 = vmatprep.subr.mxu0 0.0
    %812 = vmatpush1.msra.mxu0 0.0
    %813 = vmatprep.subr.mxu0 0.0
    %814 = vmatpush1.msra.mxu0 0.0
    %815 = vmatprep.subr.mxu0 0.0
    %816 = vmatpush1.msra.mxu0 0.0
    %817 = vmatprep.subr.mxu0 0.0
    %818 = vmatpush1.msra.mxu0 0.0
    %819 = vmatprep.subr.mxu0 0.0
    %820 = vmatpush1.msra.mxu0 0.0
    %821 = vmatprep.subr.mxu0 0.0
    %822 = vmatpush1.msra.mxu0 0.0
    %823 = vmatprep.subr.mxu0 0.0
    %824 = vmatpush1.msra.mxu0 0.0
    %825 = vmatprep.subr.mxu0 0.0
    %826 = vmatpush1.msra.mxu0 0.0
    %827 = vmatprep.mubr.f32.mxu0 0.0
    %828 = vmatmul.mubr.f32.gmra.mrb[0].mxu0 %v762
    %v829 = vpop.f32.mrb[0].mxu0
    %v830 = vadd.f32 0.0, %v829
    %v831 = vpop.f32.mrb[0].mxu0
    %832 = vdwg.mxu0
    %v833 = vadd.f32 %v759, %v60
    %v834 = vlog2.pop %v830
    %v835 = vmul.f32 %v834, 0.6931472
    %v836 = vadd.f32 %v833, %v835
    %838 = vrot.lane.b32.xlu0 %v836, 120
    %v839 = vpop.permute.xlu0 %838
    %vm841 = vcmask 1024
    %v842 = vsel %vm841, %v839, 0.0
    %843 = vadd.xlane.f32.xlu0 %v842
    %v844 = vpop.xlane.xlu0 %843
    %v845 = vrot.slane %v844, 4
    %v846 = vadd.f32 %v844, %v845
    %v847 = vrot.slane %v846, 2
    %v848 = vadd.f32 %v846, %v847
    %v849 = vrot.slane %v848, 1
    %v850 = vadd.f32 %v848, %v849
    %s851 = vtos %v850
    %s852 = ssub.f32 %s851, %s573
    %s853 = scalar_lea.smem [#allocation3], 0
    %854 = sst [smem:[%s853]] %s852
    %v855 = vadd.f32 %v582, %v559
    %v856 = vsel %vm276, %v855, -inf
    %857 = vmax.xlane.f32.xlu0 %v856
    %v858 = vpop.xlane.xlu0 %857
    %vm859 = vcmp.ge.f32.partialorder %v855, %v858
    %v860 = vcvt.s32.f32 %v142
    %v861 = vsel %vm859, %v860, 128.0
    %v862 = vsel %vm276, %v861, inf
    %863 = vmin.xlane.f32.xlu0 %v862
    %v864 = vpop.xlane.xlu0 %863
    %v865 = vcvt.f32.s32.to.zero.pseudo %v864
    %vm866 = vcmp.eq.s32.totalorder %v142, 7
    %v867 = vsel %vm866, %v865, 0
    loop: start=0, step=1, limit=7
    $region25: #{_lambda_.23} parent=1 // loop_pre_header
      _
    $region26: #{_lambda_.23} parent=1 // loop_header
      %s869 = sphi 0, %s873
      %p870 = scmp.ge.s32.totalorder %s869, 7
      %v874 = vphi %v865, %v886
      %v875 = vphi %v867, %v890
    $region27: #{_lambda_.23} parent=1 // loop_header_branch
      %872 = sbr.rel (%p870) target = $region31
    $region28: #{_lambda_.23} parent=1 // loop_body
      %s876 = ssub.s32 7, %s869
      %s877 = smul.u32 %s876, 2
      %s878 = scalar_lea.vmem [#allocation2], %s877
      %v879 = vld [vmem:[%s878] sm:$0x3]
      %v880 = vcvt.s32.f32 %v879
      %vm881 = vcmp.eq.s32.totalorder %v142, %v874
      %v882 = vsel %vm881, %v880, 0.0
      %v883 = vsel %vm276, %v882, 0.0
      %884 = vadd.xlane.f32.xlu0 %v883
      %v885 = vpop.xlane.xlu0 %884
      %v886 = vcvt.f32.s32.to.zero.pseudo %v885
      %s887 = ssub.s32 6, %s869
      %v888 = vstv %s887
      %vm889 = vcmp.eq.s32.totalorder %v142, %v888
      %v890 = vsel %vm889, %v886, %v875
    $region29: #{_lambda_.23} parent=1 // loop_footer
      %s873 = sadd.s32 1, %s869
    $region30: #{_lambda_.23} parent=1 // loop_footer_branch
      %868 = sbr.rel target = $region26
    $region31: #{_lambda_.23} parent=1 // loop_exit
      _
    %vm891 = vcmask 58368
    %892 = vst.msk [vmem:[%s5] sm:$0x3] %vm891, %v875
    // Predicated region
    $region32: #{_lambda_.23} parent=1 // pred_check
      _
    $region33: #{_lambda_.23} parent=1 // pred_check_branch
      %894 = sbr.rel (0) target = $region35
    $region34: #{_lambda_.23} parent=1 // pred_region
      %s896 = ssub.s32 16, 16
      %897 = vsyncadd [#allocation4], %s896
      %900 = dma.smem_to_hbm [#allocation3], 16, %s4, [#allocation4]
    $region35: #{_lambda_.23} parent=1 // pred_fallthru
      _
    // Predicated region
    $region36: #{_lambda_.23} parent=1 // pred_check
      _
    $region37: #{_lambda_.23} parent=1 // pred_check_branch
      %902 = sbr.rel (0) target = $region39
    $region38: #{_lambda_.23} parent=1 // pred_region
      _
    $region39: #{_lambda_.23} parent=1 // pred_fallthru
      _
    // Predicated region
    $region40: #{_lambda_.23} parent=1 // pred_check
      _
    $region41: #{_lambda_.23} parent=1 // pred_check_branch
      %904 = sbr.rel (0) target = $region43
    $region42: #{_lambda_.23} parent=1 // pred_region
      %905 = dma.done [#allocation4], 16
    $region43: #{_lambda_.23} parent=1 // pred_fallthru
      _
    // Predicated region
    $region44: #{_lambda_.23} parent=1 // pred_check
      _
    $region45: #{_lambda_.23} parent=1 // pred_check_branch
      %907 = sbr.rel (0) target = $region47
    $region46: #{_lambda_.23} parent=1 // pred_region
      _
    $region47: #{_lambda_.23} parent=1 // pred_fallthru
      _
    %908 = sfence
    %909 = vsyncpa [#allocation4], 1

</llo_original>
